<compile_context>
chip_gen: v7x
topology: tpu7x:2x2x1
jax: 0.10.0
libtpu: 0.0.40
codegen_flags: <defaults>
</compile_context>

<pallas_src>
import functools

import jax
import jax.numpy as jnp
from jax.experimental import pallas as pl
from jax.experimental.pallas import tpu as pltpu


ACT_DTYPE = jnp.bfloat16            # activation / matmul-operand storage dtype
_VMEM_LIMIT = 48 * 1024 * 1024      # leaves headroom on v7x's 64 MiB physical VMEM


# ------------------------------ small helpers ------------------------------

def _round_up(x, m):
    return ((x + m - 1) // m) * m


def _pick_row_tile(dim, preferred=256):
    """Largest multiple-of-8 tile <= preferred dividing dim (else whole dim)."""
    if dim <= preferred:
        return dim
    t = preferred - preferred % 8
    while t >= 8:
        if dim % t == 0:
            return t
        t -= 8
    return dim


def _pick_lane_tile(dim, preferred=512):
    """Largest multiple-of-128 tile <= preferred dividing dim (else whole dim)."""
    if dim <= preferred:
        return dim
    t = preferred - preferred % 128
    while t >= 128:
        if dim % t == 0:
            return t
        t -= 128
    return dim


def _cparams(semantics):
    return pltpu.CompilerParams(dimension_semantics=semantics,
                                vmem_limit_bytes=_VMEM_LIMIT)


def _gelu_exact(y):
    # PyTorch nn.GELU default = exact erf GELU.
    return 0.5 * y * (1.0 + jax.lax.erf(y * 0.7071067811865476))


def _layernorm_rows(x, gamma, beta, eps):
    x = x.astype(jnp.float32)
    mu = jnp.mean(x, axis=-1, keepdims=True)
    xc = x - mu
    var = jnp.mean(xc * xc, axis=-1, keepdims=True)
    return xc * jax.lax.rsqrt(var + eps) * gamma + beta


# ----------------------------- Pallas kernels -----------------------------

def _linear_kernel(x_ref, w_ref, b_ref, *rest, nk, activation, has_residual):
    """Tiled matmul with fp32 accumulator; optional GELU and residual add."""
    if has_residual:
        r_ref, o_ref, acc_ref = rest
    else:
        o_ref, acc_ref = rest
        r_ref = None
    k = pl.program_id(2)

    @pl.when(k == 0)
    def _():
        acc_ref[...] = jnp.zeros_like(acc_ref)

    acc_ref[...] += jnp.dot(x_ref[...], w_ref[...],
                            preferred_element_type=jnp.float32)

    @pl.when(k == nk - 1)
    def _():
        y = acc_ref[...] + b_ref[...].astype(jnp.float32)
        if activation == "gelu":
            y = _gelu_exact(y)
        if r_ref is not None:
            y = y + r_ref[...].astype(jnp.float32)
        o_ref[...] = y.astype(o_ref.dtype)


def _ln_qkv_kernel(x_ref, g_ref, b_ref, w_ref, bias_ref, o_ref, h_ref, *, eps):
    """Fused LayerNorm + QKV projection, head-major output [3H, M, Dh]."""
    @pl.when(pl.program_id(1) == 0)           # LN computed once per row tile
    def _():
        h_ref[...] = _layernorm_rows(
            x_ref[...], g_ref[...].astype(jnp.float32),
            b_ref[...].astype(jnp.float32), eps).astype(h_ref.dtype)

    y = jnp.dot(h_ref[...], w_ref[0],
                preferred_element_type=jnp.float32) + bias_ref[0].astype(jnp.float32)
    o_ref[0] = y.astype(o_ref.dtype)


def _ln_linear_kernel(x_ref, g_ref, b_ref, w_ref, bias_ref, o_ref, h_ref,
                      *, eps, activation):
    """Fused LayerNorm + matmul (+ optional GELU)."""
    @pl.when(pl.program_id(1) == 0)           # LN computed once per row tile
    def _():
        h_ref[...] = _layernorm_rows(
            x_ref[...], g_ref[...].astype(jnp.float32),
            b_ref[...].astype(jnp.float32), eps).astype(h_ref.dtype)

    y = jnp.dot(h_ref[...], w_ref[...],
                preferred_element_type=jnp.float32) + bias_ref[...].astype(jnp.float32)
    if activation == "gelu":
        y = _gelu_exact(y)
    o_ref[...] = y.astype(o_ref.dtype)


def _attn_kernel(q_ref, k_ref, v_ref, o_ref, *, scale, s_real):
    """Single (batch, head) attention; padded keys masked out of the softmax."""
    q = q_ref[0, 0]                                       # [S_pad, Dh] bf16
    k = k_ref[0, 0]
    v = v_ref[0, 0]
    s = jax.lax.dot_general(q, k, (((1,), (1,)), ((), ())),
                            preferred_element_type=jnp.float32) * scale
    if s_real < s.shape[-1]:                              # mask padded keys
        key_idx = jax.lax.broadcasted_iota(jnp.int32, s.shape, 1)
        s = jnp.where(key_idx < s_real, s, -1e30)
    m = jnp.max(s, axis=-1, keepdims=True)
    p = jnp.exp(s - m)
    denom = jnp.sum(p, axis=-1, keepdims=True)
    p = p * pl.reciprocal(denom, approx=True)
    o = jnp.dot(p.astype(v.dtype), v, preferred_element_type=jnp.float32)
    o_ref[0, 0] = o.astype(o_ref.dtype)


def _attn_out_kernel(a_ref, w_ref, b_ref, r_ref, o_ref, acc_ref, *, nh):
    """Head-merging output projection (reduce over heads) + bias + residual."""
    h = pl.program_id(2)

    @pl.when(h == 0)
    def _():
        acc_ref[...] = jnp.zeros_like(acc_ref)

    acc_ref[...] += jnp.dot(a_ref[0], w_ref[0],
                            preferred_element_type=jnp.float32)

    @pl.when(h == nh - 1)
    def _():
        o_ref[...] = (acc_ref[...] + b_ref[...].astype(jnp.float32)
                      + r_ref[...].astype(jnp.float32)).astype(o_ref.dtype)


def _cls_head_kernel(x_ref, g_ref, b_ref, p_ref, o_ref, *, eps):
    """Final LayerNorm (CLS rows only) + projection + L2 normalize."""
    h = _layernorm_rows(x_ref[...], g_ref[...].astype(jnp.float32),
                        b_ref[...].astype(jnp.float32), eps)
    y = jnp.dot(h.astype(p_ref.dtype), p_ref[...],
                preferred_element_type=jnp.float32)
    ss = jnp.sum(y * y, axis=-1, keepdims=True)
    o_ref[...] = y * jax.lax.rsqrt(ss + 1e-12)


# ------------------------------ kernel wrappers ----------------------------

def linear(x, w, b, *, activation=None, residual=None, out_dtype=ACT_DTYPE):
    """Tiled [M,K]@[K,N] + bias (+gelu) (+residual) with fp32 accumulation."""
    M, K = x.shape
    N = w.shape[1]
    tm = _pick_row_tile(M)
    tn = _pick_lane_tile(N)
    tk = _pick_lane_tile(K)
    nm, nn, nk = M // tm, N // tn, K // tk
    kernel = functools.partial(_linear_kernel, nk=nk, activation=activation,
                               has_residual=residual is not None)
    in_specs = [
        pl.BlockSpec((tm, tk), lambda i, j, k: (i, k)),
        pl.BlockSpec((tk, tn), lambda i, j, k: (k, j)),
        pl.BlockSpec((1, tn), lambda i, j, k: (0, j)),
    ]
    args = [x.astype(ACT_DTYPE), w.astype(ACT_DTYPE), b.reshape(1, N)]
    if residual is not None:
        in_specs.append(pl.BlockSpec((tm, tn), lambda i, j, k: (i, j)))
        args.append(residual)
    return pl.pallas_call(
        kernel,
        out_shape=jax.ShapeDtypeStruct((M, N), out_dtype),
        grid=(nm, nn, nk),
        in_specs=in_specs,
        out_specs=pl.BlockSpec((tm, tn), lambda i, j, k: (i, j)),
        scratch_shapes=[pltpu.VMEM((tm, tn), jnp.float32)],
        compiler_params=_cparams(("parallel", "parallel", "arbitrary")),
    )(*args)


def ln_qkv_heads(x, gamma, beta, w_heads, b_heads, *, eps=1e-5):
    """x:[M,E] -> head-major QKV [3H, M, Dh] with fused LayerNorm."""
    M, E = x.shape
    g3h, _, dh = w_heads.shape
    tm = _pick_row_tile(M)
    kernel = functools.partial(_ln_qkv_kernel, eps=eps)
    return pl.pallas_call(
        kernel,
        out_shape=jax.ShapeDtypeStruct((g3h, M, dh), ACT_DTYPE),
        grid=(M // tm, g3h),
        in_specs=[
            pl.BlockSpec((tm, E), lambda i, j: (i, 0)),
            pl.BlockSpec((1, E), lambda i, j: (0, 0)),
            pl.BlockSpec((1, E), lambda i, j: (0, 0)),
            pl.BlockSpec((1, E, dh), lambda i, j: (j, 0, 0)),
            pl.BlockSpec((1, 1, dh), lambda i, j: (j, 0, 0)),
        ],
        out_specs=pl.BlockSpec((1, tm, dh), lambda i, j: (j, i, 0)),
        scratch_shapes=[pltpu.VMEM((tm, E), ACT_DTYPE)],
        compiler_params=_cparams(("parallel", "arbitrary")),
    )(x, gamma.reshape(1, E), beta.reshape(1, E), w_heads, b_heads)


def ln_linear(x, gamma, beta, w, b, *, activation=None, eps=1e-5):
    """Fused LayerNorm + [M,E]@[E,N] + bias (+gelu)."""
    M, E = x.shape
    N = w.shape[1]
    tm = _pick_row_tile(M)
    tn = _pick_lane_tile(N)
    kernel = functools.partial(_ln_linear_kernel, eps=eps, activation=activation)
    return pl.pallas_call(
        kernel,
        out_shape=jax.ShapeDtypeStruct((M, N), ACT_DTYPE),
        grid=(M // tm, N // tn),
        in_specs=[
            pl.BlockSpec((tm, E), lambda i, j: (i, 0)),
            pl.BlockSpec((1, E), lambda i, j: (0, 0)),
            pl.BlockSpec((1, E), lambda i, j: (0, 0)),
            pl.BlockSpec((E, tn), lambda i, j: (0, j)),
            pl.BlockSpec((1, tn), lambda i, j: (0, j)),
        ],
        out_specs=pl.BlockSpec((tm, tn), lambda i, j: (i, j)),
        scratch_shapes=[pltpu.VMEM((tm, E), ACT_DTYPE)],
        compiler_params=_cparams(("parallel", "arbitrary")),
    )(x, gamma.reshape(1, E), beta.reshape(1, E), w.astype(ACT_DTYPE),
      b.reshape(1, N))


def attention(qkv_heads, *, n_heads, s_real):
    """qkv_heads: [3H, B, S_pad, Dh] -> attention output [H, B, S_pad, Dh]."""
    _, B, s_pad, dh = qkv_heads.shape
    H = n_heads
    scale = 1.0 / (dh ** 0.5)

    def head_spec(off):
        return pl.BlockSpec((1, 1, s_pad, dh),
                            lambda b, h, off=off: (off * H + h, b, 0, 0))

    kernel = functools.partial(_attn_kernel, scale=scale, s_real=s_real)
    return pl.pallas_call(
        kernel,
        out_shape=jax.ShapeDtypeStruct((H, B, s_pad, dh), ACT_DTYPE),
        grid=(B, H),
        in_specs=[head_spec(0), head_spec(1), head_spec(2)],
        out_specs=pl.BlockSpec((1, 1, s_pad, dh), lambda b, h: (h, b, 0, 0)),
        compiler_params=_cparams(("parallel", "parallel")),
    )(qkv_heads, qkv_heads, qkv_heads)


def attn_out_proj(attn_heads, wo_heads, bo, residual):
    """[H, M, Dh] x [H, Dh, E] summed over heads, + bias + residual -> [M, E]."""
    H, M, dh = attn_heads.shape
    E = wo_heads.shape[2]
    tm = _pick_row_tile(M)
    tn = _pick_lane_tile(E)
    kernel = functools.partial(_attn_out_kernel, nh=H)
    return pl.pallas_call(
        kernel,
        out_shape=jax.ShapeDtypeStruct((M, E), ACT_DTYPE),
        grid=(M // tm, E // tn, H),
        in_specs=[
            pl.BlockSpec((1, tm, dh), lambda i, j, h: (h, i, 0)),
            pl.BlockSpec((1, dh, tn), lambda i, j, h: (h, 0, j)),
            pl.BlockSpec((1, tn), lambda i, j, h: (0, j)),
            pl.BlockSpec((tm, tn), lambda i, j, h: (i, j)),
        ],
        out_specs=pl.BlockSpec((tm, tn), lambda i, j, h: (i, j)),
        scratch_shapes=[pltpu.VMEM((tm, tn), jnp.float32)],
        compiler_params=_cparams(("parallel", "parallel", "arbitrary")),
    )(attn_heads, wo_heads, bo.reshape(1, E), residual)


def cls_head(cls_tokens, gamma, beta, projection, *, eps=1e-5):
    """Final LN on CLS rows + projection + L2 normalization (with eps)."""
    B, E = cls_tokens.shape
    D = projection.shape[1]
    kernel = functools.partial(_cls_head_kernel, eps=eps)
    return pl.pallas_call(
        kernel,
        out_shape=jax.ShapeDtypeStruct((B, D), jnp.float32),
        in_specs=[pl.BlockSpec(memory_space=pltpu.MemorySpace.VMEM)] * 4,
        out_specs=pl.BlockSpec(memory_space=pltpu.MemorySpace.VMEM),
    )(cls_tokens, gamma.reshape(1, E), beta.reshape(1, E),
      projection.astype(ACT_DTYPE))


# ------------------------- parameter construction -------------------------

def init_params(key, *, n_channels, embed_dim, n_layers, n_heads,
                forward_mul, image_size, patch_size, d_model):
    num_patches = (image_size // patch_size) ** 2
    patch_dim = n_channels * patch_size * patch_size
    hidden = embed_dim * forward_mul
    dh = embed_dim // n_heads

    def nrm(k, shape, scale=0.02):
        return (scale * jax.random.normal(k, shape)).astype(jnp.float32)

    keys = iter(jax.random.split(key, 8 + 8 * n_layers))
    params = {
        "patch_w": nrm(next(keys), (patch_dim, embed_dim)).astype(ACT_DTYPE),
        "patch_b": jnp.zeros((embed_dim,), jnp.float32),
        "cls": nrm(next(keys), (1, 1, embed_dim)),
        "pos": nrm(next(keys), (1, num_patches + 1, embed_dim)),
        "lnf_g": jnp.ones((embed_dim,), jnp.float32),
        "lnf_b": jnp.zeros((embed_dim,), jnp.float32),
        # nn.Parameter(torch.randn(embed_dim, d_model)) -> std 1.0
        "projection": jax.random.normal(next(keys), (embed_dim, d_model)).astype(jnp.float32),
        "layers": [],
    }
    for _ in range(n_layers):
        wq = nrm(next(keys), (embed_dim, embed_dim))
        wk = nrm(next(keys), (embed_dim, embed_dim))
        wv = nrm(next(keys), (embed_dim, embed_dim))
        wo = nrm(next(keys), (embed_dim, embed_dim))
        w1 = nrm(next(keys), (embed_dim, hidden))
        w2 = nrm(next(keys), (hidden, embed_dim))
        wqkv = jnp.concatenate([wq, wk, wv], axis=1)               # [E, 3E]
        layer = {
            "ln1_g": jnp.ones((embed_dim,), jnp.float32),
            "ln1_b": jnp.zeros((embed_dim,), jnp.float32),
            # QKV weight pre-laid-out head-major [3H, E, Dh] so the kernel can
            # emit head-major activations directly (no split_heads transposes).
            "wqkv_heads": wqkv.reshape(embed_dim, 3 * n_heads, dh)
                              .transpose(1, 0, 2).astype(ACT_DTYPE),
            "bqkv_heads": jnp.zeros((3 * n_heads, 1, dh), jnp.float32),
            # Output projection pre-laid-out per head [H, Dh, E].
            "wo_heads": wo.reshape(n_heads, dh, embed_dim).astype(ACT_DTYPE),
            "bo": jnp.zeros((embed_dim,), jnp.float32),
            "ln2_g": jnp.ones((embed_dim,), jnp.float32),
            "ln2_b": jnp.zeros((embed_dim,), jnp.float32),
            "w1": w1.astype(ACT_DTYPE),
            "b1": jnp.zeros((hidden,), jnp.float32),
            "w2": w2.astype(ACT_DTYPE),
            "b2": jnp.zeros((embed_dim,), jnp.float32),
        }
        params["layers"].append(layer)
    return params


# ------------------------------ forward pass ------------------------------

def patchify(x, patch_size):
    """NCHW [B,C,H,W] -> [B, num_patches, C*P*P] (matches Conv2d stride=P)."""
    B, C, H, W = x.shape
    P = patch_size
    Hp, Wp = H // P, W // P
    x = x.reshape(B, C, Hp, P, Wp, P)
    x = x.transpose(0, 2, 4, 1, 3, 5)                  # [B, Hp, Wp, C, P, P]
    return x.reshape(B, Hp * Wp, C * P * P)


def image_encoder_forward(params, x, *, n_heads, patch_size):
    B = x.shape[0]
    E = params["patch_w"].shape[1]
    H = n_heads
    dh = E // H

    # ---- patch embedding (Conv2d == linear over flattened patches) ----
    patches = patchify(x.astype(jnp.float32), patch_size)      # [B, Np, Cpp]
    Np = patches.shape[1]
    S = Np + 1
    s_pad = _round_up(S, 16)

    tok = linear(patches.reshape(B * Np, -1),
                 params["patch_w"], params["patch_b"]).reshape(B, Np, E)

    # ---- CLS token + positional embedding, pad sequence to a hardware tile ----
    cls = jnp.broadcast_to(params["cls"].astype(ACT_DTYPE), (B, 1, E))
    xseq = jnp.concatenate([cls, tok], axis=1) + params["pos"].astype(ACT_DTYPE)
    xseq = jnp.pad(xseq, ((0, 0), (0, s_pad - S), (0, 0)))      # [B, S_pad, E]
    M = B * s_pad
    xflat = xseq.reshape(M, E)                                  # bf16 residual stream

    # ---- transformer encoder layers (pre-norm) ----
    for layer in params["layers"]:
        qkv = ln_qkv_heads(xflat, layer["ln1_g"], layer["ln1_b"],
                           layer["wqkv_heads"], layer["bqkv_heads"])   # [3H, M, Dh]
        attn = attention(qkv.reshape(3 * H, B, s_pad, dh),
                         n_heads=H, s_real=S)                          # [H, B, S_pad, Dh]
        xflat = attn_out_proj(attn.reshape(H, M, dh),
                              layer["wo_heads"], layer["bo"], xflat)   # +residual
        m = ln_linear(xflat, layer["ln2_g"], layer["ln2_b"],
                      layer["w1"], layer["b1"], activation="gelu")     # [M, hidden]
        xflat = linear(m, layer["w2"], layer["b2"], residual=xflat)    # +residual

    # ---- final LN (per-token, so CLS-only is identical), proj, L2-normalize ----
    cls_rows = xflat.reshape(B, s_pad, E)[:, 0, :]                     # [B, E]
    return cls_head(cls_rows, params["lnf_g"], params["lnf_b"],
                    params["projection"])                              # [B, D] fp32


# ---------------------------------- main ----------------------------------

if __name__ == "__main__":
    n_channels = 4
    embed_dim = 32
    n_layers = 2
    n_heads = 4
    forward_mul = 2
    image_size = 16
    patch_size = 4
    d_model = 64

    key = jax.random.PRNGKey(0)
    k_param, k_x = jax.random.split(key)

    params = init_params(
        k_param,
        n_channels=n_channels, embed_dim=embed_dim, n_layers=n_layers,
        n_heads=n_heads, forward_mul=forward_mul, image_size=image_size,
        patch_size=patch_size, d_model=d_model,
    )

    x = jax.random.normal(k_x, (2, n_channels, image_size, image_size),
                          dtype=jnp.float32)   # NCHW, like PyTorch

    fwd = jax.jit(functools.partial(image_encoder_forward,
                                    n_heads=n_heads, patch_size=patch_size))
    out = jax.block_until_ready(fwd(params, x))

    assert out.shape == (2, d_model)
    norms = jnp.linalg.norm(out, axis=-1)
    assert bool(jnp.all(jnp.abs(norms - 1.0) < 1e-4)), norms
    print("KERNEL_OK")
</pallas_src>

<mosaic_0001>
module attributes {stable_mosaic.version = 11 : i64} {
  func.func @_linear_kernel(%arg0: i32, %arg1: i32, %arg2: i32, %arg3: memref<32x64xbf16, #tpu.memory_space<vmem>>, %arg4: memref<64x32xbf16, #tpu.memory_space<vmem>>, %arg5: memref<1x32xf32, #tpu.memory_space<vmem>>, %arg6: memref<32x32xbf16, #tpu.memory_space<vmem>>, %arg7: memref<32x32xf32, #tpu.memory_space<vmem>>) attributes {dimension_semantics = [#tpu.dimension_semantics<parallel>, #tpu.dimension_semantics<parallel>, #tpu.dimension_semantics<arbitrary>], iteration_bounds = array<i64: 1, 1, 1>, scalar_prefetch = 0 : i64, scratch_operands = 1 : i64, tpu.core_type = #tpu.core_type<tc>, window_params = [{transform_indices = @transform_0, window_bounds = array<i64: 32, 64>}, {transform_indices = @transform_1, window_bounds = array<i64: 64, 32>}, {transform_indices = @transform_2, window_bounds = array<i64: 1, 32>}, {transform_indices = @transform_3, window_bounds = array<i64: 32, 32>}]} {
    %c0_i32 = arith.constant 0 : i32
    %0 = arith.cmpi eq, %arg2, %c0_i32 : i32
    %1 = arith.extui %0 : i1 to i32
    %c0_i32_0 = arith.constant 0 : i32
    %2 = arith.cmpi ne, %1, %c0_i32_0 : i32
    scf.if %2 {
      %cst_10 = arith.constant 0.000000e+00 : f32
      %12 = vector.broadcast %cst_10 : f32 to vector<32x32xf32>
      %c0_11 = arith.constant 0 : index
      %c0_12 = arith.constant 0 : index
      %13 = vector.load %arg7[%c0_11, %c0_12] : memref<32x32xf32, #tpu.memory_space<vmem>>, vector<32x32xf32>
      tpu.vector_store %arg7[%c0_11, %c0_12], %12 {strides = array<i32>} : memref<32x32xf32, #tpu.memory_space<vmem>>, vector<32x32xf32>,
    } else {
    }
    %c0 = arith.constant 0 : index
    %c0_1 = arith.constant 0 : index
    %3 = vector.load %arg7[%c0, %c0_1] : memref<32x32xf32, #tpu.memory_space<vmem>>, vector<32x32xf32>
    %c0_2 = arith.constant 0 : index
    %c0_3 = arith.constant 0 : index
    %4 = vector.load %arg3[%c0_2, %c0_3] : memref<32x64xbf16, #tpu.memory_space<vmem>>, vector<32x64xbf16>
    %c0_4 = arith.constant 0 : index
    %c0_5 = arith.constant 0 : index
    %5 = vector.load %arg4[%c0_4, %c0_5] : memref<64x32xbf16, #tpu.memory_space<vmem>>, vector<64x32xbf16>
    %cst = arith.constant dense<0.000000e+00> : vector<32x32xf32>
    %6 = tpu.matmul %4, %5, %cst {dimension_numbers = #tpu.dot_dimension_numbers<[1], [0], [0], [1], [0, 0, 1, 1], [], []>} : vector<32x64xbf16>, vector<64x32xbf16>, vector<32x32xf32> -> vector<32x32xf32>
    %7 = arith.addf %3, %6 : vector<32x32xf32>
    %c0_6 = arith.constant 0 : index
    %c0_7 = arith.constant 0 : index
    %8 = vector.load %arg7[%c0_6, %c0_7] : memref<32x32xf32, #tpu.memory_space<vmem>>, vector<32x32xf32>
    tpu.vector_store %arg7[%c0_6, %c0_7], %7 {strides = array<i32>} : memref<32x32xf32, #tpu.memory_space<vmem>>, vector<32x32xf32>,
    %c0_i32_8 = arith.constant 0 : i32
    %9 = arith.cmpi eq, %arg2, %c0_i32_8 : i32
    %10 = arith.extui %9 : i1 to i32
    %c0_i32_9 = arith.constant 0 : i32
    %11 = arith.cmpi ne, %10, %c0_i32_9 : i32
    scf.if %11 {
      %c0_10 = arith.constant 0 : index
      %c0_11 = arith.constant 0 : index
      %12 = vector.load %arg7[%c0_10, %c0_11] : memref<32x32xf32, #tpu.memory_space<vmem>>, vector<32x32xf32>
      %c0_12 = arith.constant 0 : index
      %c0_13 = arith.constant 0 : index
      %13 = vector.load %arg5[%c0_12, %c0_13] : memref<1x32xf32, #tpu.memory_space<vmem>>, vector<1x32xf32>
      %14 = vector.broadcast %13 : vector<1x32xf32> to vector<32x32xf32>
      %15 = arith.addf %12, %14 : vector<32x32xf32>
      %16 = arith.truncf %15 : vector<32x32xf32> to vector<32x32xbf16>
      %c0_14 = arith.constant 0 : index
      %c0_15 = arith.constant 0 : index
      %17 = vector.load %arg6[%c0_14, %c0_15] : memref<32x32xbf16, #tpu.memory_space<vmem>>, vector<32x32xbf16>
      tpu.vector_store %arg6[%c0_14, %c0_15], %16 {strides = array<i32>} : memref<32x32xbf16, #tpu.memory_space<vmem>>, vector<32x32xbf16>,
    } else {
    }
    return
  }
  func.func @transform_0(%arg0: i32, %arg1: i32, %arg2: i32) -> (i32, i32) {
    %c0_i32 = arith.constant 0 : i32
    return %arg0, %arg2 : i32, i32
  }
  func.func @transform_1(%arg0: i32, %arg1: i32, %arg2: i32) -> (i32, i32) {
    %c0_i32 = arith.constant 0 : i32
    return %arg2, %arg1 : i32, i32
  }
  func.func @transform_2(%arg0: i32, %arg1: i32, %arg2: i32) -> (i32, i32) {
    %c0_i32 = arith.constant 0 : i32
    %c0_i32_0 = arith.constant 0 : i32
    return %c0_i32, %arg1 : i32, i32
  }
  func.func @transform_3(%arg0: i32, %arg1: i32, %arg2: i32) -> (i32, i32) {
    %c0_i32 = arith.constant 0 : i32
    return %arg0, %arg1 : i32, i32
  }
}

module attributes {stable_mosaic.version = 11 : i64} {
  func.func @_attn_out_kernel(%arg0: i32, %arg1: i32, %arg2: i32, %arg3: memref<1x64x8xbf16, #tpu.memory_space<vmem>>, %arg4: memref<1x8x32xbf16, #tpu.memory_space<vmem>>, %arg5: memref<1x32xf32, #tpu.memory_space<vmem>>, %arg6: memref<64x32xbf16, #tpu.memory_space<vmem>>, %arg7: memref<64x32xbf16, #tpu.memory_space<vmem>>, %arg8: memref<64x32xf32, #tpu.memory_space<vmem>>) attributes {dimension_semantics = [#tpu.dimension_semantics<parallel>, #tpu.dimension_semantics<parallel>, #tpu.dimension_semantics<arbitrary>], iteration_bounds = array<i64: 1, 1, 4>, scalar_prefetch = 0 : i64, scratch_operands = 1 : i64, tpu.core_type = #tpu.core_type<tc>, window_params = [{transform_indices = @transform_0, window_bounds = array<i64: 1, 64, 8>}, {transform_indices = @transform_1, window_bounds = array<i64: 1, 8, 32>}, {transform_indices = @transform_2, window_bounds = array<i64: 1, 32>}, {transform_indices = @transform_3, window_bounds = array<i64: 64, 32>}, {transform_indices = @transform_4, window_bounds = array<i64: 64, 32>}]} {
    %c0_i32 = arith.constant 0 : i32
    %0 = arith.cmpi eq, %arg2, %c0_i32 : i32
    %1 = arith.extui %0 : i1 to i32
    %c0_i32_0 = arith.constant 0 : i32
    %2 = arith.cmpi ne, %1, %c0_i32_0 : i32
    scf.if %2 {
      %cst_11 = arith.constant 0.000000e+00 : f32
      %14 = vector.broadcast %cst_11 : f32 to vector<64x32xf32>
      %c0_12 = arith.constant 0 : index
      %c0_13 = arith.constant 0 : index
      %15 = vector.load %arg8[%c0_12, %c0_13] : memref<64x32xf32, #tpu.memory_space<vmem>>, vector<64x32xf32>
      tpu.vector_store %arg8[%c0_12, %c0_13], %14 {strides = array<i32>} : memref<64x32xf32, #tpu.memory_space<vmem>>, vector<64x32xf32>,
    } else {
    }
    %c0 = arith.constant 0 : index
    %c0_1 = arith.constant 0 : index
    %3 = vector.load %arg8[%c0, %c0_1] : memref<64x32xf32, #tpu.memory_space<vmem>>, vector<64x32xf32>
    %c0_2 = arith.constant 0 : index
    %c0_3 = arith.constant 0 : index
    %c0_4 = arith.constant 0 : index
    %4 = vector.load %arg3[%c0_2, %c0_3, %c0_4] : memref<1x64x8xbf16, #tpu.memory_space<vmem>>, vector<1x64x8xbf16>
    %5 = vector.shape_cast %4 : vector<1x64x8xbf16> to vector<64x8xbf16>
    %c0_5 = arith.constant 0 : index
    %c0_6 = arith.constant 0 : index
    %c0_7 = arith.constant 0 : index
    %6 = vector.load %arg4[%c0_5, %c0_6, %c0_7] : memref<1x8x32xbf16, #tpu.memory_space<vmem>>, vector<1x8x32xbf16>
    %7 = vector.shape_cast %6 : vector<1x8x32xbf16> to vector<8x32xbf16>
    %cst = arith.constant dense<0.000000e+00> : vector<64x32xf32>
    %8 = tpu.matmul %5, %7, %cst {dimension_numbers = #tpu.dot_dimension_numbers<[1], [0], [0], [1], [0, 0, 1, 1], [], []>} : vector<64x8xbf16>, vector<8x32xbf16>, vector<64x32xf32> -> vector<64x32xf32>
    %9 = arith.addf %3, %8 : vector<64x32xf32>
    %c0_8 = arith.constant 0 : index
    %c0_9 = arith.constant 0 : index
    %10 = vector.load %arg8[%c0_8, %c0_9] : memref<64x32xf32, #tpu.memory_space<vmem>>, vector<64x32xf32>
    tpu.vector_store %arg8[%c0_8, %c0_9], %9 {strides = array<i32>} : memref<64x32xf32, #tpu.memory_space<vmem>>, vector<64x32xf32>,
    %c3_i32 = arith.constant 3 : i32
    %11 = arith.cmpi eq, %arg2, %c3_i32 : i32
    %12 = arith.extui %11 : i1 to i32
    %c0_i32_10 = arith.constant 0 : i32
    %13 = arith.cmpi ne, %12, %c0_i32_10 : i32
    scf.if %13 {
      %c0_11 = arith.constant 0 : index
      %c0_12 = arith.constant 0 : index
      %14 = vector.load %arg8[%c0_11, %c0_12] : memref<64x32xf32, #tpu.memory_space<vmem>>, vector<64x32xf32>
      %c0_13 = arith.constant 0 : index
      %c0_14 = arith.constant 0 : index
      %15 = vector.load %arg5[%c0_13, %c0_14] : memref<1x32xf32, #tpu.memory_space<vmem>>, vector<1x32xf32>
      %16 = vector.broadcast %15 : vector<1x32xf32> to vector<64x32xf32>
      %17 = arith.addf %14, %16 : vector<64x32xf32>
      %c0_15 = arith.constant 0 : index
      %c0_16 = arith.constant 0 : index
      %18 = vector.load %arg6[%c0_15, %c0_16] : memref<64x32xbf16, #tpu.memory_space<vmem>>, vector<64x32xbf16>
      %19 = arith.extf %18 : vector<64x32xbf16> to vector<64x32xf32>
      %20 = arith.addf %17, %19 : vector<64x32xf32>
      %21 = arith.truncf %20 : vector<64x32xf32> to vector<64x32xbf16>
      %c0_17 = arith.constant 0 : index
      %c0_18 = arith.constant 0 : index
      %22 = vector.load %arg7[%c0_17, %c0_18] : memref<64x32xbf16, #tpu.memory_space<vmem>>, vector<64x32xbf16>
      tpu.vector_store %arg7[%c0_17, %c0_18], %21 {strides = array<i32>} : memref<64x32xbf16, #tpu.memory_space<vmem>>, vector<64x32xbf16>,
    } else {
    }
    return
  }
  func.func @transform_0(%arg0: i32, %arg1: i32, %arg2: i32) -> (i32, i32, i32) {
    %c0_i32 = arith.constant 0 : i32
    %c0_i32_0 = arith.constant 0 : i32
    return %arg2, %arg0, %c0_i32 : i32, i32, i32
  }
  func.func @transform_1(%arg0: i32, %arg1: i32, %arg2: i32) -> (i32, i32, i32) {
    %c0_i32 = arith.constant 0 : i32
    %c0_i32_0 = arith.constant 0 : i32
    return %arg2, %c0_i32, %arg1 : i32, i32, i32
  }
  func.func @transform_2(%arg0: i32, %arg1: i32, %arg2: i32) -> (i32, i32) {
    %c0_i32 = arith.constant 0 : i32
    %c0_i32_0 = arith.constant 0 : i32
    return %c0_i32, %arg1 : i32, i32
  }
  func.func @transform_3(%arg0: i32, %arg1: i32, %arg2: i32) -> (i32, i32) {
    %c0_i32 = arith.constant 0 : i32
    return %arg0, %arg1 : i32, i32
  }
  func.func @transform_4(%arg0: i32, %arg1: i32, %arg2: i32) -> (i32, i32) {
    %c0_i32 = arith.constant 0 : i32
    return %arg0, %arg1 : i32, i32
  }
}

module attributes {stable_mosaic.version = 11 : i64} {
  func.func @_ln_qkv_kernel(%arg0: i32, %arg1: i32, %arg2: memref<64x32xbf16, #tpu.memory_space<vmem>>, %arg3: memref<1x32xf32, #tpu.memory_space<vmem>>, %arg4: memref<1x32xf32, #tpu.memory_space<vmem>>, %arg5: memref<1x32x8xbf16, #tpu.memory_space<vmem>>, %arg6: memref<1x1x8xf32, #tpu.memory_space<vmem>>, %arg7: memref<1x64x8xbf16, #tpu.memory_space<vmem>>, %arg8: memref<64x32xbf16, #tpu.memory_space<vmem>>) attributes {dimension_semantics = [#tpu.dimension_semantics<parallel>, #tpu.dimension_semantics<arbitrary>], iteration_bounds = array<i64: 1, 12>, scalar_prefetch = 0 : i64, scratch_operands = 1 : i64, tpu.core_type = #tpu.core_type<tc>, window_params = [{transform_indices = @transform_0, window_bounds = array<i64: 64, 32>}, {pipeline_mode = #tpu.pipeline_mode<synchronous>, transform_indices = @transform_1, window_bounds = array<i64: 1, 32>}, {pipeline_mode = #tpu.pipeline_mode<synchronous>, transform_indices = @transform_2, window_bounds = array<i64: 1, 32>}, {transform_indices = @transform_3, window_bounds = array<i64: 1, 32, 8>}, {transform_indices = @transform_4, window_bounds = array<i64: 1, 1, 8>}, {transform_indices = @transform_5, window_bounds = array<i64: 1, 64, 8>}]} {
    %c0_i32 = arith.constant 0 : i32
    %0 = arith.cmpi eq, %arg1, %c0_i32 : i32
    %1 = arith.extui %0 : i1 to i32
    %c0_i32_0 = arith.constant 0 : i32
    %2 = arith.cmpi ne, %1, %c0_i32_0 : i32
    scf.if %2 {
      %c0_11 = arith.constant 0 : index
      %c0_12 = arith.constant 0 : index
      %15 = vector.load %arg2[%c0_11, %c0_12] : memref<64x32xbf16, #tpu.memory_space<vmem>>, vector<64x32xbf16>
      %c0_13 = arith.constant 0 : index
      %c0_14 = arith.constant 0 : index
      %16 = vector.load %arg3[%c0_13, %c0_14] : memref<1x32xf32, #tpu.memory_space<vmem>>, vector<1x32xf32>
      %c0_15 = arith.constant 0 : index
      %c0_16 = arith.constant 0 : index
      %17 = vector.load %arg4[%c0_15, %c0_16] : memref<1x32xf32, #tpu.memory_space<vmem>>, vector<1x32xf32>
      %18 = arith.extf %15 : vector<64x32xbf16> to vector<64x32xf32>
      %cst_17 = arith.constant dense<0.000000e+00> : vector<64xf32>
      %19 = vector.multi_reduction <add>, %18, %cst_17 [1] : vector<64x32xf32> to vector<64xf32>
      %20 = vector.shape_cast %19 : vector<64xf32> to vector<64x1xf32>
      %cst_18 = arith.constant 3.200000e+01 : f32
      %21 = vector.broadcast %cst_18 : f32 to vector<64x1xf32>
      %22 = arith.divf %20, %21 : vector<64x1xf32>
      %23 = vector.broadcast %22 : vector<64x1xf32> to vector<64x32xf32>
      %24 = arith.subf %18, %23 : vector<64x32xf32>
      %25 = arith.mulf %24, %24 : vector<64x32xf32>
      %cst_19 = arith.constant dense<0.000000e+00> : vector<64xf32>
      %26 = vector.multi_reduction <add>, %25, %cst_19 [1] : vector<64x32xf32> to vector<64xf32>
      %27 = vector.shape_cast %26 : vector<64xf32> to vector<64x1xf32>
      %cst_20 = arith.constant 3.200000e+01 : f32
      %28 = vector.broadcast %cst_20 : f32 to vector<64x1xf32>
      %29 = arith.divf %27, %28 : vector<64x1xf32>
      %cst_21 = arith.constant 9.99999974E-6 : f32
      %30 = vector.broadcast %cst_21 : f32 to vector<64x1xf32>
      %31 = arith.addf %29, %30 : vector<64x1xf32>
      %32 = math.rsqrt %31 : vector<64x1xf32>
      %33 = vector.broadcast %32 : vector<64x1xf32> to vector<64x32xf32>
      %34 = arith.mulf %24, %33 : vector<64x32xf32>
      %35 = vector.broadcast %16 : vector<1x32xf32> to vector<64x32xf32>
      %36 = arith.mulf %34, %35 : vector<64x32xf32>
      %37 = vector.broadcast %17 : vector<1x32xf32> to vector<64x32xf32>
      %38 = arith.addf %36, %37 : vector<64x32xf32>
      %39 = arith.truncf %38 : vector<64x32xf32> to vector<64x32xbf16>
      %c0_22 = arith.constant 0 : index
      %c0_23 = arith.constant 0 : index
      %40 = vector.load %arg8[%c0_22, %c0_23] : memref<64x32xbf16, #tpu.memory_space<vmem>>, vector<64x32xbf16>
      tpu.vector_store %arg8[%c0_22, %c0_23], %39 {strides = array<i32>} : memref<64x32xbf16, #tpu.memory_space<vmem>>, vector<64x32xbf16>,
    } else {
    }
    %c0 = arith.constant 0 : index
    %c0_1 = arith.constant 0 : index
    %3 = vector.load %arg8[%c0, %c0_1] : memref<64x32xbf16, #tpu.memory_space<vmem>>, vector<64x32xbf16>
    %c0_2 = arith.constant 0 : index
    %c0_3 = arith.constant 0 : index
    %c0_4 = arith.constant 0 : index
    %4 = vector.load %arg5[%c0_2, %c0_3, %c0_4] : memref<1x32x8xbf16, #tpu.memory_space<vmem>>, vector<1x32x8xbf16>
    %5 = vector.shape_cast %4 : vector<1x32x8xbf16> to vector<32x8xbf16>
    %cst = arith.constant dense<0.000000e+00> : vector<64x8xf32>
    %6 = tpu.matmul %3, %5, %cst {dimension_numbers = #tpu.dot_dimension_numbers<[1], [0], [0], [1], [0, 0, 1, 1], [], []>} : vector<64x32xbf16>, vector<32x8xbf16>, vector<64x8xf32> -> vector<64x8xf32>
    %c0_5 = arith.constant 0 : index
    %c0_6 = arith.constant 0 : index
    %c0_7 = arith.constant 0 : index
    %7 = vector.load %arg6[%c0_5, %c0_6, %c0_7] : memref<1x1x8xf32, #tpu.memory_space<vmem>>, vector<1x1x8xf32>
    %8 = vector.shape_cast %7 : vector<1x1x8xf32> to vector<1x8xf32>
    %9 = vector.broadcast %8 : vector<1x8xf32> to vector<64x8xf32>
    %10 = arith.addf %6, %9 : vector<64x8xf32>
    %11 = arith.truncf %10 : vector<64x8xf32> to vector<64x8xbf16>
    %c0_8 = arith.constant 0 : index
    %c0_9 = arith.constant 0 : index
    %c0_10 = arith.constant 0 : index
    %12 = vector.load %arg7[%c0_8, %c0_9, %c0_10] : memref<1x64x8xbf16, #tpu.memory_space<vmem>>, vector<1x64x8xbf16>
    %13 = vector.shape_cast %12 : vector<1x64x8xbf16> to vector<64x8xbf16>
    %14 = vector.shape_cast %11 : vector<64x8xbf16> to vector<1x64x8xbf16>
    tpu.vector_store %arg7[%c0_8, %c0_9, %c0_10], %14 {strides = array<i32>} : memref<1x64x8xbf16, #tpu.memory_space<vmem>>, vector<1x64x8xbf16>,
    return
  }
  func.func @transform_0(%arg0: i32, %arg1: i32) -> (i32, i32) {
    %c0_i32 = arith.constant 0 : i32
    %c0_i32_0 = arith.constant 0 : i32
    return %arg0, %c0_i32 : i32, i32
  }
  func.func @transform_1(%arg0: i32, %arg1: i32) -> (i32, i32) {
    %c0_i32 = arith.constant 0 : i32
    %c0_i32_0 = arith.constant 0 : i32
    %c0_i32_1 = arith.constant 0 : i32
    return %c0_i32, %c0_i32_0 : i32, i32
  }
  func.func @transform_2(%arg0: i32, %arg1: i32) -> (i32, i32) {
    %c0_i32 = arith.constant 0 : i32
    %c0_i32_0 = arith.constant 0 : i32
    %c0_i32_1 = arith.constant 0 : i32
    return %c0_i32, %c0_i32_0 : i32, i32
  }
  func.func @transform_3(%arg0: i32, %arg1: i32) -> (i32, i32, i32) {
    %c0_i32 = arith.constant 0 : i32
    %c0_i32_0 = arith.constant 0 : i32
    %c0_i32_1 = arith.constant 0 : i32
    return %arg1, %c0_i32, %c0_i32_0 : i32, i32, i32
  }
  func.func @transform_4(%arg0: i32, %arg1: i32) -> (i32, i32, i32) {
    %c0_i32 = arith.constant 0 : i32
    %c0_i32_0 = arith.constant 0 : i32
    %c0_i32_1 = arith.constant 0 : i32
    return %arg1, %c0_i32, %c0_i32_0 : i32, i32, i32
  }
  func.func @transform_5(%arg0: i32, %arg1: i32) -> (i32, i32, i32) {
    %c0_i32 = arith.constant 0 : i32
    %c0_i32_0 = arith.constant 0 : i32
    return %arg1, %arg0, %c0_i32 : i32, i32, i32
  }
}

module attributes {stable_mosaic.version = 11 : i64} {
  func.func @_attn_kernel(%arg0: i32, %arg1: i32, %arg2: memref<1x1x32x8xbf16, #tpu.memory_space<vmem>>, %arg3: memref<1x1x32x8xbf16, #tpu.memory_space<vmem>>, %arg4: memref<1x1x32x8xbf16, #tpu.memory_space<vmem>>, %arg5: memref<1x1x32x8xbf16, #tpu.memory_space<vmem>>) attributes {dimension_semantics = [#tpu.dimension_semantics<parallel>, #tpu.dimension_semantics<parallel>], iteration_bounds = array<i64: 2, 4>, scalar_prefetch = 0 : i64, scratch_operands = 0 : i64, tpu.core_type = #tpu.core_type<tc>, window_params = [{transform_indices = @transform_0, window_bounds = array<i64: 1, 1, 32, 8>}, {transform_indices = @transform_1, window_bounds = array<i64: 1, 1, 32, 8>}, {transform_indices = @transform_2, window_bounds = array<i64: 1, 1, 32, 8>}, {transform_indices = @transform_3, window_bounds = array<i64: 1, 1, 32, 8>}]} {
    %c0 = arith.constant 0 : index
    %c0_0 = arith.constant 0 : index
    %c0_1 = arith.constant 0 : index
    %c0_2 = arith.constant 0 : index
    %0 = vector.load %arg2[%c0, %c0_0, %c0_1, %c0_2] : memref<1x1x32x8xbf16, #tpu.memory_space<vmem>>, vector<1x1x32x8xbf16>
    %1 = vector.shape_cast %0 : vector<1x1x32x8xbf16> to vector<32x8xbf16>
    %c0_3 = arith.constant 0 : index
    %c0_4 = arith.constant 0 : index
    %c0_5 = arith.constant 0 : index
    %c0_6 = arith.constant 0 : index
    %2 = vector.load %arg3[%c0_3, %c0_4, %c0_5, %c0_6] : memref<1x1x32x8xbf16, #tpu.memory_space<vmem>>, vector<1x1x32x8xbf16>
    %3 = vector.shape_cast %2 : vector<1x1x32x8xbf16> to vector<32x8xbf16>
    %c0_7 = arith.constant 0 : index
    %c0_8 = arith.constant 0 : index
    %c0_9 = arith.constant 0 : index
    %c0_10 = arith.constant 0 : index
    %4 = vector.load %arg4[%c0_7, %c0_8, %c0_9, %c0_10] : memref<1x1x32x8xbf16, #tpu.memory_space<vmem>>, vector<1x1x32x8xbf16>
    %5 = vector.shape_cast %4 : vector<1x1x32x8xbf16> to vector<32x8xbf16>
    %cst = arith.constant dense<0.000000e+00> : vector<32x32xf32>
    %6 = tpu.matmul %1, %3, %cst {dimension_numbers = #tpu.dot_dimension_numbers<[1], [1], [0], [0], [0, 0, 1, 0], [], []>} : vector<32x8xbf16>, vector<32x8xbf16>, vector<32x32xf32> -> vector<32x32xf32>
    %cst_11 = arith.constant 0.353553385 : f32
    %7 = vector.broadcast %cst_11 : f32 to vector<32x32xf32>
    %8 = arith.mulf %6, %7 : vector<32x32xf32>
    %9 = tpu.iota {dimensions = array<i32: 1>} : vector<32x32xi32>
    %c17_i32 = arith.constant 17 : i32
    %10 = vector.broadcast %c17_i32 : i32 to vector<32x32xi32>
    %11 = arith.cmpi slt, %9, %10 : vector<32x32xi32>
    %cst_12 = arith.constant -1.000000e+30 : f32
    %12 = vector.broadcast %cst_12 : f32 to vector<32x32xf32>
    %13 = arith.select %11, %8, %12 : vector<32x32xi1>, vector<32x32xf32>
    %cst_13 = arith.constant dense<0xFF800000> : vector<32xf32>
    %14 = vector.multi_reduction <maximumf>, %13, %cst_13 [1] : vector<32x32xf32> to vector<32xf32>
    %15 = vector.shape_cast %14 : vector<32xf32> to vector<32x1xf32>
    %16 = vector.broadcast %15 : vector<32x1xf32> to vector<32x32xf32>
    %17 = arith.subf %13, %16 : vector<32x32xf32>
    %18 = math.exp %17 : vector<32x32xf32>
    %cst_14 = arith.constant dense<0.000000e+00> : vector<32xf32>
    %19 = vector.multi_reduction <add>, %18, %cst_14 [1] : vector<32x32xf32> to vector<32xf32>
    %20 = vector.shape_cast %19 : vector<32xf32> to vector<32x1xf32>
    %21 = tpu.reciprocal %20 {approx = true} : vector<32x1xf32> -> vector<32x1xf32>
    %22 = vector.broadcast %21 : vector<32x1xf32> to vector<32x32xf32>
    %23 = arith.mulf %18, %22 : vector<32x32xf32>
    %24 = arith.truncf %23 : vector<32x32xf32> to vector<32x32xbf16>
    %cst_15 = arith.constant dense<0.000000e+00> : vector<32x8xf32>
    %25 = tpu.matmul %24, %5, %cst_15 {dimension_numbers = #tpu.dot_dimension_numbers<[1], [0], [0], [1], [0, 0, 1, 1], [], []>} : vector<32x32xbf16>, vector<32x8xbf16>, vector<32x8xf32> -> vector<32x8xf32>
    %26 = arith.truncf %25 : vector<32x8xf32> to vector<32x8xbf16>
    %c0_16 = arith.constant 0 : index
    %c0_17 = arith.constant 0 : index
    %c0_18 = arith.constant 0 : index
    %c0_19 = arith.constant 0 : index
    %27 = vector.load %arg5[%c0_16, %c0_17, %c0_18, %c0_19] : memref<1x1x32x8xbf16, #tpu.memory_space<vmem>>, vector<1x1x32x8xbf16>
    %28 = vector.shape_cast %27 : vector<1x1x32x8xbf16> to vector<32x8xbf16>
    %29 = vector.shape_cast %26 : vector<32x8xbf16> to vector<1x1x32x8xbf16>
    tpu.vector_store %arg5[%c0_16, %c0_17, %c0_18, %c0_19], %29 {strides = array<i32>} : memref<1x1x32x8xbf16, #tpu.memory_space<vmem>>, vector<1x1x32x8xbf16>,
    return
  }
  func.func @transform_0(%arg0: i32, %arg1: i32) -> (i32, i32, i32, i32) {
    %c0_i32 = arith.constant 0 : i32
    %0 = arith.addi %c0_i32, %arg1 : i32
    %c0_i32_0 = arith.constant 0 : i32
    %c0_i32_1 = arith.constant 0 : i32
    %c0_i32_2 = arith.constant 0 : i32
    return %0, %arg0, %c0_i32_0, %c0_i32_1 : i32, i32, i32, i32
  }
  func.func @transform_1(%arg0: i32, %arg1: i32) -> (i32, i32, i32, i32) {
    %c4_i32 = arith.constant 4 : i32
    %0 = arith.addi %c4_i32, %arg1 : i32
    %c0_i32 = arith.constant 0 : i32
    %c0_i32_0 = arith.constant 0 : i32
    %c0_i32_1 = arith.constant 0 : i32
    return %0, %arg0, %c0_i32, %c0_i32_0 : i32, i32, i32, i32
  }
  func.func @transform_2(%arg0: i32, %arg1: i32) -> (i32, i32, i32, i32) {
    %c8_i32 = arith.constant 8 : i32
    %0 = arith.addi %c8_i32, %arg1 : i32
    %c0_i32 = arith.constant 0 : i32
    %c0_i32_0 = arith.constant 0 : i32
    %c0_i32_1 = arith.constant 0 : i32
    return %0, %arg0, %c0_i32, %c0_i32_0 : i32, i32, i32, i32
  }
  func.func @transform_3(%arg0: i32, %arg1: i32) -> (i32, i32, i32, i32) {
    %c0_i32 = arith.constant 0 : i32
    %c0_i32_0 = arith.constant 0 : i32
    %c0_i32_1 = arith.constant 0 : i32
    return %arg1, %arg0, %c0_i32, %c0_i32_0 : i32, i32, i32, i32
  }
}

module attributes {stable_mosaic.version = 11 : i64} {
  func.func @_linear_kernel(%arg0: i32, %arg1: i32, %arg2: i32, %arg3: memref<64x64xbf16, #tpu.memory_space<vmem>>, %arg4: memref<64x32xbf16, #tpu.memory_space<vmem>>, %arg5: memref<1x32xf32, #tpu.memory_space<vmem>>, %arg6: memref<64x32xbf16, #tpu.memory_space<vmem>>, %arg7: memref<64x32xbf16, #tpu.memory_space<vmem>>, %arg8: memref<64x32xf32, #tpu.memory_space<vmem>>) attributes {dimension_semantics = [#tpu.dimension_semantics<parallel>, #tpu.dimension_semantics<parallel>, #tpu.dimension_semantics<arbitrary>], iteration_bounds = array<i64: 1, 1, 1>, scalar_prefetch = 0 : i64, scratch_operands = 1 : i64, tpu.core_type = #tpu.core_type<tc>, window_params = [{transform_indices = @transform_0, window_bounds = array<i64: 64, 64>}, {transform_indices = @transform_1, window_bounds = array<i64: 64, 32>}, {transform_indices = @transform_2, window_bounds = array<i64: 1, 32>}, {transform_indices = @transform_3, window_bounds = array<i64: 64, 32>}, {transform_indices = @transform_4, window_bounds = array<i64: 64, 32>}]} {
    %c0_i32 = arith.constant 0 : i32
    %0 = arith.cmpi eq, %arg2, %c0_i32 : i32
    %1 = arith.extui %0 : i1 to i32
    %c0_i32_0 = arith.constant 0 : i32
    %2 = arith.cmpi ne, %1, %c0_i32_0 : i32
    scf.if %2 {
      %cst_10 = arith.constant 0.000000e+00 : f32
      %12 = vector.broadcast %cst_10 : f32 to vector<64x32xf32>
      %c0_11 = arith.constant 0 : index
      %c0_12 = arith.constant 0 : index
      %13 = vector.load %arg8[%c0_11, %c0_12] : memref<64x32xf32, #tpu.memory_space<vmem>>, vector<64x32xf32>
      tpu.vector_store %arg8[%c0_11, %c0_12], %12 {strides = array<i32>} : memref<64x32xf32, #tpu.memory_space<vmem>>, vector<64x32xf32>,
    } else {
    }
    %c0 = arith.constant 0 : index
    %c0_1 = arith.constant 0 : index
    %3 = vector.load %arg8[%c0, %c0_1] : memref<64x32xf32, #tpu.memory_space<vmem>>, vector<64x32xf32>
    %c0_2 = arith.constant 0 : index
    %c0_3 = arith.constant 0 : index
    %4 = vector.load %arg3[%c0_2, %c0_3] : memref<64x64xbf16, #tpu.memory_space<vmem>>, vector<64x64xbf16>
    %c0_4 = arith.constant 0 : index
    %c0_5 = arith.constant 0 : index
    %5 = vector.load %arg4[%c0_4, %c0_5] : memref<64x32xbf16, #tpu.memory_space<vmem>>, vector<64x32xbf16>
    %cst = arith.constant dense<0.000000e+00> : vector<64x32xf32>
    %6 = tpu.matmul %4, %5, %cst {dimension_numbers = #tpu.dot_dimension_numbers<[1], [0], [0], [1], [0, 0, 1, 1], [], []>} : vector<64x64xbf16>, vector<64x32xbf16>, vector<64x32xf32> -> vector<64x32xf32>
    %7 = arith.addf %3, %6 : vector<64x32xf32>
    %c0_6 = arith.constant 0 : index
    %c0_7 = arith.constant 0 : index
    %8 = vector.load %arg8[%c0_6, %c0_7] : memref<64x32xf32, #tpu.memory_space<vmem>>, vector<64x32xf32>
    tpu.vector_store %arg8[%c0_6, %c0_7], %7 {strides = array<i32>} : memref<64x32xf32, #tpu.memory_space<vmem>>, vector<64x32xf32>,
    %c0_i32_8 = arith.constant 0 : i32
    %9 = arith.cmpi eq, %arg2, %c0_i32_8 : i32
    %10 = arith.extui %9 : i1 to i32
    %c0_i32_9 = arith.constant 0 : i32
    %11 = arith.cmpi ne, %10, %c0_i32_9 : i32
    scf.if %11 {
      %c0_10 = arith.constant 0 : index
      %c0_11 = arith.constant 0 : index
      %12 = vector.load %arg8[%c0_10, %c0_11] : memref<64x32xf32, #tpu.memory_space<vmem>>, vector<64x32xf32>
      %c0_12 = arith.constant 0 : index
      %c0_13 = arith.constant 0 : index
      %13 = vector.load %arg5[%c0_12, %c0_13] : memref<1x32xf32, #tpu.memory_space<vmem>>, vector<1x32xf32>
      %14 = vector.broadcast %13 : vector<1x32xf32> to vector<64x32xf32>
      %15 = arith.addf %12, %14 : vector<64x32xf32>
      %c0_14 = arith.constant 0 : index
      %c0_15 = arith.constant 0 : index
      %16 = vector.load %arg6[%c0_14, %c0_15] : memref<64x32xbf16, #tpu.memory_space<vmem>>, vector<64x32xbf16>
      %17 = arith.extf %16 : vector<64x32xbf16> to vector<64x32xf32>
      %18 = arith.addf %15, %17 : vector<64x32xf32>
      %19 = arith.truncf %18 : vector<64x32xf32> to vector<64x32xbf16>
      %c0_16 = arith.constant 0 : index
      %c0_17 = arith.constant 0 : index
      %20 = vector.load %arg7[%c0_16, %c0_17] : memref<64x32xbf16, #tpu.memory_space<vmem>>, vector<64x32xbf16>
      tpu.vector_store %arg7[%c0_16, %c0_17], %19 {strides = array<i32>} : memref<64x32xbf16, #tpu.memory_space<vmem>>, vector<64x32xbf16>,
    } else {
    }
    return
  }
  func.func @transform_0(%arg0: i32, %arg1: i32, %arg2: i32) -> (i32, i32) {
    %c0_i32 = arith.constant 0 : i32
    return %arg0, %arg2 : i32, i32
  }
  func.func @transform_1(%arg0: i32, %arg1: i32, %arg2: i32) -> (i32, i32) {
    %c0_i32 = arith.constant 0 : i32
    return %arg2, %arg1 : i32, i32
  }
  func.func @transform_2(%arg0: i32, %arg1: i32, %arg2: i32) -> (i32, i32) {
    %c0_i32 = arith.constant 0 : i32
    %c0_i32_0 = arith.constant 0 : i32
    return %c0_i32, %arg1 : i32, i32
  }
  func.func @transform_3(%arg0: i32, %arg1: i32, %arg2: i32) -> (i32, i32) {
    %c0_i32 = arith.constant 0 : i32
    return %arg0, %arg1 : i32, i32
  }
  func.func @transform_4(%arg0: i32, %arg1: i32, %arg2: i32) -> (i32, i32) {
    %c0_i32 = arith.constant 0 : i32
    return %arg0, %arg1 : i32, i32
  }
}

module attributes {stable_mosaic.version = 11 : i64} {
  func.func @_cls_head_kernel(%arg0: memref<2x32xbf16, #tpu.memory_space<vmem>>, %arg1: memref<1x32xf32, #tpu.memory_space<vmem>>, %arg2: memref<1x32xf32, #tpu.memory_space<vmem>>, %arg3: memref<32x64xbf16, #tpu.memory_space<vmem>>, %arg4: memref<2x64xf32, #tpu.memory_space<vmem>>) attributes {dimension_semantics = [], scalar_prefetch = 0 : i64, scratch_operands = 0 : i64, tpu.core_type = #tpu.core_type<tc>} {
    %c0 = arith.constant 0 : index
    %c0_0 = arith.constant 0 : index
    %0 = vector.load %arg0[%c0, %c0_0] : memref<2x32xbf16, #tpu.memory_space<vmem>>, vector<2x32xbf16>
    %c0_1 = arith.constant 0 : index
    %c0_2 = arith.constant 0 : index
    %1 = vector.load %arg1[%c0_1, %c0_2] : memref<1x32xf32, #tpu.memory_space<vmem>>, vector<1x32xf32>
    %c0_3 = arith.constant 0 : index
    %c0_4 = arith.constant 0 : index
    %2 = vector.load %arg2[%c0_3, %c0_4] : memref<1x32xf32, #tpu.memory_space<vmem>>, vector<1x32xf32>
    %3 = arith.extf %0 : vector<2x32xbf16> to vector<2x32xf32>
    %cst = arith.constant dense<0.000000e+00> : vector<2xf32>
    %4 = vector.multi_reduction <add>, %3, %cst [1] : vector<2x32xf32> to vector<2xf32>
    %5 = vector.shape_cast %4 : vector<2xf32> to vector<2x1xf32>
    %cst_5 = arith.constant 3.200000e+01 : f32
    %6 = vector.broadcast %cst_5 : f32 to vector<2x1xf32>
    %7 = arith.divf %5, %6 : vector<2x1xf32>
    %8 = vector.broadcast %7 : vector<2x1xf32> to vector<2x32xf32>
    %9 = arith.subf %3, %8 : vector<2x32xf32>
    %10 = arith.mulf %9, %9 : vector<2x32xf32>
    %cst_6 = arith.constant dense<0.000000e+00> : vector<2xf32>
    %11 = vector.multi_reduction <add>, %10, %cst_6 [1] : vector<2x32xf32> to vector<2xf32>
    %12 = vector.shape_cast %11 : vector<2xf32> to vector<2x1xf32>
    %cst_7 = arith.constant 3.200000e+01 : f32
    %13 = vector.broadcast %cst_7 : f32 to vector<2x1xf32>
    %14 = arith.divf %12, %13 : vector<2x1xf32>
    %cst_8 = arith.constant 9.99999974E-6 : f32
    %15 = vector.broadcast %cst_8 : f32 to vector<2x1xf32>
    %16 = arith.addf %14, %15 : vector<2x1xf32>
    %17 = math.rsqrt %16 : vector<2x1xf32>
    %18 = vector.broadcast %17 : vector<2x1xf32> to vector<2x32xf32>
    %19 = arith.mulf %9, %18 : vector<2x32xf32>
    %20 = vector.broadcast %1 : vector<1x32xf32> to vector<2x32xf32>
    %21 = arith.mulf %19, %20 : vector<2x32xf32>
    %22 = vector.broadcast %2 : vector<1x32xf32> to vector<2x32xf32>
    %23 = arith.addf %21, %22 : vector<2x32xf32>
    %24 = arith.truncf %23 : vector<2x32xf32> to vector<2x32xbf16>
    %c0_9 = arith.constant 0 : index
    %c0_10 = arith.constant 0 : index
    %25 = vector.load %arg3[%c0_9, %c0_10] : memref<32x64xbf16, #tpu.memory_space<vmem>>, vector<32x64xbf16>
    %cst_11 = arith.constant dense<0.000000e+00> : vector<2x64xf32>
    %26 = tpu.matmul %24, %25, %cst_11 {dimension_numbers = #tpu.dot_dimension_numbers<[1], [0], [0], [1], [0, 0, 1, 1], [], []>} : vector<2x32xbf16>, vector<32x64xbf16>, vector<2x64xf32> -> vector<2x64xf32>
    %27 = arith.mulf %26, %26 : vector<2x64xf32>
    %cst_12 = arith.constant dense<0.000000e+00> : vector<2xf32>
    %28 = vector.multi_reduction <add>, %27, %cst_12 [1] : vector<2x64xf32> to vector<2xf32>
    %29 = vector.shape_cast %28 : vector<2xf32> to vector<2x1xf32>
    %cst_13 = arith.constant 9.99999996E-13 : f32
    %30 = vector.broadcast %cst_13 : f32 to vector<2x1xf32>
    %31 = arith.addf %29, %30 : vector<2x1xf32>
    %32 = math.rsqrt %31 : vector<2x1xf32>
    %33 = vector.broadcast %32 : vector<2x1xf32> to vector<2x64xf32>
    %34 = arith.mulf %26, %33 : vector<2x64xf32>
    %c0_14 = arith.constant 0 : index
    %c0_15 = arith.constant 0 : index
    %35 = vector.load %arg4[%c0_14, %c0_15] : memref<2x64xf32, #tpu.memory_space<vmem>>, vector<2x64xf32>
    tpu.vector_store %arg4[%c0_14, %c0_15], %34 {strides = array<i32>} : memref<2x64xf32, #tpu.memory_space<vmem>>, vector<2x64xf32>,
    return
  }
}

module attributes {stable_mosaic.version = 11 : i64} {
  func.func @_ln_linear_kernel(%arg0: i32, %arg1: i32, %arg2: memref<64x32xbf16, #tpu.memory_space<vmem>>, %arg3: memref<1x32xf32, #tpu.memory_space<vmem>>, %arg4: memref<1x32xf32, #tpu.memory_space<vmem>>, %arg5: memref<32x64xbf16, #tpu.memory_space<vmem>>, %arg6: memref<1x64xf32, #tpu.memory_space<vmem>>, %arg7: memref<64x64xbf16, #tpu.memory_space<vmem>>, %arg8: memref<64x32xbf16, #tpu.memory_space<vmem>>) attributes {dimension_semantics = [#tpu.dimension_semantics<parallel>, #tpu.dimension_semantics<arbitrary>], iteration_bounds = array<i64: 1, 1>, scalar_prefetch = 0 : i64, scratch_operands = 1 : i64, tpu.core_type = #tpu.core_type<tc>, window_params = [{transform_indices = @transform_0, window_bounds = array<i64: 64, 32>}, {pipeline_mode = #tpu.pipeline_mode<synchronous>, transform_indices = @transform_1, window_bounds = array<i64: 1, 32>}, {pipeline_mode = #tpu.pipeline_mode<synchronous>, transform_indices = @transform_2, window_bounds = array<i64: 1, 32>}, {transform_indices = @transform_3, window_bounds = array<i64: 32, 64>}, {transform_indices = @transform_4, window_bounds = array<i64: 1, 64>}, {transform_indices = @transform_5, window_bounds = array<i64: 64, 64>}]} {
    %c0_i32 = arith.constant 0 : i32
    %0 = arith.cmpi eq, %arg1, %c0_i32 : i32
    %1 = arith.extui %0 : i1 to i32
    %c0_i32_0 = arith.constant 0 : i32
    %2 = arith.cmpi ne, %1, %c0_i32_0 : i32
    scf.if %2 {
      %c0_11 = arith.constant 0 : index
      %c0_12 = arith.constant 0 : index
      %19 = vector.load %arg2[%c0_11, %c0_12] : memref<64x32xbf16, #tpu.memory_space<vmem>>, vector<64x32xbf16>
      %c0_13 = arith.constant 0 : index
      %c0_14 = arith.constant 0 : index
      %20 = vector.load %arg3[%c0_13, %c0_14] : memref<1x32xf32, #tpu.memory_space<vmem>>, vector<1x32xf32>
      %c0_15 = arith.constant 0 : index
      %c0_16 = arith.constant 0 : index
      %21 = vector.load %arg4[%c0_15, %c0_16] : memref<1x32xf32, #tpu.memory_space<vmem>>, vector<1x32xf32>
      %22 = arith.extf %19 : vector<64x32xbf16> to vector<64x32xf32>
      %cst_17 = arith.constant dense<0.000000e+00> : vector<64xf32>
      %23 = vector.multi_reduction <add>, %22, %cst_17 [1] : vector<64x32xf32> to vector<64xf32>
      %24 = vector.shape_cast %23 : vector<64xf32> to vector<64x1xf32>
      %cst_18 = arith.constant 3.200000e+01 : f32
      %25 = vector.broadcast %cst_18 : f32 to vector<64x1xf32>
      %26 = arith.divf %24, %25 : vector<64x1xf32>
      %27 = vector.broadcast %26 : vector<64x1xf32> to vector<64x32xf32>
      %28 = arith.subf %22, %27 : vector<64x32xf32>
      %29 = arith.mulf %28, %28 : vector<64x32xf32>
      %cst_19 = arith.constant dense<0.000000e+00> : vector<64xf32>
      %30 = vector.multi_reduction <add>, %29, %cst_19 [1] : vector<64x32xf32> to vector<64xf32>
      %31 = vector.shape_cast %30 : vector<64xf32> to vector<64x1xf32>
      %cst_20 = arith.constant 3.200000e+01 : f32
      %32 = vector.broadcast %cst_20 : f32 to vector<64x1xf32>
      %33 = arith.divf %31, %32 : vector<64x1xf32>
      %cst_21 = arith.constant 9.99999974E-6 : f32
      %34 = vector.broadcast %cst_21 : f32 to vector<64x1xf32>
      %35 = arith.addf %33, %34 : vector<64x1xf32>
      %36 = math.rsqrt %35 : vector<64x1xf32>
      %37 = vector.broadcast %36 : vector<64x1xf32> to vector<64x32xf32>
      %38 = arith.mulf %28, %37 : vector<64x32xf32>
      %39 = vector.broadcast %20 : vector<1x32xf32> to vector<64x32xf32>
      %40 = arith.mulf %38, %39 : vector<64x32xf32>
      %41 = vector.broadcast %21 : vector<1x32xf32> to vector<64x32xf32>
      %42 = arith.addf %40, %41 : vector<64x32xf32>
      %43 = arith.truncf %42 : vector<64x32xf32> to vector<64x32xbf16>
      %c0_22 = arith.constant 0 : index
      %c0_23 = arith.constant 0 : index
      %44 = vector.load %arg8[%c0_22, %c0_23] : memref<64x32xbf16, #tpu.memory_space<vmem>>, vector<64x32xbf16>
      tpu.vector_store %arg8[%c0_22, %c0_23], %43 {strides = array<i32>} : memref<64x32xbf16, #tpu.memory_space<vmem>>, vector<64x32xbf16>,
    } else {
    }
    %c0 = arith.constant 0 : index
    %c0_1 = arith.constant 0 : index
    %3 = vector.load %arg8[%c0, %c0_1] : memref<64x32xbf16, #tpu.memory_space<vmem>>, vector<64x32xbf16>
    %c0_2 = arith.constant 0 : index
    %c0_3 = arith.constant 0 : index
    %4 = vector.load %arg5[%c0_2, %c0_3] : memref<32x64xbf16, #tpu.memory_space<vmem>>, vector<32x64xbf16>
    %cst = arith.constant dense<0.000000e+00> : vector<64x64xf32>
    %5 = tpu.matmul %3, %4, %cst {dimension_numbers = #tpu.dot_dimension_numbers<[1], [0], [0], [1], [0, 0, 1, 1], [], []>} : vector<64x32xbf16>, vector<32x64xbf16>, vector<64x64xf32> -> vector<64x64xf32>
    %c0_4 = arith.constant 0 : index
    %c0_5 = arith.constant 0 : index
    %6 = vector.load %arg6[%c0_4, %c0_5] : memref<1x64xf32, #tpu.memory_space<vmem>>, vector<1x64xf32>
    %7 = vector.broadcast %6 : vector<1x64xf32> to vector<64x64xf32>
    %8 = arith.addf %5, %7 : vector<64x64xf32>
    %cst_6 = arith.constant 5.000000e-01 : f32
    %9 = vector.broadcast %cst_6 : f32 to vector<64x64xf32>
    %10 = arith.mulf %9, %8 : vector<64x64xf32>
    %cst_7 = arith.constant 0.707106769 : f32
    %11 = vector.broadcast %cst_7 : f32 to vector<64x64xf32>
    %12 = arith.mulf %8, %11 : vector<64x64xf32>
    %13 = math.erf %12 : vector<64x64xf32>
    %cst_8 = arith.constant 1.000000e+00 : f32
    %14 = vector.broadcast %cst_8 : f32 to vector<64x64xf32>
    %15 = arith.addf %14, %13 : vector<64x64xf32>
    %16 = arith.mulf %10, %15 : vector<64x64xf32>
    %17 = arith.truncf %16 : vector<64x64xf32> to vector<64x64xbf16>
    %c0_9 = arith.constant 0 : index
    %c0_10 = arith.constant 0 : index
    %18 = vector.load %arg7[%c0_9, %c0_10] : memref<64x64xbf16, #tpu.memory_space<vmem>>, vector<64x64xbf16>
    tpu.vector_store %arg7[%c0_9, %c0_10], %17 {strides = array<i32>} : memref<64x64xbf16, #tpu.memory_space<vmem>>, vector<64x64xbf16>,
    return
  }
  func.func @transform_0(%arg0: i32, %arg1: i32) -> (i32, i32) {
    %c0_i32 = arith.constant 0 : i32
    %c0_i32_0 = arith.constant 0 : i32
    return %arg0, %c0_i32 : i32, i32
  }
  func.func @transform_1(%arg0: i32, %arg1: i32) -> (i32, i32) {
    %c0_i32 = arith.constant 0 : i32
    %c0_i32_0 = arith.constant 0 : i32
    %c0_i32_1 = arith.constant 0 : i32
    return %c0_i32, %c0_i32_0 : i32, i32
  }
  func.func @transform_2(%arg0: i32, %arg1: i32) -> (i32, i32) {
    %c0_i32 = arith.constant 0 : i32
    %c0_i32_0 = arith.constant 0 : i32
    %c0_i32_1 = arith.constant 0 : i32
    return %c0_i32, %c0_i32_0 : i32, i32
  }
  func.func @transform_3(%arg0: i32, %arg1: i32) -> (i32, i32) {
    %c0_i32 = arith.constant 0 : i32
    %c0_i32_0 = arith.constant 0 : i32
    return %c0_i32, %arg1 : i32, i32
  }
  func.func @transform_4(%arg0: i32, %arg1: i32) -> (i32, i32) {
    %c0_i32 = arith.constant 0 : i32
    %c0_i32_0 = arith.constant 0 : i32
    return %c0_i32, %arg1 : i32, i32
  }
  func.func @transform_5(%arg0: i32, %arg1: i32) -> (i32, i32) {
    %c0_i32 = arith.constant 0 : i32
    return %arg0, %arg1 : i32, i32
  }
}

</mosaic_0001>

<llo_original>
// kernel: image_encoder_forward.12
$region0: #{image_encoder_forward.12}
  #allocation0 [shape = 'u32[]', space=smem, size = 0x4, offset = 0x4, fixed_abs, tag = 'smem constant byte address 0x4 - core index']
  #allocation1 [shape = 'u32[144,128]{1,0:T(1,128)}', space=vmem, size = 0x12000, scoped, tag = 'internal scratch']
  #allocation2 [shape = 'f32[32,32]{1,0:T(8,128)}', space=vmem, size = 0x4000, scoped, tag = 'scratch operand']
  %s0 = inlined_call_operand.vmem [shape: bf16[32,64], index: 0, kind: input, shape index: {}]
  %s1 = inlined_call_operand.vmem [shape: bf16[64,32], index: 1, kind: input, shape index: {}]
  %s2 = inlined_call_operand.vmem [shape: f32[1,32], index: 2, kind: input, shape index: {}]
  %s3 = inlined_call_operand.vmem [shape: bf16[32,32], index: 3, kind: output, shape index: {}]
  %s4 = sld [smem:[#allocation0]]
  $region30: #{image_encoder_forward.12} parent=0
    _
  %s6 = ssub.s32 1, %s4
  %s7 = scalar_select 0, %s6, %s4
  // Predicated region
  $region2: #{image_encoder_forward.12} parent=0 // pred_check
    _
  $region3: #{image_encoder_forward.12} parent=0 // pred_check_branch
    %9 = sbr.rel (0) target = $region5
  $region4: #{image_encoder_forward.12} parent=0 // pred_region
    _
  $region5: #{image_encoder_forward.12} parent=0 // pred_fallthru
    _
  // Predicated region
  $region6: #{image_encoder_forward.12} parent=0 // pred_check
    _
  $region7: #{image_encoder_forward.12} parent=0 // pred_check_branch
    %11 = sbr.rel (0) target = $region9
  $region8: #{image_encoder_forward.12} parent=0 // pred_region
    _
  $region9: #{image_encoder_forward.12} parent=0 // pred_fallthru
    _
  // Predicated region
  $region10: #{image_encoder_forward.12} parent=0 // pred_check
    _
  $region11: #{image_encoder_forward.12} parent=0 // pred_check_branch
    %13 = sbr.rel (0) target = $region13
  $region12: #{image_encoder_forward.12} parent=0 // pred_region
    _
  $region13: #{image_encoder_forward.12} parent=0 // pred_fallthru
    _
  %p15 = scmp.eq.s32.totalorder 0, 0
  // Predicated region
  $region14: #{image_encoder_forward.12} parent=0 // pred_check
    %p16 = pneg %p15
  $region15: #{image_encoder_forward.12} parent=0 // pred_check_branch
    %18 = sbr.rel (%p16) target = $region17
  $region16: #{image_encoder_forward.12} parent=0 // pred_region
    %vm19 = vcmask 261120
    %20 = vst.msk [vmem:[#allocation2] sm:$0xff] %vm19, 0.0
    %21 = vst.msk [vmem:[#allocation2 + $0x8] sm:$0xff] %vm19, 0.0
    %22 = vst.msk [vmem:[#allocation2 + $0x10] sm:$0xff] %vm19, 0.0
    %23 = vst.msk [vmem:[#allocation2 + $0x18] sm:$0xff] %vm19, 0.0
  $region17: #{image_encoder_forward.12} parent=0 // pred_fallthru
    _
  %v24 = vld [vmem:[#allocation2] sm:$0xff]
  %v25 = vld [vmem:[#allocation2 + $0x8] sm:$0xff]
  %v26 = vld [vmem:[#allocation2 + $0x10] sm:$0xff]
  %v27 = vld [vmem:[#allocation2 + $0x18] sm:$0xff]
  %v28 = vld [vmem:[%s0] sm:$0xf]
  %v29 = vld [vmem:[%s0 + $0x4] sm:$0xf]
  %v30 = vld [vmem:[%s0 + $0x8] sm:$0xf]
  %v31 = vld [vmem:[%s0 + $0xc] sm:$0xf]
  %v32 = vld [vmem:[%s1] sm:$0xf]
  %v33 = vld [vmem:[%s1 + $0x4] sm:$0xf]
  %v34 = vld [vmem:[%s1 + $0x8] sm:$0xf]
  %v35 = vld [vmem:[%s1 + $0xc] sm:$0xf]
  %v36 = vld [vmem:[%s1 + $0x10] sm:$0xf]
  %v37 = vld [vmem:[%s1 + $0x14] sm:$0xf]
  %v38 = vld [vmem:[%s1 + $0x18] sm:$0xf]
  %v39 = vld [vmem:[%s1 + $0x1c] sm:$0xf]
  %v44 = vunpack.c.l.b16 %v28
  %v45 = vunpack.c.l.b16 %v29
  %v46 = vunpack.c.l.b16 %v30
  %v47 = vunpack.c.l.b16 %v31
  %v48 = vpack.c.b16 %v45, %v44
  %v49 = vpack.c.b16 %v47, %v46
  %v58 = vunpack.c.l.b16 %v32
  %v59 = vunpack.c.l.b16 %v33
  %v60 = vunpack.c.l.b16 %v34
  %v61 = vunpack.c.l.b16 %v35
  %v62 = vunpack.c.l.b16 %v36
  %v63 = vunpack.c.l.b16 %v37
  %v64 = vunpack.c.l.b16 %v38
  %v65 = vunpack.c.l.b16 %v39
  %v66 = vpack.c.b16 %v59, %v58
  %v67 = vpack.c.b16 %v61, %v60
  %v68 = vpack.c.b16 %v63, %v62
  %v69 = vpack.c.b16 %v65, %v64
  %vm74 = vcmask 523264
  %v76 = vsel %vm74, %v48, 0
  %v79 = vsel %vm74, %v49, 0
  %81 = vmatprep.subr.bf16.mxu0 0
  %82 = vmatpush1.bf16.msra.mxu0 %v66
  %83 = vmatprep.subr.bf16.mxu0 0
  %84 = vmatpush1.bf16.msra.mxu0 %v67
  %85 = vmatprep.subr.bf16.mxu0 0
  %86 = vmatpush1.bf16.msra.mxu0 %v68
  %87 = vmatprep.subr.bf16.mxu0 0
  %88 = vmatpush1.bf16.msra.mxu0 %v69
  %89 = vmatprep.subr.bf16.mxu0 0
  %90 = vmatpush1.bf16.msra.mxu0 0
  %91 = vmatprep.subr.bf16.mxu0 0
  %92 = vmatpush1.bf16.msra.mxu0 0
  %93 = vmatprep.subr.bf16.mxu0 0
  %94 = vmatpush1.bf16.msra.mxu0 0
  %95 = vmatprep.subr.bf16.mxu0 0
  %96 = vmatpush1.bf16.msra.mxu0 0
  %97 = vmatprep.subr.bf16.mxu0 0
  %98 = vmatpush1.bf16.msra.mxu0 0
  %99 = vmatprep.subr.bf16.mxu0 0
  %100 = vmatpush1.bf16.msra.mxu0 0
  %101 = vmatprep.subr.bf16.mxu0 0
  %102 = vmatpush1.bf16.msra.mxu0 0
  %103 = vmatprep.subr.bf16.mxu0 0
  %104 = vmatpush1.bf16.msra.mxu0 0
  %105 = vmatprep.subr.bf16.mxu0 0
  %106 = vmatpush1.bf16.msra.mxu0 0
  %107 = vmatprep.subr.bf16.mxu0 0
  %108 = vmatpush1.bf16.msra.mxu0 0
  %109 = vmatprep.subr.bf16.mxu0 0
  %110 = vmatpush1.bf16.msra.mxu0 0
  %111 = vmatprep.subr.bf16.mxu0 0
  %112 = vmatpush1.bf16.msra.mxu0 0
  %113 = vmatprep.mubr.bf16.mxu0 0
  %114 = vmatmul.mubr.bf16.gmra.mrb[0].mxu0 %v76
  %v115 = vpop.f32.mrb[0].mxu0
  %v116 = vadd.f32 0.0, %v115
  %v117 = vpop.f32.mrb[0].mxu0
  %v118 = vpop.f32.mrb[0].mxu0
  %v119 = vadd.f32 0.0, %v118
  %v120 = vpop.f32.mrb[0].mxu0
  %121 = vmatprep.mubr.bf16.mxu0 0
  %122 = vmatmul.mubr.bf16.gmra.mrb[0].mxu0 %v79
  %v123 = vpop.f32.mrb[0].mxu0
  %v124 = vadd.f32 0.0, %v123
  %v125 = vpop.f32.mrb[0].mxu0
  %v126 = vpop.f32.mrb[0].mxu0
  %v127 = vadd.f32 0.0, %v126
  %v128 = vpop.f32.mrb[0].mxu0
  %129 = vdwg.mxu0
  %v130 = vadd.f32 %v24, %v116
  %v131 = vadd.f32 %v25, %v119
  %v132 = vadd.f32 %v26, %v124
  %v133 = vadd.f32 %v27, %v127
  %vm134 = vcmask 261120
  %135 = vst.msk [vmem:[#allocation2] sm:$0xff] %vm134, %v130
  %136 = vst.msk [vmem:[#allocation2 + $0x8] sm:$0xff] %vm134, %v131
  %137 = vst.msk [vmem:[#allocation2 + $0x10] sm:$0xff] %vm134, %v132
  %138 = vst.msk [vmem:[#allocation2 + $0x18] sm:$0xff] %vm134, %v133
  // Predicated region
  $region18: #{image_encoder_forward.12} parent=0 // pred_check
    %p139 = pneg %p15
  $region19: #{image_encoder_forward.12} parent=0 // pred_check_branch
    %141 = sbr.rel (%p139) target = $region21
  $region20: #{image_encoder_forward.12} parent=0 // pred_region
    %v142 = vld [vmem:[#allocation2] sm:$0xff]
    %v143 = vld [vmem:[#allocation2 + $0x8] sm:$0xff]
    %v144 = vld [vmem:[#allocation2 + $0x10] sm:$0xff]
    %v145 = vld [vmem:[#allocation2 + $0x18] sm:$0xff]
    %v146 = vld [vmem:[%s2] sm:$0x1]
    %v148 = vlaneseq
    %v149 = vshrl.u32 %v148, 7
    %v150 = vsub.s32 0, %v149
    %v151 = vrot.slane %v146, %v150
    %v153 = vadd.f32 %v142, %v151
    %v154 = vadd.f32 %v143, %v151
    %v155 = vadd.f32 %v144, %v151
    %v156 = vadd.f32 %v145, %v151
    %v157 = vpack.c.bf16 %v154, %v153
    %v158 = vpack.c.bf16 %v156, %v155
    %v161 = vunpack.c.l.b16 %v157
    %v162 = vunpack.c.h.b16 %v157
    %v163 = vunpack.c.l.b16 %v158
    %v164 = vunpack.c.h.b16 %v158
    %v165 = vpack.c.b16 %v161, %v161
    %v166 = vpack.c.b16 %v162, %v162
    %v167 = vpack.c.b16 %v163, %v163
    %v168 = vpack.c.b16 %v164, %v164
    %vm173 = vcmask 257024
    %174 = vst.msk [vmem:[%s3] sm:$0xf] %vm173, %v165
    %175 = vst.msk [vmem:[%s3 + $0x4] sm:$0xf] %vm173, %v166
    %176 = vst.msk [vmem:[%s3 + $0x8] sm:$0xf] %vm173, %v167
    %177 = vst.msk [vmem:[%s3 + $0xc] sm:$0xf] %vm173, %v168
  $region21: #{image_encoder_forward.12} parent=0 // pred_fallthru
    _
  // Predicated region
  $region22: #{image_encoder_forward.12} parent=0 // pred_check
    _
  $region23: #{image_encoder_forward.12} parent=0 // pred_check_branch
    %179 = sbr.rel (0) target = $region25
  $region24: #{image_encoder_forward.12} parent=0 // pred_region
    _
  $region25: #{image_encoder_forward.12} parent=0 // pred_fallthru
    _
  // Predicated region
  $region26: #{image_encoder_forward.12} parent=0 // pred_check
    _
  $region27: #{image_encoder_forward.12} parent=0 // pred_check_branch
    %181 = sbr.rel (0) target = $region29
  $region28: #{image_encoder_forward.12} parent=0 // pred_region
    _
  $region29: #{image_encoder_forward.12} parent=0 // pred_fallthru
    _

// kernel: image_encoder_forward.15
$region0: #{image_encoder_forward.15}
  #allocation0 [shape = 'u32[]', space=smem, size = 0x4, offset = 0x4, fixed_abs, tag = 'smem constant byte address 0x4 - core index']
  #allocation1 [shape = 'u32[144,128]{1,0:T(1,128)}', space=vmem, size = 0x12000, scoped, tag = 'internal scratch']
  #allocation2 [shape = 'f32[64,32]{1,0:T(8,128)}', space=vmem, size = 0x8000, scoped, tag = 'scratch operand']
  %s0 = inlined_call_operand.vmem [shape: bf16[4,64,8], index: 0, kind: input, shape index: {}]
  %s1 = inlined_call_operand.vmem [shape: bf16[4,8,32], index: 1, kind: input, shape index: {}]
  %s2 = inlined_call_operand.vmem [shape: f32[1,32], index: 2, kind: input, shape index: {}]
  %s3 = inlined_call_operand.vmem [shape: bf16[64,32], index: 3, kind: input, shape index: {}]
  %s4 = inlined_call_operand.vmem [shape: bf16[64,32], index: 4, kind: output, shape index: {}]
  %s5 = sld [smem:[#allocation0]]
  $region57: #{image_encoder_forward.15} parent=0
    _
  %s7 = ssub.s32 1, %s5
  %s8 = scalar_select 0, %s7, %s5
  loop: start=0, step=1, limit=6
  $region2: #{image_encoder_forward.15} parent=0 // loop_pre_header
    _
  $region3: #{image_encoder_forward.15} parent=0 // loop_header
    %s10 = sphi 0, %s14
    %p11 = scmp.ge.s32.totalorder %s10, 6
    %s17 = sphi 0, %s36
    %s18 = sphi 0, %s32
    %s19 = sphi 0, %s28
    %s20 = sphi 0, %s17
    %s21 = sphi 0, %s18
    %s22 = sphi 0, %s19
    %s23 = sphi 0, %s20
    %s24 = sphi 0, %s21
    %s25 = sphi 0, %s22
    %s41 = sphi 0, %s43
    %s44 = sphi 0, %s41
    %s45 = sphi 0, %s44
    %s61 = sphi 0, %s45
    %s69 = sphi 0, %s71
    %s72 = sphi 0, %s69
    %s73 = sphi 0, %s72
    %s89 = sphi 0, %s73
    %s95 = sphi 0, %s97
    %s98 = sphi 0, %s95
    %s99 = sphi 0, %s98
    %s115 = sphi 0, %s99
    %s123 = sphi 0, %s125
    %s126 = sphi 0, %s123
    %s127 = sphi 0, %s126
    %s143 = sphi 0, %s127
    %s151 = sphi 0, %s153
    %s154 = sphi 0, %s151
    %s155 = sphi 0, %s154
    %s171 = sphi 0, %s155
  $region4: #{image_encoder_forward.15} parent=0 // loop_header_branch
    %13 = sbr.rel (%p11) target = $region8
  $region5: #{image_encoder_forward.15} parent=0 // loop_body
    %s15 = ssub.s32 %s10, 1
    %s16 = ssub.s32 %s10, 2
    %s26 = sadd.s32 1, %s19
    %p27 = scmp.ge.s32.totalorder %s26, 4
    %s28 = scalar_select %p27, 0, %s26
    %s29 = sadd.s32 1, %s18
    %s30 = scalar_select %p27, %s29, %s18
    %p31 = scmp.ge.s32.totalorder %s30, 1
    %s32 = scalar_select %p31, 0, %s30
    %s33 = sadd.s32 1, %s17
    %s34 = scalar_select %p31, %s33, %s17
    %p35 = scmp.ge.s32.totalorder %s34, 1
    %s36 = scalar_select %p35, 0, %s34
    %s37 = ssub.s32 %s19, %s28
    %s38 = ssub.s32 %s17, %s36
    %s39 = sor.u32 %s37, %s38
    %p40 = scmp.eq.s32.totalorder %s39, 0
    %s42 = sadd.s32 %s41, 1
    %s43 = scalar_select %p40, %s41, %s42
    %p46 = pneg %p40
    %p47 = scmp.eq.s32.totalorder %s10, 3
    %p48 = por %p46, %p47
    %p49 = scmp.ne.s32.totalorder %s41, %s44
    %p50 = scmp.eq.s32.totalorder %s10, 0
    %p51 = por %p49, %p50
    %p52 = scmp.ne.s32.totalorder %s41, %s44
    %p53 = scmp.eq.s32.totalorder %s15, 3
    %p54 = por %p52, %p53
    %p55 = scmp.ne.s32.totalorder %s44, %s45
    %p56 = scmp.eq.s32.totalorder %s15, 0
    %p57 = por %p55, %p56
    %p58 = scmp.ne.s32.totalorder %s44, %s45
    %p59 = scmp.eq.s32.totalorder %s16, 3
    %p60 = por %p58, %p59
    %p62 = scmp.ne.s32.totalorder %s45, %s61
    %p63 = scmp.eq.s32.totalorder %s16, 0
    %p64 = por %p62, %p63
    %s65 = ssub.s32 %s19, %s28
    %s66 = ssub.s32 %s18, %s32
    %s67 = sor.u32 %s65, %s66
    %p68 = scmp.eq.s32.totalorder %s67, 0
    %s70 = sadd.s32 %s69, 1
    %s71 = scalar_select %p68, %s69, %s70
    %p74 = pneg %p68
    %p75 = scmp.eq.s32.totalorder %s10, 3
    %p76 = por %p74, %p75
    %p77 = scmp.ne.s32.totalorder %s69, %s72
    %p78 = scmp.eq.s32.totalorder %s10, 0
    %p79 = por %p77, %p78
    %p80 = scmp.ne.s32.totalorder %s69, %s72
    %p81 = scmp.eq.s32.totalorder %s15, 3
    %p82 = por %p80, %p81
    %p83 = scmp.ne.s32.totalorder %s72, %s73
    %p84 = scmp.eq.s32.totalorder %s15, 0
    %p85 = por %p83, %p84
    %p86 = scmp.ne.s32.totalorder %s72, %s73
    %p87 = scmp.eq.s32.totalorder %s16, 3
    %p88 = por %p86, %p87
    %p90 = scmp.ne.s32.totalorder %s73, %s89
    %p91 = scmp.eq.s32.totalorder %s16, 0
    %p92 = por %p90, %p91
    %s93 = ssub.s32 %s18, %s32
    %p94 = scmp.eq.s32.totalorder %s93, 0
    %s96 = sadd.s32 %s95, 1
    %s97 = scalar_select %p94, %s95, %s96
    %p100 = pneg %p94
    %p101 = scmp.eq.s32.totalorder %s10, 3
    %p102 = por %p100, %p101
    %p103 = scmp.ne.s32.totalorder %s95, %s98
    %p104 = scmp.eq.s32.totalorder %s10, 0
    %p105 = por %p103, %p104
    %p106 = scmp.ne.s32.totalorder %s95, %s98
    %p107 = scmp.eq.s32.totalorder %s15, 3
    %p108 = por %p106, %p107
    %p109 = scmp.ne.s32.totalorder %s98, %s99
    %p110 = scmp.eq.s32.totalorder %s15, 0
    %p111 = por %p109, %p110
    %p112 = scmp.ne.s32.totalorder %s98, %s99
    %p113 = scmp.eq.s32.totalorder %s16, 3
    %p114 = por %p112, %p113
    %p116 = scmp.ne.s32.totalorder %s99, %s115
    %p117 = scmp.eq.s32.totalorder %s16, 0
    %p118 = por %p116, %p117
    %s119 = ssub.s32 %s17, %s36
    %s120 = ssub.s32 %s18, %s32
    %s121 = sor.u32 %s119, %s120
    %p122 = scmp.eq.s32.totalorder %s121, 0
    %s124 = sadd.s32 %s123, 1
    %s125 = scalar_select %p122, %s123, %s124
    %p128 = pneg %p122
    %p129 = scmp.eq.s32.totalorder %s10, 3
    %p130 = por %p128, %p129
    %p131 = scmp.ne.s32.totalorder %s123, %s126
    %p132 = scmp.eq.s32.totalorder %s10, 0
    %p133 = por %p131, %p132
    %p134 = scmp.ne.s32.totalorder %s123, %s126
    %p135 = scmp.eq.s32.totalorder %s15, 3
    %p136 = por %p134, %p135
    %p137 = scmp.ne.s32.totalorder %s126, %s127
    %p138 = scmp.eq.s32.totalorder %s15, 0
    %p139 = por %p137, %p138
    %p140 = scmp.ne.s32.totalorder %s126, %s127
    %p141 = scmp.eq.s32.totalorder %s16, 3
    %p142 = por %p140, %p141
    %p144 = scmp.ne.s32.totalorder %s127, %s143
    %p145 = scmp.eq.s32.totalorder %s16, 0
    %p146 = por %p144, %p145
    %s147 = ssub.s32 %s17, %s36
    %s148 = ssub.s32 %s18, %s32
    %s149 = sor.u32 %s147, %s148
    %p150 = scmp.eq.s32.totalorder %s149, 0
    %s152 = sadd.s32 %s151, 1
    %s153 = scalar_select %p150, %s151, %s152
    %p156 = pneg %p150
    %p157 = scmp.eq.s32.totalorder %s10, 3
    %p158 = por %p156, %p157
    %p159 = scmp.ne.s32.totalorder %s151, %s154
    %p160 = scmp.eq.s32.totalorder %s10, 0
    %p161 = por %p159, %p160
    %p162 = scmp.ne.s32.totalorder %s151, %s154
    %p163 = scmp.eq.s32.totalorder %s15, 3
    %p164 = por %p162, %p163
    %p165 = scmp.ne.s32.totalorder %s154, %s155
    %p166 = scmp.eq.s32.totalorder %s15, 0
    %p167 = por %p165, %p166
    %p168 = scmp.ne.s32.totalorder %s154, %s155
    %p169 = scmp.eq.s32.totalorder %s16, 3
    %p170 = por %p168, %p169
    %p172 = scmp.ne.s32.totalorder %s155, %s171
    %p173 = scmp.eq.s32.totalorder %s16, 0
    %p174 = por %p172, %p173
    %p175 = scmp.le.s32.totalorder 1, %s10
    %p176 = scmp.lt.s32.totalorder %s10, 5
    %p177 = pnand %p175, %p176
    %p178 = pneg %p177
    // Predicated region
    $region9: #{image_encoder_forward.15} parent=5 // pred_check
      _
    $region10: #{image_encoder_forward.15} parent=5 // pred_check_branch
      %180 = sbr.rel (%p177) target = $region12
    $region11: #{image_encoder_forward.15} parent=5 // pred_region
      %s181 = ssub.s32 %s10, 1
      // Predicated region
      $region13: #{image_encoder_forward.15} parent=11 // pred_check
        %p182 = pneg %p111
      $region14: #{image_encoder_forward.15} parent=11 // pred_check_branch
        %184 = sbr.rel (%p182) target = $region16
      $region15: #{image_encoder_forward.15} parent=11 // pred_region
        %p185 = scmp.lt.s32.totalorder %s21, 0
        %s186 = scalar_select %p185, %s21, 0
        %s187 = scalar_lea.vmem %s2, %s186
      $region16: #{image_encoder_forward.15} parent=11 // pred_fallthru
        _
      // Predicated region
      $region17: #{image_encoder_forward.15} parent=11 // pred_check
        %p188 = pneg %p139
      $region18: #{image_encoder_forward.15} parent=11 // pred_check_branch
        %190 = sbr.rel (%p188) target = $region20
      $region19: #{image_encoder_forward.15} parent=11 // pred_region
        %s191 = smul.u32 8, %s20
        %p192 = scmp.lt.s32.totalorder %s191, 7
        %s193 = scalar_select %p192, %s191, 7
        %p194 = scmp.lt.s32.totalorder %s21, 0
        %s195 = scalar_select %p194, %s21, 0
        %s196 = sadd.s32 %s195, %s193
        %s197 = smul.addr %s196, 4
        %s198 = scalar_lea.vmem %s3, %s197
        %s199 = smul.u32 8, %s20
      $region20: #{image_encoder_forward.15} parent=11 // pred_fallthru
        _
    $region12: #{image_encoder_forward.15} parent=5 // pred_fallthru
      _
    %p200 = scmp.lt.s32.totalorder %s10, 4
    // Predicated region
    $region21: #{image_encoder_forward.15} parent=5 // pred_check
      %p201 = pneg %p200
    $region22: #{image_encoder_forward.15} parent=5 // pred_check_branch
      %203 = sbr.rel (%p201) target = $region24
    $region23: #{image_encoder_forward.15} parent=5 // pred_region
      // Predicated region
      $region25: #{image_encoder_forward.15} parent=23 // pred_check
        %p204 = pneg %p51
      $region26: #{image_encoder_forward.15} parent=23 // pred_check_branch
        %206 = sbr.rel (%p204) target = $region28
      $region27: #{image_encoder_forward.15} parent=23 // pred_region
        %s207 = smul.u32 8, %s17
        %p208 = scmp.lt.s32.totalorder %s19, 3
        %s209 = scalar_select %p208, %s19, 3
        %p210 = scmp.lt.s32.totalorder %s207, 7
        %s211 = scalar_select %p210, %s207, 7
        %s212 = smul.addr %s209, 8
        %s213 = sadd.s32 %s211, %s212
        %s214 = smul.addr %s213, 4
        %s215 = scalar_lea.vmem %s0, %s214
        %s216 = smul.u32 8, %s17
      $region28: #{image_encoder_forward.15} parent=23 // pred_fallthru
        _
      // Predicated region
      $region29: #{image_encoder_forward.15} parent=23 // pred_check
        %p217 = pneg %p79
      $region30: #{image_encoder_forward.15} parent=23 // pred_check_branch
        %219 = sbr.rel (%p217) target = $region32
      $region31: #{image_encoder_forward.15} parent=23 // pred_region
        %p220 = scmp.lt.s32.totalorder %s19, 3
        %s221 = scalar_select %p220, %s19, 3
        %p222 = scmp.lt.s32.totalorder %s18, 0
        %s223 = scalar_select %p222, %s18, 0
        %s224 = sadd.s32 %s223, %s221
        %s225 = smul.addr %s224, 4
        %s226 = scalar_lea.vmem %s1, %s225
      $region32: #{image_encoder_forward.15} parent=23 // pred_fallthru
        _
    $region24: #{image_encoder_forward.15} parent=5 // pred_fallthru
      _
    %p227 = scmp.le.s32.totalorder 1, %s10
    %p228 = scmp.lt.s32.totalorder %s10, 5
    %p229 = pnand %p227, %p228
    %p230 = pneg %p229
    // Predicated region
    $region33: #{image_encoder_forward.15} parent=5 // pred_check
      _
    $region34: #{image_encoder_forward.15} parent=5 // pred_check_branch
      %232 = sbr.rel (%p229) target = $region36
    $region35: #{image_encoder_forward.15} parent=5 // pred_region
      %s233 = ssub.s32 %s10, 1
      %s234 = smul.u32 8, %s20
      %p235 = scmp.lt.s32.totalorder %s22, 3
      %s236 = scalar_select %p235, %s22, 3
      %p237 = scmp.lt.s32.totalorder %s234, 7
      %s238 = scalar_select %p237, %s234, 7
      %s239 = smul.addr %s236, 8
      %s240 = sadd.s32 %s238, %s239
      %s241 = smul.addr %s240, 4
      %s242 = scalar_lea.vmem %s0, %s241
      %p243 = pneg %p57
      %p244 = pneg %p54
      %p245 = scmp.lt.s32.totalorder %s22, 3
      %s246 = scalar_select %p245, %s22, 3
      %p247 = scmp.lt.s32.totalorder %s21, 0
      %s248 = scalar_select %p247, %s21, 0
      %s249 = sadd.s32 %s248, %s246
      %s250 = smul.addr %s249, 4
      %s251 = scalar_lea.vmem %s1, %s250
      %p252 = pneg %p85
      %p253 = pneg %p82
      %p254 = scmp.lt.s32.totalorder %s21, 0
      %s255 = scalar_select %p254, %s21, 0
      %s256 = scalar_lea.vmem %s2, %s255
      %p257 = pneg %p111
      %p258 = pneg %p108
      %s259 = smul.u32 8, %s20
      %p260 = scmp.lt.s32.totalorder %s259, 7
      %s261 = scalar_select %p260, %s259, 7
      %p262 = scmp.lt.s32.totalorder %s21, 0
      %s263 = scalar_select %p262, %s21, 0
      %s264 = sadd.s32 %s263, %s261
      %s265 = smul.addr %s264, 4
      %s266 = scalar_lea.vmem %s3, %s265
      %p267 = pneg %p139
      %p268 = pneg %p136
      %p269 = pneg %p167
      %p270 = pneg %p164
      %s271 = smul.u32 8, %s20
      %p272 = scmp.lt.s32.totalorder %s271, 7
      %s273 = scalar_select %p272, %s271, 7
      %p274 = scmp.lt.s32.totalorder %s21, 0
      %s275 = scalar_select %p274, %s21, 0
      %s276 = sadd.s32 %s275, %s273
      %s277 = smul.addr %s276, 4
      %s278 = scalar_lea.vmem %s4, %s277
      %s279 = smul.u32 8, %s20
      %p280 = scmp.lt.s32.totalorder %s22, 3
      %s281 = scalar_select %p280, %s22, 3
      %p282 = scmp.lt.s32.totalorder %s279, 7
      %s283 = scalar_select %p282, %s279, 7
      %s284 = smul.addr %s281, 8
      %s285 = sadd.s32 %s283, %s284
      %s286 = smul.addr %s285, 4
      %s287 = scalar_lea.vmem %s0, %s286
      %s288 = smul.u32 8, %s20
      %p289 = scmp.lt.s32.totalorder %s22, 3
      %s290 = scalar_select %p289, %s22, 3
      %p291 = scmp.lt.s32.totalorder %s21, 0
      %s292 = scalar_select %p291, %s21, 0
      %s293 = sadd.s32 %s292, %s290
      %s294 = smul.addr %s293, 4
      %s295 = scalar_lea.vmem %s1, %s294
      %p296 = scmp.lt.s32.totalorder %s21, 0
      %s297 = scalar_select %p296, %s21, 0
      %s298 = scalar_lea.vmem %s2, %s297
      %s299 = smul.u32 8, %s20
      %p300 = scmp.lt.s32.totalorder %s299, 7
      %s301 = scalar_select %p300, %s299, 7
      %p302 = scmp.lt.s32.totalorder %s21, 0
      %s303 = scalar_select %p302, %s21, 0
      %s304 = sadd.s32 %s303, %s301
      %s305 = smul.addr %s304, 4
      %s306 = scalar_lea.vmem %s3, %s305
      %s307 = smul.u32 8, %s20
      %s308 = smul.u32 8, %s20
      %p309 = scmp.lt.s32.totalorder %s308, 7
      %s310 = scalar_select %p309, %s308, 7
      %p311 = scmp.lt.s32.totalorder %s21, 0
      %s312 = scalar_select %p311, %s21, 0
      %s313 = sadd.s32 %s312, %s310
      %s314 = smul.addr %s313, 4
      %s315 = scalar_lea.vmem %s4, %s314
      %s316 = smul.u32 8, %s20
      %p318 = scmp.eq.s32.totalorder %s22, 0
      // Predicated region
      $region37: #{image_encoder_forward.15} parent=35 // pred_check
        %p319 = pneg %p318
      $region38: #{image_encoder_forward.15} parent=35 // pred_check_branch
        %321 = sbr.rel (%p319) target = $region40
      $region39: #{image_encoder_forward.15} parent=35 // pred_region
        %vm322 = vcmask 261120
        %323 = vst.msk [vmem:[#allocation2] sm:$0xff] %vm322, 0.0
        %324 = vst.msk [vmem:[#allocation2 + $0x8] sm:$0xff] %vm322, 0.0
        %325 = vst.msk [vmem:[#allocation2 + $0x10] sm:$0xff] %vm322, 0.0
        %326 = vst.msk [vmem:[#allocation2 + $0x18] sm:$0xff] %vm322, 0.0
        %327 = vst.msk [vmem:[#allocation2 + $0x20] sm:$0xff] %vm322, 0.0
        %328 = vst.msk [vmem:[#allocation2 + $0x28] sm:$0xff] %vm322, 0.0
        %329 = vst.msk [vmem:[#allocation2 + $0x30] sm:$0xff] %vm322, 0.0
        %330 = vst.msk [vmem:[#allocation2 + $0x38] sm:$0xff] %vm322, 0.0
      $region40: #{image_encoder_forward.15} parent=35 // pred_fallthru
        _
      %v331 = vld [vmem:[#allocation2] sm:$0xff]
      %v332 = vld [vmem:[#allocation2 + $0x8] sm:$0xff]
      %v333 = vld [vmem:[#allocation2 + $0x10] sm:$0xff]
      %v334 = vld [vmem:[#allocation2 + $0x18] sm:$0xff]
      %v335 = vld [vmem:[#allocation2 + $0x20] sm:$0xff]
      %v336 = vld [vmem:[#allocation2 + $0x28] sm:$0xff]
      %v337 = vld [vmem:[#allocation2 + $0x30] sm:$0xff]
      %v338 = vld [vmem:[#allocation2 + $0x38] sm:$0xff]
      %v339 = vld [vmem:[%s287] sm:$0xf]
      %v340 = vld [vmem:[%s287 + $0x4] sm:$0xf]
      %v341 = vld [vmem:[%s287 + $0x8] sm:$0xf]
      %v342 = vld [vmem:[%s287 + $0xc] sm:$0xf]
      %v343 = vld [vmem:[%s287 + $0x10] sm:$0xf]
      %v344 = vld [vmem:[%s287 + $0x14] sm:$0xf]
      %v345 = vld [vmem:[%s287 + $0x18] sm:$0xf]
      %v346 = vld [vmem:[%s287 + $0x1c] sm:$0xf]
      %v347 = vld [vmem:[%s295] sm:$0xf]
      %v356 = vunpack.c.l.b16 %v339
      %v357 = vunpack.c.l.b16 %v340
      %v358 = vunpack.c.l.b16 %v341
      %v359 = vunpack.c.l.b16 %v342
      %v360 = vunpack.c.l.b16 %v343
      %v361 = vunpack.c.l.b16 %v344
      %v362 = vunpack.c.l.b16 %v345
      %v363 = vunpack.c.l.b16 %v346
      %v364 = vpack.c.b16 %v357, %v356
      %v365 = vpack.c.b16 %v359, %v358
      %v366 = vpack.c.b16 %v361, %v360
      %v367 = vpack.c.b16 %v363, %v362
      %vm368 = vcmask 64512
      %v370 = vsel %vm368, %v364, 0
      %v373 = vsel %vm368, %v365, 0
      %v376 = vsel %vm368, %v366, 0
      %v379 = vsel %vm368, %v367, 0
      %vm381 = vcmask 1043456
      %v383 = vsel %vm381, %v347, 0
      %385 = vmatprep.subr.bf16.mxu0 0
      %386 = vmatpush1.bf16.msra.mxu0 %v383
      %387 = vmatprep.subr.bf16.mxu0 0
      %388 = vmatpush1.bf16.msra.mxu0 0
      %389 = vmatprep.subr.bf16.mxu0 0
      %390 = vmatpush1.bf16.msra.mxu0 0
      %391 = vmatprep.subr.bf16.mxu0 0
      %392 = vmatpush1.bf16.msra.mxu0 0
      %393 = vmatprep.subr.bf16.mxu0 0
      %394 = vmatpush1.bf16.msra.mxu0 0
      %395 = vmatprep.subr.bf16.mxu0 0
      %396 = vmatpush1.bf16.msra.mxu0 0
      %397 = vmatprep.subr.bf16.mxu0 0
      %398 = vmatpush1.bf16.msra.mxu0 0
      %399 = vmatprep.subr.bf16.mxu0 0
      %400 = vmatpush1.bf16.msra.mxu0 0
      %401 = vmatprep.subr.bf16.mxu0 0
      %402 = vmatpush1.bf16.msra.mxu0 0
      %403 = vmatprep.subr.bf16.mxu0 0
      %404 = vmatpush1.bf16.msra.mxu0 0
      %405 = vmatprep.subr.bf16.mxu0 0
      %406 = vmatpush1.bf16.msra.mxu0 0
      %407 = vmatprep.subr.bf16.mxu0 0
      %408 = vmatpush1.bf16.msra.mxu0 0
      %409 = vmatprep.subr.bf16.mxu0 0
      %410 = vmatpush1.bf16.msra.mxu0 0
      %411 = vmatprep.subr.bf16.mxu0 0
      %412 = vmatpush1.bf16.msra.mxu0 0
      %413 = vmatprep.subr.bf16.mxu0 0
      %414 = vmatpush1.bf16.msra.mxu0 0
      %415 = vmatprep.subr.bf16.mxu0 0
      %416 = vmatpush1.bf16.msra.mxu0 0
      %417 = vmatprep.mubr.bf16.mxu0 0
      %418 = vmatmul.mubr.bf16.gmra.mrb[0].mxu0 %v370
      %v419 = vpop.f32.mrb[0].mxu0
      %v420 = vadd.f32 0.0, %v419
      %v421 = vpop.f32.mrb[0].mxu0
      %v422 = vpop.f32.mrb[0].mxu0
      %v423 = vadd.f32 0.0, %v422
      %v424 = vpop.f32.mrb[0].mxu0
      %425 = vmatprep.mubr.bf16.mxu0 0
      %426 = vmatmul.mubr.bf16.gmra.mrb[0].mxu0 %v373
      %v427 = vpop.f32.mrb[0].mxu0
      %v428 = vadd.f32 0.0, %v427
      %v429 = vpop.f32.mrb[0].mxu0
      %v430 = vpop.f32.mrb[0].mxu0
      %v431 = vadd.f32 0.0, %v430
      %v432 = vpop.f32.mrb[0].mxu0
      %433 = vmatprep.mubr.bf16.mxu0 0
      %434 = vmatmul.mubr.bf16.gmra.mrb[0].mxu0 %v376
      %v435 = vpop.f32.mrb[0].mxu0
      %v436 = vadd.f32 0.0, %v435
      %v437 = vpop.f32.mrb[0].mxu0
      %v438 = vpop.f32.mrb[0].mxu0
      %v439 = vadd.f32 0.0, %v438
      %v440 = vpop.f32.mrb[0].mxu0
      %441 = vmatprep.mubr.bf16.mxu0 0
      %442 = vmatmul.mubr.bf16.gmra.mrb[0].mxu0 %v379
      %v443 = vpop.f32.mrb[0].mxu0
      %v444 = vadd.f32 0.0, %v443
      %v445 = vpop.f32.mrb[0].mxu0
      %v446 = vpop.f32.mrb[0].mxu0
      %v447 = vadd.f32 0.0, %v446
      %v448 = vpop.f32.mrb[0].mxu0
      %449 = vdwg.mxu0
      %v450 = vadd.f32 %v331, %v420
      %v451 = vadd.f32 %v332, %v423
      %v452 = vadd.f32 %v333, %v428
      %v453 = vadd.f32 %v334, %v431
      %v454 = vadd.f32 %v335, %v436
      %v455 = vadd.f32 %v336, %v439
      %v456 = vadd.f32 %v337, %v444
      %v457 = vadd.f32 %v338, %v447
      %vm458 = vcmask 261120
      %459 = vst.msk [vmem:[#allocation2] sm:$0xff] %vm458, %v450
      %460 = vst.msk [vmem:[#allocation2 + $0x8] sm:$0xff] %vm458, %v451
      %461 = vst.msk [vmem:[#allocation2 + $0x10] sm:$0xff] %vm458, %v452
      %462 = vst.msk [vmem:[#allocation2 + $0x18] sm:$0xff] %vm458, %v453
      %463 = vst.msk [vmem:[#allocation2 + $0x20] sm:$0xff] %vm458, %v454
      %464 = vst.msk [vmem:[#allocation2 + $0x28] sm:$0xff] %vm458, %v455
      %465 = vst.msk [vmem:[#allocation2 + $0x30] sm:$0xff] %vm458, %v456
      %466 = vst.msk [vmem:[#allocation2 + $0x38] sm:$0xff] %vm458, %v457
      %p467 = scmp.eq.s32.totalorder %s22, 3
      // Predicated region
      $region41: #{image_encoder_forward.15} parent=35 // pred_check
        %p468 = pneg %p467
      $region42: #{image_encoder_forward.15} parent=35 // pred_check_branch
        %470 = sbr.rel (%p468) target = $region44
      $region43: #{image_encoder_forward.15} parent=35 // pred_region
        %v471 = vld [vmem:[#allocation2] sm:$0xff]
        %v472 = vld [vmem:[#allocation2 + $0x8] sm:$0xff]
        %v473 = vld [vmem:[#allocation2 + $0x10] sm:$0xff]
        %v474 = vld [vmem:[#allocation2 + $0x18] sm:$0xff]
        %v475 = vld [vmem:[#allocation2 + $0x20] sm:$0xff]
        %v476 = vld [vmem:[#allocation2 + $0x28] sm:$0xff]
        %v477 = vld [vmem:[#allocation2 + $0x30] sm:$0xff]
        %v478 = vld [vmem:[#allocation2 + $0x38] sm:$0xff]
        %v479 = vld [vmem:[%s298] sm:$0x1]
        %v481 = vlaneseq
        %v482 = vshrl.u32 %v481, 7
        %v483 = vsub.s32 0, %v482
        %v484 = vrot.slane %v479, %v483
        %v486 = vadd.f32 %v471, %v484
        %v487 = vadd.f32 %v472, %v484
        %v488 = vadd.f32 %v473, %v484
        %v489 = vadd.f32 %v474, %v484
        %v490 = vadd.f32 %v475, %v484
        %v491 = vadd.f32 %v476, %v484
        %v492 = vadd.f32 %v477, %v484
        %v493 = vadd.f32 %v478, %v484
        %v494 = vld [vmem:[%s306] sm:$0xf]
        %v495 = vld [vmem:[%s306 + $0x4] sm:$0xf]
        %v496 = vld [vmem:[%s306 + $0x8] sm:$0xf]
        %v497 = vld [vmem:[%s306 + $0xc] sm:$0xf]
        %v498 = vld [vmem:[%s306 + $0x10] sm:$0xf]
        %v499 = vld [vmem:[%s306 + $0x14] sm:$0xf]
        %v500 = vld [vmem:[%s306 + $0x18] sm:$0xf]
        %v501 = vld [vmem:[%s306 + $0x1c] sm:$0xf]
        %v502 = vunpack.c.l.bf16 %v494
        %v503 = vunpack.c.l.bf16 %v495
        %v504 = vunpack.c.l.bf16 %v496
        %v505 = vunpack.c.l.bf16 %v497
        %v506 = vunpack.c.l.bf16 %v498
        %v507 = vunpack.c.l.bf16 %v499
        %v508 = vunpack.c.l.bf16 %v500
        %v509 = vunpack.c.l.bf16 %v501
        %v510 = vadd.f32 %v486, %v502
        %v511 = vadd.f32 %v487, %v503
        %v512 = vadd.f32 %v488, %v504
        %v513 = vadd.f32 %v489, %v505
        %v514 = vadd.f32 %v490, %v506
        %v515 = vadd.f32 %v491, %v507
        %v516 = vadd.f32 %v492, %v508
        %v517 = vadd.f32 %v493, %v509
        %v518 = vpack.c.bf16 %v511, %v510
        %v519 = vpack.c.bf16 %v513, %v512
        %v520 = vpack.c.bf16 %v515, %v514
        %v521 = vpack.c.bf16 %v517, %v516
        %v526 = vunpack.c.l.b16 %v518
        %v527 = vunpack.c.h.b16 %v518
        %v528 = vunpack.c.l.b16 %v519
        %v529 = vunpack.c.h.b16 %v519
        %v530 = vunpack.c.l.b16 %v520
        %v531 = vunpack.c.h.b16 %v520
        %v532 = vunpack.c.l.b16 %v521
        %v533 = vunpack.c.h.b16 %v521
        %v534 = vpack.c.b16 %v526, %v526
        %v535 = vpack.c.b16 %v527, %v527
        %v536 = vpack.c.b16 %v528, %v528
        %v537 = vpack.c.b16 %v529, %v529
        %v538 = vpack.c.b16 %v530, %v530
        %v539 = vpack.c.b16 %v531, %v531
        %v540 = vpack.c.b16 %v532, %v532
        %v541 = vpack.c.b16 %v533, %v533
        %vm550 = vcmask 257024
        %551 = vst.msk [vmem:[%s315] sm:$0xf] %vm550, %v534
        %552 = vst.msk [vmem:[%s315 + $0x4] sm:$0xf] %vm550, %v535
        %553 = vst.msk [vmem:[%s315 + $0x8] sm:$0xf] %vm550, %v536
        %554 = vst.msk [vmem:[%s315 + $0xc] sm:$0xf] %vm550, %v537
        %555 = vst.msk [vmem:[%s315 + $0x10] sm:$0xf] %vm550, %v538
        %556 = vst.msk [vmem:[%s315 + $0x14] sm:$0xf] %vm550, %v539
        %557 = vst.msk [vmem:[%s315 + $0x18] sm:$0xf] %vm550, %v540
        %558 = vst.msk [vmem:[%s315 + $0x1c] sm:$0xf] %vm550, %v541
      $region44: #{image_encoder_forward.15} parent=35 // pred_fallthru
        _
      %s559 = smul.u32 8, %s20
      %p560 = scmp.lt.s32.totalorder %s559, 7
      %s561 = scalar_select %p560, %s559, 7
      %p562 = scmp.lt.s32.totalorder %s21, 0
      %s563 = scalar_select %p562, %s21, 0
      %s564 = sadd.s32 %s563, %s561
      %s565 = smul.addr %s564, 4
      %s566 = scalar_lea.vmem %s4, %s565
      // Predicated region
      $region45: #{image_encoder_forward.15} parent=35 // pred_check
        %p567 = pneg %p164
      $region46: #{image_encoder_forward.15} parent=35 // pred_check_branch
        %569 = sbr.rel (%p567) target = $region48
      $region47: #{image_encoder_forward.15} parent=35 // pred_region
        %s570 = smul.u32 8, %s20
      $region48: #{image_encoder_forward.15} parent=35 // pred_fallthru
        _
      // Predicated region
      $region49: #{image_encoder_forward.15} parent=35 // pred_check
        %p571 = pneg %p164
      $region50: #{image_encoder_forward.15} parent=35 // pred_check_branch
        %573 = sbr.rel (%p571) target = $region52
      $region51: #{image_encoder_forward.15} parent=35 // pred_region
        %s574 = smul.u32 8, %s20
        %p575 = scmp.lt.s32.totalorder %s574, 7
        %s576 = scalar_select %p575, %s574, 7
        %p577 = scmp.lt.s32.totalorder %s21, 0
        %s578 = scalar_select %p577, %s21, 0
        %s579 = sadd.s32 %s578, %s576
        %s580 = smul.addr %s579, 4
        %s581 = scalar_lea.vmem %s4, %s580
      $region52: #{image_encoder_forward.15} parent=35 // pred_fallthru
        _
    $region36: #{image_encoder_forward.15} parent=5 // pred_fallthru
      _
    %p582 = scmp.le.s32.totalorder 2, %s10
    // Predicated region
    $region53: #{image_encoder_forward.15} parent=5 // pred_check
      %p583 = pneg %p582
    $region54: #{image_encoder_forward.15} parent=5 // pred_check_branch
      %585 = sbr.rel (%p583) target = $region56
    $region55: #{image_encoder_forward.15} parent=5 // pred_region
      %s586 = ssub.s32 %s10, 2
    $region56: #{image_encoder_forward.15} parent=5 // pred_fallthru
      _
  $region6: #{image_encoder_forward.15} parent=0 // loop_footer
    %s14 = sadd.s32 1, %s10
  $region7: #{image_encoder_forward.15} parent=0 // loop_footer_branch
    %9 = sbr.rel target = $region3
  $region8: #{image_encoder_forward.15} parent=0 // loop_exit
    _

// kernel: image_encoder_forward.13
$region0: #{image_encoder_forward.13}
  #allocation0 [shape = 'u32[]', space=smem, size = 0x4, offset = 0x4, fixed_abs, tag = 'smem constant byte address 0x4 - core index']
  #allocation1 [shape = 'u32[144,128]{1,0:T(1,128)}', space=vmem, size = 0x12000, scoped, tag = 'internal scratch']
  #allocation2 [shape = 'bf16[64,32]{1,0:T(16,128)(2,1)}', space=vmem, size = 0x4000, scoped, tag = 'scratch operand']
  %s0 = inlined_call_operand.vmem [shape: bf16[64,32], index: 0, kind: input, shape index: {}]
  %s1 = inlined_call_operand.vmem [shape: f32[1,32], index: 1, kind: input, shape index: {}]
  %s2 = inlined_call_operand.vmem [shape: f32[1,32], index: 2, kind: input, shape index: {}]
  %s3 = inlined_call_operand.vmem [shape: bf16[12,32,8], index: 3, kind: input, shape index: {}]
  %s4 = inlined_call_operand.vmem [shape: f32[12,1,8], index: 4, kind: input, shape index: {}]
  %s5 = inlined_call_operand.vmem [shape: bf16[12,64,8], index: 5, kind: output, shape index: {}]
  %s6 = sld [smem:[#allocation0]]
  $region57: #{image_encoder_forward.13} parent=0
    _
  %s8 = ssub.s32 1, %s6
  %s9 = scalar_select 0, %s8, %s6
  loop: start=0, step=1, limit=14
  $region2: #{image_encoder_forward.13} parent=0 // loop_pre_header
    _
  $region3: #{image_encoder_forward.13} parent=0 // loop_header
    %s11 = sphi 0, %s15
    %p12 = scmp.ge.s32.totalorder %s11, 14
    %s18 = sphi 0, %s30
    %s19 = sphi 0, %s26
    %s20 = sphi 0, %s18
    %s21 = sphi 0, %s19
    %s22 = sphi 0, %s20
    %s23 = sphi 0, %s21
    %s33 = sphi 0, %s35
    %s36 = sphi 0, %s33
    %s37 = sphi 0, %s36
    %s53 = sphi 0, %s37
    %s57 = sphi 0, %s57
    %s59 = sphi 0, %s57
    %s60 = sphi 0, %s59
    %s74 = sphi 0, %s60
    %s78 = sphi 0, %s78
    %s80 = sphi 0, %s78
    %s81 = sphi 0, %s80
    %s95 = sphi 0, %s81
    %s101 = sphi 0, %s103
    %s104 = sphi 0, %s101
    %s105 = sphi 0, %s104
    %s121 = sphi 0, %s105
    %s127 = sphi 0, %s129
    %s130 = sphi 0, %s127
    %s131 = sphi 0, %s130
    %s147 = sphi 0, %s131
    %s155 = sphi 0, %s157
    %s158 = sphi 0, %s155
    %s159 = sphi 0, %s158
    %s175 = sphi 0, %s159
  $region4: #{image_encoder_forward.13} parent=0 // loop_header_branch
    %14 = sbr.rel (%p12) target = $region8
  $region5: #{image_encoder_forward.13} parent=0 // loop_body
    %s16 = ssub.s32 %s11, 1
    %s17 = ssub.s32 %s11, 2
    %s24 = sadd.s32 1, %s19
    %p25 = scmp.ge.s32.totalorder %s24, 12
    %s26 = scalar_select %p25, 0, %s24
    %s27 = sadd.s32 1, %s18
    %s28 = scalar_select %p25, %s27, %s18
    %p29 = scmp.ge.s32.totalorder %s28, 1
    %s30 = scalar_select %p29, 0, %s28
    %s31 = ssub.s32 %s18, %s30
    %p32 = scmp.eq.s32.totalorder %s31, 0
    %s34 = sadd.s32 %s33, 1
    %s35 = scalar_select %p32, %s33, %s34
    %p38 = pneg %p32
    %p39 = scmp.eq.s32.totalorder %s11, 11
    %p40 = por %p38, %p39
    %p41 = scmp.ne.s32.totalorder %s33, %s36
    %p42 = scmp.eq.s32.totalorder %s11, 0
    %p43 = por %p41, %p42
    %p44 = scmp.ne.s32.totalorder %s33, %s36
    %p45 = scmp.eq.s32.totalorder %s16, 11
    %p46 = por %p44, %p45
    %p47 = scmp.ne.s32.totalorder %s36, %s37
    %p48 = scmp.eq.s32.totalorder %s16, 0
    %p49 = por %p47, %p48
    %p50 = scmp.ne.s32.totalorder %s36, %s37
    %p51 = scmp.eq.s32.totalorder %s17, 11
    %p52 = por %p50, %p51
    %p54 = scmp.ne.s32.totalorder %s37, %s53
    %p55 = scmp.eq.s32.totalorder %s17, 0
    %p56 = por %p54, %p55
    %s58 = sadd.s32 %s57, 1
    %p61 = scmp.eq.s32.totalorder %s11, 11
    %p62 = scmp.ne.s32.totalorder %s57, %s59
    %p63 = scmp.eq.s32.totalorder %s11, 0
    %p64 = por %p62, %p63
    %p65 = scmp.ne.s32.totalorder %s57, %s59
    %p66 = scmp.eq.s32.totalorder %s16, 11
    %p67 = por %p65, %p66
    %p68 = scmp.ne.s32.totalorder %s59, %s60
    %p69 = scmp.eq.s32.totalorder %s16, 0
    %p70 = por %p68, %p69
    %p71 = scmp.ne.s32.totalorder %s59, %s60
    %p72 = scmp.eq.s32.totalorder %s17, 11
    %p73 = por %p71, %p72
    %p75 = scmp.ne.s32.totalorder %s60, %s74
    %p76 = scmp.eq.s32.totalorder %s17, 0
    %p77 = por %p75, %p76
    %s79 = sadd.s32 %s78, 1
    %p82 = scmp.eq.s32.totalorder %s11, 11
    %p83 = scmp.ne.s32.totalorder %s78, %s80
    %p84 = scmp.eq.s32.totalorder %s11, 0
    %p85 = por %p83, %p84
    %p86 = scmp.ne.s32.totalorder %s78, %s80
    %p87 = scmp.eq.s32.totalorder %s16, 11
    %p88 = por %p86, %p87
    %p89 = scmp.ne.s32.totalorder %s80, %s81
    %p90 = scmp.eq.s32.totalorder %s16, 0
    %p91 = por %p89, %p90
    %p92 = scmp.ne.s32.totalorder %s80, %s81
    %p93 = scmp.eq.s32.totalorder %s17, 11
    %p94 = por %p92, %p93
    %p96 = scmp.ne.s32.totalorder %s81, %s95
    %p97 = scmp.eq.s32.totalorder %s17, 0
    %p98 = por %p96, %p97
    %s99 = ssub.s32 %s19, %s26
    %p100 = scmp.eq.s32.totalorder %s99, 0
    %s102 = sadd.s32 %s101, 1
    %s103 = scalar_select %p100, %s101, %s102
    %p106 = pneg %p100
    %p107 = scmp.eq.s32.totalorder %s11, 11
    %p108 = por %p106, %p107
    %p109 = scmp.ne.s32.totalorder %s101, %s104
    %p110 = scmp.eq.s32.totalorder %s11, 0
    %p111 = por %p109, %p110
    %p112 = scmp.ne.s32.totalorder %s101, %s104
    %p113 = scmp.eq.s32.totalorder %s16, 11
    %p114 = por %p112, %p113
    %p115 = scmp.ne.s32.totalorder %s104, %s105
    %p116 = scmp.eq.s32.totalorder %s16, 0
    %p117 = por %p115, %p116
    %p118 = scmp.ne.s32.totalorder %s104, %s105
    %p119 = scmp.eq.s32.totalorder %s17, 11
    %p120 = por %p118, %p119
    %p122 = scmp.ne.s32.totalorder %s105, %s121
    %p123 = scmp.eq.s32.totalorder %s17, 0
    %p124 = por %p122, %p123
    %s125 = ssub.s32 %s19, %s26
    %p126 = scmp.eq.s32.totalorder %s125, 0
    %s128 = sadd.s32 %s127, 1
    %s129 = scalar_select %p126, %s127, %s128
    %p132 = pneg %p126
    %p133 = scmp.eq.s32.totalorder %s11, 11
    %p134 = por %p132, %p133
    %p135 = scmp.ne.s32.totalorder %s127, %s130
    %p136 = scmp.eq.s32.totalorder %s11, 0
    %p137 = por %p135, %p136
    %p138 = scmp.ne.s32.totalorder %s127, %s130
    %p139 = scmp.eq.s32.totalorder %s16, 11
    %p140 = por %p138, %p139
    %p141 = scmp.ne.s32.totalorder %s130, %s131
    %p142 = scmp.eq.s32.totalorder %s16, 0
    %p143 = por %p141, %p142
    %p144 = scmp.ne.s32.totalorder %s130, %s131
    %p145 = scmp.eq.s32.totalorder %s17, 11
    %p146 = por %p144, %p145
    %p148 = scmp.ne.s32.totalorder %s131, %s147
    %p149 = scmp.eq.s32.totalorder %s17, 0
    %p150 = por %p148, %p149
    %s151 = ssub.s32 %s19, %s26
    %s152 = ssub.s32 %s18, %s30
    %s153 = sor.u32 %s151, %s152
    %p154 = scmp.eq.s32.totalorder %s153, 0
    %s156 = sadd.s32 %s155, 1
    %s157 = scalar_select %p154, %s155, %s156
    %p160 = pneg %p154
    %p161 = scmp.eq.s32.totalorder %s11, 11
    %p162 = por %p160, %p161
    %p163 = scmp.ne.s32.totalorder %s155, %s158
    %p164 = scmp.eq.s32.totalorder %s11, 0
    %p165 = por %p163, %p164
    %p166 = scmp.ne.s32.totalorder %s155, %s158
    %p167 = scmp.eq.s32.totalorder %s16, 11
    %p168 = por %p166, %p167
    %p169 = scmp.ne.s32.totalorder %s158, %s159
    %p170 = scmp.eq.s32.totalorder %s16, 0
    %p171 = por %p169, %p170
    %p172 = scmp.ne.s32.totalorder %s158, %s159
    %p173 = scmp.eq.s32.totalorder %s17, 11
    %p174 = por %p172, %p173
    %p176 = scmp.ne.s32.totalorder %s159, %s175
    %p177 = scmp.eq.s32.totalorder %s17, 0
    %p178 = por %p176, %p177
    %p179 = scmp.le.s32.totalorder 1, %s11
    %p180 = scmp.lt.s32.totalorder %s11, 13
    %p181 = pnand %p179, %p180
    %p182 = pneg %p181
    // Predicated region
    $region9: #{image_encoder_forward.13} parent=5 // pred_check
      _
    $region10: #{image_encoder_forward.13} parent=5 // pred_check_branch
      %184 = sbr.rel (%p181) target = $region12
    $region11: #{image_encoder_forward.13} parent=5 // pred_region
      %s185 = ssub.s32 %s11, 1
      // Predicated region
      $region13: #{image_encoder_forward.13} parent=11 // pred_check
        %p186 = pneg %p49
      $region14: #{image_encoder_forward.13} parent=11 // pred_check_branch
        %188 = sbr.rel (%p186) target = $region16
      $region15: #{image_encoder_forward.13} parent=11 // pred_region
        %s189 = smul.u32 8, %s20
        %p190 = scmp.lt.s32.totalorder %s189, 7
        %s191 = scalar_select %p190, %s189, 7
        %s192 = smul.addr %s191, 4
        %s193 = scalar_lea.vmem %s0, %s192
        %s194 = smul.u32 8, %s20
      $region16: #{image_encoder_forward.13} parent=11 // pred_fallthru
        _
      // Predicated region
      $region17: #{image_encoder_forward.13} parent=11 // pred_check
        %p195 = pneg %p70
      $region18: #{image_encoder_forward.13} parent=11 // pred_check_branch
        %197 = sbr.rel (%p195) target = $region20
      $region19: #{image_encoder_forward.13} parent=11 // pred_region
        _
      $region20: #{image_encoder_forward.13} parent=11 // pred_fallthru
        _
      // Predicated region
      $region21: #{image_encoder_forward.13} parent=11 // pred_check
        %p198 = pneg %p91
      $region22: #{image_encoder_forward.13} parent=11 // pred_check_branch
        %200 = sbr.rel (%p198) target = $region24
      $region23: #{image_encoder_forward.13} parent=11 // pred_region
        _
      $region24: #{image_encoder_forward.13} parent=11 // pred_fallthru
        _
    $region12: #{image_encoder_forward.13} parent=5 // pred_fallthru
      _
    %p201 = scmp.lt.s32.totalorder %s11, 12
    // Predicated region
    $region25: #{image_encoder_forward.13} parent=5 // pred_check
      %p202 = pneg %p201
    $region26: #{image_encoder_forward.13} parent=5 // pred_check_branch
      %204 = sbr.rel (%p202) target = $region28
    $region27: #{image_encoder_forward.13} parent=5 // pred_region
      // Predicated region
      $region29: #{image_encoder_forward.13} parent=27 // pred_check
        %p205 = pneg %p111
      $region30: #{image_encoder_forward.13} parent=27 // pred_check_branch
        %207 = sbr.rel (%p205) target = $region32
      $region31: #{image_encoder_forward.13} parent=27 // pred_region
        %p208 = scmp.lt.s32.totalorder %s19, 11
        %s209 = scalar_select %p208, %s19, 11
        %s210 = smul.addr %s209, 4
        %s211 = smul.addr %s210, 4
        %s212 = scalar_lea.vmem %s3, %s211
      $region32: #{image_encoder_forward.13} parent=27 // pred_fallthru
        _
      // Predicated region
      $region33: #{image_encoder_forward.13} parent=27 // pred_check
        %p213 = pneg %p137
      $region34: #{image_encoder_forward.13} parent=27 // pred_check_branch
        %215 = sbr.rel (%p213) target = $region36
      $region35: #{image_encoder_forward.13} parent=27 // pred_region
        %p216 = scmp.lt.s32.totalorder %s19, 11
        %s217 = scalar_select %p216, %s19, 11
        %s218 = scalar_lea.vmem %s4, %s217
      $region36: #{image_encoder_forward.13} parent=27 // pred_fallthru
        _
    $region28: #{image_encoder_forward.13} parent=5 // pred_fallthru
      _
    %p219 = scmp.le.s32.totalorder 1, %s11
    %p220 = scmp.lt.s32.totalorder %s11, 13
    %p221 = pnand %p219, %p220
    %p222 = pneg %p221
    // Predicated region
    $region37: #{image_encoder_forward.13} parent=5 // pred_check
      _
    $region38: #{image_encoder_forward.13} parent=5 // pred_check_branch
      %224 = sbr.rel (%p221) target = $region40
    $region39: #{image_encoder_forward.13} parent=5 // pred_region
      %s225 = ssub.s32 %s11, 1
      %s226 = smul.u32 8, %s20
      %p227 = scmp.lt.s32.totalorder %s226, 7
      %s228 = scalar_select %p227, %s226, 7
      %s229 = smul.addr %s228, 4
      %s230 = scalar_lea.vmem %s0, %s229
      %p231 = pneg %p49
      %p232 = pneg %p46
      %p233 = pneg %p70
      %p234 = pneg %p67
      %p235 = pneg %p91
      %p236 = pneg %p88
      %p237 = scmp.lt.s32.totalorder %s21, 11
      %s238 = scalar_select %p237, %s21, 11
      %s239 = smul.addr %s238, 4
      %s240 = smul.addr %s239, 4
      %s241 = scalar_lea.vmem %s3, %s240
      %p242 = pneg %p117
      %p243 = pneg %p114
      %p244 = scmp.lt.s32.totalorder %s21, 11
      %s245 = scalar_select %p244, %s21, 11
      %s246 = scalar_lea.vmem %s4, %s245
      %p247 = pneg %p143
      %p248 = pneg %p140
      %p249 = pneg %p171
      %p250 = pneg %p168
      %s251 = smul.u32 8, %s20
      %p252 = scmp.lt.s32.totalorder %s21, 11
      %s253 = scalar_select %p252, %s21, 11
      %p254 = scmp.lt.s32.totalorder %s251, 7
      %s255 = scalar_select %p254, %s251, 7
      %s256 = smul.addr %s253, 8
      %s257 = sadd.s32 %s255, %s256
      %s258 = smul.addr %s257, 4
      %s259 = scalar_lea.vmem %s5, %s258
      %s260 = smul.u32 8, %s20
      %p261 = scmp.lt.s32.totalorder %s260, 7
      %s262 = scalar_select %p261, %s260, 7
      %s263 = smul.addr %s262, 4
      %s264 = scalar_lea.vmem %s0, %s263
      %s265 = smul.u32 8, %s20
      %p266 = scmp.lt.s32.totalorder %s21, 11
      %s267 = scalar_select %p266, %s21, 11
      %s268 = smul.addr %s267, 4
      %s269 = smul.addr %s268, 4
      %s270 = scalar_lea.vmem %s3, %s269
      %p271 = scmp.lt.s32.totalorder %s21, 11
      %s272 = scalar_select %p271, %s21, 11
      %s273 = scalar_lea.vmem %s4, %s272
      %s274 = smul.u32 8, %s20
      %p275 = scmp.lt.s32.totalorder %s21, 11
      %s276 = scalar_select %p275, %s21, 11
      %p277 = scmp.lt.s32.totalorder %s274, 7
      %s278 = scalar_select %p277, %s274, 7
      %s279 = smul.addr %s276, 8
      %s280 = sadd.s32 %s278, %s279
      %s281 = smul.addr %s280, 4
      %s282 = scalar_lea.vmem %s5, %s281
      %s283 = smul.u32 8, %s20
      %p285 = scmp.eq.s32.totalorder %s21, 0
      // Predicated region
      $region41: #{image_encoder_forward.13} parent=39 // pred_check
        %p286 = pneg %p285
      $region42: #{image_encoder_forward.13} parent=39 // pred_check_branch
        %288 = sbr.rel (%p286) target = $region44
      $region43: #{image_encoder_forward.13} parent=39 // pred_region
        %v289 = vld [vmem:[%s264] sm:$0xf]
        %v290 = vld [vmem:[%s264 + $0x4] sm:$0xf]
        %v291 = vld [vmem:[%s264 + $0x8] sm:$0xf]
        %v292 = vld [vmem:[%s264 + $0xc] sm:$0xf]
        %v293 = vld [vmem:[%s264 + $0x10] sm:$0xf]
        %v294 = vld [vmem:[%s264 + $0x14] sm:$0xf]
        %v295 = vld [vmem:[%s264 + $0x18] sm:$0xf]
        %v296 = vld [vmem:[%s264 + $0x1c] sm:$0xf]
        %v297 = vld [vmem:[%s1] sm:$0x1]
        %v298 = vld [vmem:[%s2] sm:$0x1]
        %v299 = vunpack.c.l.bf16 %v289
        %v300 = vunpack.c.l.bf16 %v290
        %v301 = vunpack.c.l.bf16 %v291
        %v302 = vunpack.c.l.bf16 %v292
        %v303 = vunpack.c.l.bf16 %v293
        %v304 = vunpack.c.l.bf16 %v294
        %v305 = vunpack.c.l.bf16 %v295
        %v306 = vunpack.c.l.bf16 %v296
        %vm307 = vcmask 261120
        %v308 = vsel %vm307, %v299, 0.0
        %309 = vadd.xlane.f32.xlu0 %v308
        %v310 = vpop.xlane.xlu0 %309
        %v311 = vsel %vm307, %v300, 0.0
        %312 = vadd.xlane.f32.xlu0 %v311
        %v313 = vpop.xlane.xlu0 %312
        %v314 = vsel %vm307, %v301, 0.0
        %315 = vadd.xlane.f32.xlu0 %v314
        %v316 = vpop.xlane.xlu0 %315
        %v317 = vsel %vm307, %v302, 0.0
        %318 = vadd.xlane.f32.xlu0 %v317
        %v319 = vpop.xlane.xlu0 %318
        %v320 = vsel %vm307, %v303, 0.0
        %321 = vadd.xlane.f32.xlu0 %v320
        %v322 = vpop.xlane.xlu0 %321
        %v323 = vsel %vm307, %v304, 0.0
        %324 = vadd.xlane.f32.xlu0 %v323
        %v325 = vpop.xlane.xlu0 %324
        %v326 = vsel %vm307, %v305, 0.0
        %327 = vadd.xlane.f32.xlu0 %v326
        %v328 = vpop.xlane.xlu0 %327
        %v329 = vsel %vm307, %v306, 0.0
        %330 = vadd.xlane.f32.xlu0 %v329
        %v331 = vpop.xlane.xlu0 %330
        %v332 = vrcp.pop 32.0
        %v333 = vmul.f32 %v310, %v332
        %v334 = vmul.f32 %v313, %v332
        %v335 = vmul.f32 %v316, %v332
        %v336 = vmul.f32 %v319, %v332
        %v337 = vmul.f32 %v322, %v332
        %v338 = vmul.f32 %v325, %v332
        %v339 = vmul.f32 %v328, %v332
        %v340 = vmul.f32 %v331, %v332
        %v341 = vsub.f32 %v299, %v333
        %v342 = vsub.f32 %v300, %v334
        %v343 = vsub.f32 %v301, %v335
        %v344 = vsub.f32 %v302, %v336
        %v345 = vsub.f32 %v303, %v337
        %v346 = vsub.f32 %v304, %v338
        %v347 = vsub.f32 %v305, %v339
        %v348 = vsub.f32 %v306, %v340
        %v349 = vmul.f32 %v341, %v341
        %v350 = vmul.f32 %v342, %v342
        %v351 = vmul.f32 %v343, %v343
        %v352 = vmul.f32 %v344, %v344
        %v353 = vmul.f32 %v345, %v345
        %v354 = vmul.f32 %v346, %v346
        %v355 = vmul.f32 %v347, %v347
        %v356 = vmul.f32 %v348, %v348
        %v357 = vsel %vm307, %v349, 0.0
        %358 = vadd.xlane.f32.xlu0 %v357
        %v359 = vpop.xlane.xlu0 %358
        %v360 = vsel %vm307, %v350, 0.0
        %361 = vadd.xlane.f32.xlu0 %v360
        %v362 = vpop.xlane.xlu0 %361
        %v363 = vsel %vm307, %v351, 0.0
        %364 = vadd.xlane.f32.xlu0 %v363
        %v365 = vpop.xlane.xlu0 %364
        %v366 = vsel %vm307, %v352, 0.0
        %367 = vadd.xlane.f32.xlu0 %v366
        %v368 = vpop.xlane.xlu0 %367
        %v369 = vsel %vm307, %v353, 0.0
        %370 = vadd.xlane.f32.xlu0 %v369
        %v371 = vpop.xlane.xlu0 %370
        %v372 = vsel %vm307, %v354, 0.0
        %373 = vadd.xlane.f32.xlu0 %v372
        %v374 = vpop.xlane.xlu0 %373
        %v375 = vsel %vm307, %v355, 0.0
        %376 = vadd.xlane.f32.xlu0 %v375
        %v377 = vpop.xlane.xlu0 %376
        %v378 = vsel %vm307, %v356, 0.0
        %379 = vadd.xlane.f32.xlu0 %v378
        %v380 = vpop.xlane.xlu0 %379
        %v381 = vmul.f32 %v359, %v332
        %v382 = vmul.f32 %v362, %v332
        %v383 = vmul.f32 %v365, %v332
        %v384 = vmul.f32 %v368, %v332
        %v385 = vmul.f32 %v371, %v332
        %v386 = vmul.f32 %v374, %v332
        %v387 = vmul.f32 %v377, %v332
        %v388 = vmul.f32 %v380, %v332
        %v389 = vadd.f32 %v381, 1e-05
        %v390 = vadd.f32 %v382, 1e-05
        %v391 = vadd.f32 %v383, 1e-05
        %v392 = vadd.f32 %v384, 1e-05
        %v393 = vadd.f32 %v385, 1e-05
        %v394 = vadd.f32 %v386, 1e-05
        %v395 = vadd.f32 %v387, 1e-05
        %v396 = vadd.f32 %v388, 1e-05
        %v397 = vrsqrt.pop %v389
        %v398 = vrsqrt.pop %v390
        %v399 = vrsqrt.pop %v391
        %v400 = vrsqrt.pop %v392
        %v401 = vrsqrt.pop %v393
        %v402 = vrsqrt.pop %v394
        %v403 = vrsqrt.pop %v395
        %v404 = vrsqrt.pop %v396
        %v405 = vmul.f32 %v341, %v397
        %v406 = vmul.f32 %v342, %v398
        %v407 = vmul.f32 %v343, %v399
        %v408 = vmul.f32 %v344, %v400
        %v409 = vmul.f32 %v345, %v401
        %v410 = vmul.f32 %v346, %v402
        %v411 = vmul.f32 %v347, %v403
        %v412 = vmul.f32 %v348, %v404
        %v414 = vlaneseq
        %v415 = vshrl.u32 %v414, 7
        %v416 = vsub.s32 0, %v415
        %v417 = vrot.slane %v297, %v416
        %v419 = vmul.f32 %v405, %v417
        %v420 = vmul.f32 %v406, %v417
        %v421 = vmul.f32 %v407, %v417
        %v422 = vmul.f32 %v408, %v417
        %v423 = vmul.f32 %v409, %v417
        %v424 = vmul.f32 %v410, %v417
        %v425 = vmul.f32 %v411, %v417
        %v426 = vmul.f32 %v412, %v417
        %v428 = vlaneseq
        %v429 = vshrl.u32 %v428, 7
        %v430 = vsub.s32 0, %v429
        %v431 = vrot.slane %v298, %v430
        %v433 = vadd.f32 %v419, %v431
        %v434 = vadd.f32 %v420, %v431
        %v435 = vadd.f32 %v421, %v431
        %v436 = vadd.f32 %v422, %v431
        %v437 = vadd.f32 %v423, %v431
        %v438 = vadd.f32 %v424, %v431
        %v439 = vadd.f32 %v425, %v431
        %v440 = vadd.f32 %v426, %v431
        %v441 = vpack.c.bf16 %v434, %v433
        %v442 = vpack.c.bf16 %v436, %v435
        %v443 = vpack.c.bf16 %v438, %v437
        %v444 = vpack.c.bf16 %v440, %v439
        %445 = vst.msk [vmem:[#allocation2] sm:$0xff] %vm307, %v441
        %446 = vst.msk [vmem:[#allocation2 + $0x8] sm:$0xff] %vm307, %v442
        %447 = vst.msk [vmem:[#allocation2 + $0x10] sm:$0xff] %vm307, %v443
        %448 = vst.msk [vmem:[#allocation2 + $0x18] sm:$0xff] %vm307, %v444
      $region44: #{image_encoder_forward.13} parent=39 // pred_fallthru
        _
      %v449 = vld [vmem:[#allocation2] sm:$0xff]
      %v450 = vld [vmem:[#allocation2 + $0x8] sm:$0xff]
      %v451 = vld [vmem:[#allocation2 + $0x10] sm:$0xff]
      %v452 = vld [vmem:[#allocation2 + $0x18] sm:$0xff]
      %v453 = vld [vmem:[%s270] sm:$0xf]
      %v454 = vld [vmem:[%s270 + $0x4] sm:$0xf]
      %v455 = vld [vmem:[%s270 + $0x8] sm:$0xf]
      %v456 = vld [vmem:[%s270 + $0xc] sm:$0xf]
      %v457 = vld [vmem:[%s273] sm:$0x1]
      %v459 = vlaneseq
      %v460 = vshrl.u32 %v459, 7
      %v461 = vsub.s32 0, %v460
      %v462 = vrot.slane %v457, %v461
      %v468 = vunpack.c.l.b16 %v453
      %v469 = vunpack.c.l.b16 %v454
      %v470 = vunpack.c.l.b16 %v455
      %v471 = vunpack.c.l.b16 %v456
      %v472 = vpack.c.b16 %v469, %v468
      %v473 = vpack.c.b16 %v471, %v470
      %vm476 = vcmask 261120
      %v478 = vsel %vm476, %v449, 0
      %v481 = vsel %vm476, %v450, 0
      %v484 = vsel %vm476, %v451, 0
      %v487 = vsel %vm476, %v452, 0
      %489 = vmatprep.subr.bf16.mxu0 0
      %490 = vmatpush1.bf16.msra.mxu0 %v472
      %491 = vmatprep.subr.bf16.mxu0 0
      %492 = vmatpush1.bf16.msra.mxu0 %v473
      %493 = vmatprep.subr.bf16.mxu0 0
      %494 = vmatpush1.bf16.msra.mxu0 0
      %495 = vmatprep.subr.bf16.mxu0 0
      %496 = vmatpush1.bf16.msra.mxu0 0
      %497 = vmatprep.subr.bf16.mxu0 0
      %498 = vmatpush1.bf16.msra.mxu0 0
      %499 = vmatprep.subr.bf16.mxu0 0
      %500 = vmatpush1.bf16.msra.mxu0 0
      %501 = vmatprep.subr.bf16.mxu0 0
      %502 = vmatpush1.bf16.msra.mxu0 0
      %503 = vmatprep.subr.bf16.mxu0 0
      %504 = vmatpush1.bf16.msra.mxu0 0
      %505 = vmatprep.subr.bf16.mxu0 0
      %506 = vmatpush1.bf16.msra.mxu0 0
      %507 = vmatprep.subr.bf16.mxu0 0
      %508 = vmatpush1.bf16.msra.mxu0 0
      %509 = vmatprep.subr.bf16.mxu0 0
      %510 = vmatpush1.bf16.msra.mxu0 0
      %511 = vmatprep.subr.bf16.mxu0 0
      %512 = vmatpush1.bf16.msra.mxu0 0
      %513 = vmatprep.subr.bf16.mxu0 0
      %514 = vmatpush1.bf16.msra.mxu0 0
      %515 = vmatprep.subr.bf16.mxu0 0
      %516 = vmatpush1.bf16.msra.mxu0 0
      %517 = vmatprep.subr.bf16.mxu0 0
      %518 = vmatpush1.bf16.msra.mxu0 0
      %519 = vmatprep.subr.bf16.mxu0 0
      %520 = vmatpush1.bf16.msra.mxu0 0
      %521 = vmatprep.mubr.bf16.mxu0 0
      %522 = vmatmul.mubr.bf16.gmra.mrb[0].mxu0 %v478
      %v523 = vpop.f32.mrb[0].mxu0
      %v524 = vadd.f32 %v462, %v523
      %v525 = vpop.f32.mrb[0].mxu0
      %v526 = vpop.f32.mrb[0].mxu0
      %v527 = vadd.f32 %v462, %v526
      %v528 = vpop.f32.mrb[0].mxu0
      %529 = vmatprep.mubr.bf16.mxu0 0
      %530 = vmatmul.mubr.bf16.gmra.mrb[0].mxu0 %v481
      %v531 = vpop.f32.mrb[0].mxu0
      %v532 = vadd.f32 %v462, %v531
      %v533 = vpop.f32.mrb[0].mxu0
      %v534 = vpop.f32.mrb[0].mxu0
      %v535 = vadd.f32 %v462, %v534
      %v536 = vpop.f32.mrb[0].mxu0
      %537 = vmatprep.mubr.bf16.mxu0 0
      %538 = vmatmul.mubr.bf16.gmra.mrb[0].mxu0 %v484
      %v539 = vpop.f32.mrb[0].mxu0
      %v540 = vadd.f32 %v462, %v539
      %v541 = vpop.f32.mrb[0].mxu0
      %v542 = vpop.f32.mrb[0].mxu0
      %v543 = vadd.f32 %v462, %v542
      %v544 = vpop.f32.mrb[0].mxu0
      %545 = vmatprep.mubr.bf16.mxu0 0
      %546 = vmatmul.mubr.bf16.gmra.mrb[0].mxu0 %v487
      %v547 = vpop.f32.mrb[0].mxu0
      %v548 = vadd.f32 %v462, %v547
      %v549 = vpop.f32.mrb[0].mxu0
      %v550 = vpop.f32.mrb[0].mxu0
      %v551 = vadd.f32 %v462, %v550
      %v552 = vpop.f32.mrb[0].mxu0
      %553 = vdwg.mxu0
      %v554 = vpack.c.bf16 %v527, %v524
      %v555 = vpack.c.bf16 %v535, %v532
      %v556 = vpack.c.bf16 %v543, %v540
      %v557 = vpack.c.bf16 %v551, %v548
      %v562 = vunpack.c.l.b16 %v554
      %v563 = vunpack.c.h.b16 %v554
      %v564 = vunpack.c.l.b16 %v555
      %v565 = vunpack.c.h.b16 %v555
      %v566 = vunpack.c.l.b16 %v556
      %v567 = vunpack.c.h.b16 %v556
      %v568 = vunpack.c.l.b16 %v557
      %v569 = vunpack.c.h.b16 %v557
      %v570 = vpack.c.b16 %v562, %v562
      %v571 = vpack.c.b16 %v563, %v563
      %v572 = vpack.c.b16 %v564, %v564
      %v573 = vpack.c.b16 %v565, %v565
      %v574 = vpack.c.b16 %v566, %v566
      %v575 = vpack.c.b16 %v567, %v567
      %v576 = vpack.c.b16 %v568, %v568
      %v577 = vpack.c.b16 %v569, %v569
      %vm586 = vcmask 60416
      %587 = vst.msk [vmem:[%s282] sm:$0xf] %vm586, %v570
      %588 = vst.msk [vmem:[%s282 + $0x4] sm:$0xf] %vm586, %v571
      %589 = vst.msk [vmem:[%s282 + $0x8] sm:$0xf] %vm586, %v572
      %590 = vst.msk [vmem:[%s282 + $0xc] sm:$0xf] %vm586, %v573
      %591 = vst.msk [vmem:[%s282 + $0x10] sm:$0xf] %vm586, %v574
      %592 = vst.msk [vmem:[%s282 + $0x14] sm:$0xf] %vm586, %v575
      %593 = vst.msk [vmem:[%s282 + $0x18] sm:$0xf] %vm586, %v576
      %594 = vst.msk [vmem:[%s282 + $0x1c] sm:$0xf] %vm586, %v577
      %s595 = smul.u32 8, %s20
      %p596 = scmp.lt.s32.totalorder %s21, 11
      %s597 = scalar_select %p596, %s21, 11
      %p598 = scmp.lt.s32.totalorder %s595, 7
      %s599 = scalar_select %p598, %s595, 7
      %s600 = smul.addr %s597, 8
      %s601 = sadd.s32 %s599, %s600
      %s602 = smul.addr %s601, 4
      %s603 = scalar_lea.vmem %s5, %s602
      // Predicated region
      $region45: #{image_encoder_forward.13} parent=39 // pred_check
        %p604 = pneg %p168
      $region46: #{image_encoder_forward.13} parent=39 // pred_check_branch
        %606 = sbr.rel (%p604) target = $region48
      $region47: #{image_encoder_forward.13} parent=39 // pred_region
        %s607 = smul.u32 8, %s20
      $region48: #{image_encoder_forward.13} parent=39 // pred_fallthru
        _
    $region40: #{image_encoder_forward.13} parent=5 // pred_fallthru
      _
    %p608 = scmp.le.s32.totalorder 2, %s11
    // Predicated region
    $region49: #{image_encoder_forward.13} parent=5 // pred_check
      %p609 = pneg %p608
    $region50: #{image_encoder_forward.13} parent=5 // pred_check_branch
      %611 = sbr.rel (%p609) target = $region52
    $region51: #{image_encoder_forward.13} parent=5 // pred_region
      %s612 = ssub.s32 %s11, 2
      // Predicated region
      $region53: #{image_encoder_forward.13} parent=51 // pred_check
        %p613 = pneg %p174
      $region54: #{image_encoder_forward.13} parent=51 // pred_check_branch
        %615 = sbr.rel (%p613) target = $region56
      $region55: #{image_encoder_forward.13} parent=51 // pred_region
        %s616 = smul.u32 8, %s22
        %p617 = scmp.lt.s32.totalorder %s23, 11
        %s618 = scalar_select %p617, %s23, 11
        %p619 = scmp.lt.s32.totalorder %s616, 7
        %s620 = scalar_select %p619, %s616, 7
        %s621 = smul.addr %s618, 8
        %s622 = sadd.s32 %s620, %s621
        %s623 = smul.addr %s622, 4
        %s624 = scalar_lea.vmem %s5, %s623
      $region56: #{image_encoder_forward.13} parent=51 // pred_fallthru
        _
    $region52: #{image_encoder_forward.13} parent=5 // pred_fallthru
      _
  $region6: #{image_encoder_forward.13} parent=0 // loop_footer
    %s15 = sadd.s32 1, %s11
  $region7: #{image_encoder_forward.13} parent=0 // loop_footer_branch
    %10 = sbr.rel target = $region3
  $region8: #{image_encoder_forward.13} parent=0 // loop_exit
    _

// kernel: image_encoder_forward.14
$region0: #{image_encoder_forward.14}
  #allocation0 [shape = 'u32[]', space=smem, size = 0x4, offset = 0x4, fixed_abs, tag = 'smem constant byte address 0x4 - core index']
  #allocation1 [shape = 'u32[144,128]{1,0:T(1,128)}', space=vmem, size = 0x12000, scoped, tag = 'internal scratch']
  %s0 = inlined_call_operand.vmem [shape: bf16[12,2,32,8], index: 0, kind: input, shape index: {}, may-alias: {0,1,2}]
  %s1 = inlined_call_operand.vmem [shape: bf16[12,2,32,8], index: 1, kind: input, shape index: {}, may-alias: {0,1,2}]
  %s2 = inlined_call_operand.vmem [shape: bf16[12,2,32,8], index: 2, kind: input, shape index: {}, may-alias: {0,1,2}]
  %s3 = inlined_call_operand.vmem [shape: bf16[4,2,32,8], index: 3, kind: output, shape index: {}]
  %s4 = sld [smem:[#allocation0]]
  $region45: #{image_encoder_forward.14} parent=0
    _
  %s6 = ssub.s32 1, %s4
  %s7 = scalar_select 0, %s6, %s4
  loop: start=0, step=1, limit=10
  $region2: #{image_encoder_forward.14} parent=0 // loop_pre_header
    _
  $region3: #{image_encoder_forward.14} parent=0 // loop_header
    %s9 = sphi 0, %s13
    %p10 = scmp.ge.s32.totalorder %s9, 10
    %s16 = sphi 0, %s28
    %s17 = sphi 0, %s24
    %s18 = sphi 0, %s16
    %s19 = sphi 0, %s17
    %s20 = sphi 0, %s18
    %s21 = sphi 0, %s19
    %s33 = sphi 0, %s35
    %s36 = sphi 0, %s33
    %s37 = sphi 0, %s36
    %s53 = sphi 0, %s37
    %s63 = sphi 0, %s65
    %s66 = sphi 0, %s63
    %s67 = sphi 0, %s66
    %s83 = sphi 0, %s67
    %s93 = sphi 0, %s95
    %s96 = sphi 0, %s93
    %s97 = sphi 0, %s96
    %s113 = sphi 0, %s97
    %s121 = sphi 0, %s123
    %s124 = sphi 0, %s121
    %s125 = sphi 0, %s124
    %s141 = sphi 0, %s125
  $region4: #{image_encoder_forward.14} parent=0 // loop_header_branch
    %12 = sbr.rel (%p10) target = $region8
  $region5: #{image_encoder_forward.14} parent=0 // loop_body
    %s14 = ssub.s32 %s9, 1
    %s15 = ssub.s32 %s9, 2
    %s22 = sadd.s32 1, %s17
    %p23 = scmp.ge.s32.totalorder %s22, 4
    %s24 = scalar_select %p23, 0, %s22
    %s25 = sadd.s32 1, %s16
    %s26 = scalar_select %p23, %s25, %s16
    %p27 = scmp.ge.s32.totalorder %s26, 2
    %s28 = scalar_select %p27, 0, %s26
    %s29 = ssub.s32 %s17, %s24
    %s30 = ssub.s32 %s16, %s28
    %s31 = sor.u32 %s29, %s30
    %p32 = scmp.eq.s32.totalorder %s31, 0
    %s34 = sadd.s32 %s33, 1
    %s35 = scalar_select %p32, %s33, %s34
    %p38 = pneg %p32
    %p39 = scmp.eq.s32.totalorder %s9, 7
    %p40 = por %p38, %p39
    %p41 = scmp.ne.s32.totalorder %s33, %s36
    %p42 = scmp.eq.s32.totalorder %s9, 0
    %p43 = por %p41, %p42
    %p44 = scmp.ne.s32.totalorder %s33, %s36
    %p45 = scmp.eq.s32.totalorder %s14, 7
    %p46 = por %p44, %p45
    %p47 = scmp.ne.s32.totalorder %s36, %s37
    %p48 = scmp.eq.s32.totalorder %s14, 0
    %p49 = por %p47, %p48
    %p50 = scmp.ne.s32.totalorder %s36, %s37
    %p51 = scmp.eq.s32.totalorder %s15, 7
    %p52 = por %p50, %p51
    %p54 = scmp.ne.s32.totalorder %s37, %s53
    %p55 = scmp.eq.s32.totalorder %s15, 0
    %p56 = por %p54, %p55
    %s57 = sadd.s32 %s17, 4
    %s58 = sadd.s32 %s24, 4
    %s59 = ssub.s32 %s57, %s58
    %s60 = ssub.s32 %s16, %s28
    %s61 = sor.u32 %s59, %s60
    %p62 = scmp.eq.s32.totalorder %s61, 0
    %s64 = sadd.s32 %s63, 1
    %s65 = scalar_select %p62, %s63, %s64
    %p68 = pneg %p62
    %p69 = scmp.eq.s32.totalorder %s9, 7
    %p70 = por %p68, %p69
    %p71 = scmp.ne.s32.totalorder %s63, %s66
    %p72 = scmp.eq.s32.totalorder %s9, 0
    %p73 = por %p71, %p72
    %p74 = scmp.ne.s32.totalorder %s63, %s66
    %p75 = scmp.eq.s32.totalorder %s14, 7
    %p76 = por %p74, %p75
    %p77 = scmp.ne.s32.totalorder %s66, %s67
    %p78 = scmp.eq.s32.totalorder %s14, 0
    %p79 = por %p77, %p78
    %p80 = scmp.ne.s32.totalorder %s66, %s67
    %p81 = scmp.eq.s32.totalorder %s15, 7
    %p82 = por %p80, %p81
    %p84 = scmp.ne.s32.totalorder %s67, %s83
    %p85 = scmp.eq.s32.totalorder %s15, 0
    %p86 = por %p84, %p85
    %s87 = sadd.s32 %s17, 8
    %s88 = sadd.s32 %s24, 8
    %s89 = ssub.s32 %s87, %s88
    %s90 = ssub.s32 %s16, %s28
    %s91 = sor.u32 %s89, %s90
    %p92 = scmp.eq.s32.totalorder %s91, 0
    %s94 = sadd.s32 %s93, 1
    %s95 = scalar_select %p92, %s93, %s94
    %p98 = pneg %p92
    %p99 = scmp.eq.s32.totalorder %s9, 7
    %p100 = por %p98, %p99
    %p101 = scmp.ne.s32.totalorder %s93, %s96
    %p102 = scmp.eq.s32.totalorder %s9, 0
    %p103 = por %p101, %p102
    %p104 = scmp.ne.s32.totalorder %s93, %s96
    %p105 = scmp.eq.s32.totalorder %s14, 7
    %p106 = por %p104, %p105
    %p107 = scmp.ne.s32.totalorder %s96, %s97
    %p108 = scmp.eq.s32.totalorder %s14, 0
    %p109 = por %p107, %p108
    %p110 = scmp.ne.s32.totalorder %s96, %s97
    %p111 = scmp.eq.s32.totalorder %s15, 7
    %p112 = por %p110, %p111
    %p114 = scmp.ne.s32.totalorder %s97, %s113
    %p115 = scmp.eq.s32.totalorder %s15, 0
    %p116 = por %p114, %p115
    %s117 = ssub.s32 %s17, %s24
    %s118 = ssub.s32 %s16, %s28
    %s119 = sor.u32 %s117, %s118
    %p120 = scmp.eq.s32.totalorder %s119, 0
    %s122 = sadd.s32 %s121, 1
    %s123 = scalar_select %p120, %s121, %s122
    %p126 = pneg %p120
    %p127 = scmp.eq.s32.totalorder %s9, 7
    %p128 = por %p126, %p127
    %p129 = scmp.ne.s32.totalorder %s121, %s124
    %p130 = scmp.eq.s32.totalorder %s9, 0
    %p131 = por %p129, %p130
    %p132 = scmp.ne.s32.totalorder %s121, %s124
    %p133 = scmp.eq.s32.totalorder %s14, 7
    %p134 = por %p132, %p133
    %p135 = scmp.ne.s32.totalorder %s124, %s125
    %p136 = scmp.eq.s32.totalorder %s14, 0
    %p137 = por %p135, %p136
    %p138 = scmp.ne.s32.totalorder %s124, %s125
    %p139 = scmp.eq.s32.totalorder %s15, 7
    %p140 = por %p138, %p139
    %p142 = scmp.ne.s32.totalorder %s125, %s141
    %p143 = scmp.eq.s32.totalorder %s15, 0
    %p144 = por %p142, %p143
    %p145 = scmp.le.s32.totalorder 1, %s9
    %p146 = scmp.lt.s32.totalorder %s9, 9
    %p147 = pnand %p145, %p146
    %p148 = pneg %p147
    // Predicated region
    $region9: #{image_encoder_forward.14} parent=5 // pred_check
      _
    $region10: #{image_encoder_forward.14} parent=5 // pred_check_branch
      %150 = sbr.rel (%p147) target = $region12
    $region11: #{image_encoder_forward.14} parent=5 // pred_region
      %s151 = ssub.s32 %s9, 1
    $region12: #{image_encoder_forward.14} parent=5 // pred_fallthru
      _
    %p152 = scmp.lt.s32.totalorder %s9, 8
    // Predicated region
    $region13: #{image_encoder_forward.14} parent=5 // pred_check
      %p153 = pneg %p152
    $region14: #{image_encoder_forward.14} parent=5 // pred_check_branch
      %155 = sbr.rel (%p153) target = $region16
    $region15: #{image_encoder_forward.14} parent=5 // pred_region
      // Predicated region
      $region17: #{image_encoder_forward.14} parent=15 // pred_check
        %p156 = pneg %p43
      $region18: #{image_encoder_forward.14} parent=15 // pred_check_branch
        %158 = sbr.rel (%p156) target = $region20
      $region19: #{image_encoder_forward.14} parent=15 // pred_region
        %p159 = scmp.lt.s32.totalorder %s17, 11
        %s160 = scalar_select %p159, %s17, 11
        %p161 = scmp.lt.s32.totalorder %s16, 1
        %s162 = scalar_select %p161, %s16, 1
        %s163 = smul.addr %s162, 4
        %s164 = smul.addr %s160, 8
        %s165 = sadd.s32 %s163, %s164
        %s166 = smul.addr %s165, 4
        %s167 = scalar_lea.vmem %s0, %s166
      $region20: #{image_encoder_forward.14} parent=15 // pred_fallthru
        _
      // Predicated region
      $region21: #{image_encoder_forward.14} parent=15 // pred_check
        %p168 = pneg %p73
      $region22: #{image_encoder_forward.14} parent=15 // pred_check_branch
        %170 = sbr.rel (%p168) target = $region24
      $region23: #{image_encoder_forward.14} parent=15 // pred_region
        %s171 = sadd.s32 %s17, 4
        %p172 = scmp.lt.s32.totalorder %s171, 11
        %s173 = scalar_select %p172, %s171, 11
        %p174 = scmp.lt.s32.totalorder %s16, 1
        %s175 = scalar_select %p174, %s16, 1
        %s176 = smul.addr %s175, 4
        %s177 = smul.addr %s173, 8
        %s178 = sadd.s32 %s176, %s177
        %s179 = smul.addr %s178, 4
        %s180 = scalar_lea.vmem %s1, %s179
        %s181 = sadd.s32 %s17, 4
      $region24: #{image_encoder_forward.14} parent=15 // pred_fallthru
        _
      // Predicated region
      $region25: #{image_encoder_forward.14} parent=15 // pred_check
        %p182 = pneg %p103
      $region26: #{image_encoder_forward.14} parent=15 // pred_check_branch
        %184 = sbr.rel (%p182) target = $region28
      $region27: #{image_encoder_forward.14} parent=15 // pred_region
        %s185 = sadd.s32 %s17, 8
        %p186 = scmp.lt.s32.totalorder %s185, 11
        %s187 = scalar_select %p186, %s185, 11
        %p188 = scmp.lt.s32.totalorder %s16, 1
        %s189 = scalar_select %p188, %s16, 1
        %s190 = smul.addr %s189, 4
        %s191 = smul.addr %s187, 8
        %s192 = sadd.s32 %s190, %s191
        %s193 = smul.addr %s192, 4
        %s194 = scalar_lea.vmem %s2, %s193
        %s195 = sadd.s32 %s17, 8
      $region28: #{image_encoder_forward.14} parent=15 // pred_fallthru
        _
    $region16: #{image_encoder_forward.14} parent=5 // pred_fallthru
      _
    %p196 = scmp.le.s32.totalorder 1, %s9
    %p197 = scmp.lt.s32.totalorder %s9, 9
    %p198 = pnand %p196, %p197
    %p199 = pneg %p198
    // Predicated region
    $region29: #{image_encoder_forward.14} parent=5 // pred_check
      _
    $region30: #{image_encoder_forward.14} parent=5 // pred_check_branch
      %201 = sbr.rel (%p198) target = $region32
    $region31: #{image_encoder_forward.14} parent=5 // pred_region
      %s202 = ssub.s32 %s9, 1
      %p203 = scmp.lt.s32.totalorder %s19, 11
      %s204 = scalar_select %p203, %s19, 11
      %p205 = scmp.lt.s32.totalorder %s18, 1
      %s206 = scalar_select %p205, %s18, 1
      %s207 = smul.addr %s206, 4
      %s208 = smul.addr %s204, 8
      %s209 = sadd.s32 %s207, %s208
      %s210 = smul.addr %s209, 4
      %s211 = scalar_lea.vmem %s0, %s210
      %p212 = pneg %p49
      %p213 = pneg %p46
      %s214 = sadd.s32 %s19, 4
      %p215 = scmp.lt.s32.totalorder %s214, 11
      %s216 = scalar_select %p215, %s214, 11
      %p217 = scmp.lt.s32.totalorder %s18, 1
      %s218 = scalar_select %p217, %s18, 1
      %s219 = smul.addr %s218, 4
      %s220 = smul.addr %s216, 8
      %s221 = sadd.s32 %s219, %s220
      %s222 = smul.addr %s221, 4
      %s223 = scalar_lea.vmem %s1, %s222
      %p224 = pneg %p79
      %p225 = pneg %p76
      %s226 = sadd.s32 %s19, 8
      %p227 = scmp.lt.s32.totalorder %s226, 11
      %s228 = scalar_select %p227, %s226, 11
      %p229 = scmp.lt.s32.totalorder %s18, 1
      %s230 = scalar_select %p229, %s18, 1
      %s231 = smul.addr %s230, 4
      %s232 = smul.addr %s228, 8
      %s233 = sadd.s32 %s231, %s232
      %s234 = smul.addr %s233, 4
      %s235 = scalar_lea.vmem %s2, %s234
      %p236 = pneg %p109
      %p237 = pneg %p106
      %p238 = pneg %p137
      %p239 = pneg %p134
      %p240 = scmp.lt.s32.totalorder %s19, 3
      %s241 = scalar_select %p240, %s19, 3
      %p242 = scmp.lt.s32.totalorder %s18, 1
      %s243 = scalar_select %p242, %s18, 1
      %s244 = smul.addr %s243, 4
      %s245 = smul.addr %s241, 8
      %s246 = sadd.s32 %s244, %s245
      %s247 = smul.addr %s246, 4
      %s248 = scalar_lea.vmem %s3, %s247
      %p249 = scmp.lt.s32.totalorder %s19, 11
      %s250 = scalar_select %p249, %s19, 11
      %p251 = scmp.lt.s32.totalorder %s18, 1
      %s252 = scalar_select %p251, %s18, 1
      %s253 = smul.addr %s252, 4
      %s254 = smul.addr %s250, 8
      %s255 = sadd.s32 %s253, %s254
      %s256 = smul.addr %s255, 4
      %s257 = scalar_lea.vmem %s0, %s256
      %s258 = sadd.s32 %s19, 4
      %p259 = scmp.lt.s32.totalorder %s258, 11
      %s260 = scalar_select %p259, %s258, 11
      %p261 = scmp.lt.s32.totalorder %s18, 1
      %s262 = scalar_select %p261, %s18, 1
      %s263 = smul.addr %s262, 4
      %s264 = smul.addr %s260, 8
      %s265 = sadd.s32 %s263, %s264
      %s266 = smul.addr %s265, 4
      %s267 = scalar_lea.vmem %s1, %s266
      %s268 = sadd.s32 %s19, 4
      %s269 = sadd.s32 %s19, 8
      %p270 = scmp.lt.s32.totalorder %s269, 11
      %s271 = scalar_select %p270, %s269, 11
      %p272 = scmp.lt.s32.totalorder %s18, 1
      %s273 = scalar_select %p272, %s18, 1
      %s274 = smul.addr %s273, 4
      %s275 = smul.addr %s271, 8
      %s276 = sadd.s32 %s274, %s275
      %s277 = smul.addr %s276, 4
      %s278 = scalar_lea.vmem %s2, %s277
      %s279 = sadd.s32 %s19, 8
      %p280 = scmp.lt.s32.totalorder %s19, 3
      %s281 = scalar_select %p280, %s19, 3
      %p282 = scmp.lt.s32.totalorder %s18, 1
      %s283 = scalar_select %p282, %s18, 1
      %s284 = smul.addr %s283, 4
      %s285 = smul.addr %s281, 8
      %s286 = sadd.s32 %s284, %s285
      %s287 = smul.addr %s286, 4
      %s288 = scalar_lea.vmem %s3, %s287
      %v290 = vld [vmem:[%s257] sm:$0xf]
      %v291 = vld [vmem:[%s257 + $0x4] sm:$0xf]
      %v292 = vld [vmem:[%s257 + $0x8] sm:$0xf]
      %v293 = vld [vmem:[%s257 + $0xc] sm:$0xf]
      %v294 = vld [vmem:[%s267] sm:$0xf]
      %v295 = vld [vmem:[%s267 + $0x4] sm:$0xf]
      %v296 = vld [vmem:[%s267 + $0x8] sm:$0xf]
      %v297 = vld [vmem:[%s267 + $0xc] sm:$0xf]
      %v298 = vld [vmem:[%s278] sm:$0xf]
      %v299 = vld [vmem:[%s278 + $0x4] sm:$0xf]
      %v300 = vld [vmem:[%s278 + $0x8] sm:$0xf]
      %v301 = vld [vmem:[%s278 + $0xc] sm:$0xf]
      %v306 = vunpack.c.l.b16 %v290
      %v307 = vunpack.c.l.b16 %v291
      %v308 = vunpack.c.l.b16 %v292
      %v309 = vunpack.c.l.b16 %v293
      %v310 = vpack.c.b16 %v307, %v306
      %v311 = vpack.c.b16 %v309, %v308
      %v316 = vunpack.c.l.b16 %v294
      %v317 = vunpack.c.l.b16 %v295
      %v318 = vunpack.c.l.b16 %v296
      %v319 = vunpack.c.l.b16 %v297
      %v320 = vpack.c.b16 %v317, %v316
      %v321 = vpack.c.b16 %v319, %v318
      %vm322 = vcmask 64512
      %v324 = vsel %vm322, %v310, 0
      %v327 = vsel %vm322, %v311, 0
      %v330 = vsel %vm322, %v320, 0
      %v333 = vsel %vm322, %v321, 0
      %335 = vmatprep.subr.bf16.mxu0 0
      %336 = vmatpush1.bf16.xpose.msra.mxu0 %v330
      %337 = vmatprep.subr.bf16.mxu0 0
      %338 = vmatpush1.bf16.xpose.msra.mxu0 %v333
      %339 = vmatprep.subr.bf16.mxu0 0
      %340 = vmatpush1.bf16.xpose.msra.mxu0 0
      %341 = vmatprep.subr.bf16.mxu0 0
      %342 = vmatpush1.bf16.xpose.msra.mxu0 0
      %343 = vmatprep.subr.bf16.mxu0 0
      %344 = vmatpush1.bf16.xpose.msra.mxu0 0
      %345 = vmatprep.subr.bf16.mxu0 0
      %346 = vmatpush1.bf16.xpose.msra.mxu0 0
      %347 = vmatprep.subr.bf16.mxu0 0
      %348 = vmatpush1.bf16.xpose.msra.mxu0 0
      %349 = vmatprep.subr.bf16.mxu0 0
      %350 = vmatpush1.bf16.xpose.msra.mxu0 0
      %351 = vmatprep.subr.bf16.mxu0 0
      %352 = vmatpush1.bf16.xpose.msra.mxu0 0
      %353 = vmatprep.subr.bf16.mxu0 0
      %354 = vmatpush1.bf16.xpose.msra.mxu0 0
      %355 = vmatprep.subr.bf16.mxu0 0
      %356 = vmatpush1.bf16.xpose.msra.mxu0 0
      %357 = vmatprep.subr.bf16.mxu0 0
      %358 = vmatpush1.bf16.xpose.msra.mxu0 0
      %359 = vmatprep.subr.bf16.mxu0 0
      %360 = vmatpush1.bf16.xpose.msra.mxu0 0
      %361 = vmatprep.subr.bf16.mxu0 0
      %362 = vmatpush1.bf16.xpose.msra.mxu0 0
      %363 = vmatprep.subr.bf16.mxu0 0
      %364 = vmatpush1.bf16.xpose.msra.mxu0 0
      %365 = vmatprep.subr.bf16.mxu0 0
      %366 = vmatpush1.bf16.xpose.msra.mxu0 0
      %367 = vmatprep.mubr.bf16.mxu0 0
      %368 = vmatmul.mubr.bf16.gmra.mrb[0].mxu0 %v324
      %v369 = vpop.f32.mrb[0].mxu0
      %v370 = vadd.f32 0.0, %v369
      %v371 = vpop.f32.mrb[0].mxu0
      %v372 = vpop.f32.mrb[0].mxu0
      %v373 = vadd.f32 0.0, %v372
      %v374 = vpop.f32.mrb[0].mxu0
      %375 = vmatprep.mubr.bf16.mxu0 0
      %376 = vmatmul.mubr.bf16.gmra.mrb[0].mxu0 %v327
      %v377 = vpop.f32.mrb[0].mxu0
      %v378 = vadd.f32 0.0, %v377
      %v379 = vpop.f32.mrb[0].mxu0
      %v380 = vpop.f32.mrb[0].mxu0
      %v381 = vadd.f32 0.0, %v380
      %v382 = vpop.f32.mrb[0].mxu0
      %383 = vdwg.mxu0
      %v384 = vmul.f32 %v370, 0.35355338
      %v385 = vmul.f32 %v373, 0.35355338
      %v386 = vmul.f32 %v378, 0.35355338
      %v387 = vmul.f32 %v381, 0.35355338
      %v388 = vlaneseq
      %v389 = vand.u32 %v388, 127
      %vm390 = vcmp.lt.s32.totalorder %v389, 17
      %v391 = vsel %vm390, %v384, -1e+30
      %v392 = vsel %vm390, %v385, -1e+30
      %v393 = vsel %vm390, %v386, -1e+30
      %v394 = vsel %vm390, %v387, -1e+30
      %vm395 = vcmask 261120
      %v396 = vsel %vm395, %v391, -inf
      %397 = vmax.xlane.f32.xlu0 %v396
      %v398 = vpop.xlane.xlu0 %397
      %v399 = vsel %vm395, %v392, -inf
      %400 = vmax.xlane.f32.xlu0 %v399
      %v401 = vpop.xlane.xlu0 %400
      %v402 = vsel %vm395, %v393, -inf
      %403 = vmax.xlane.f32.xlu0 %v402
      %v404 = vpop.xlane.xlu0 %403
      %v405 = vsel %vm395, %v394, -inf
      %406 = vmax.xlane.f32.xlu0 %v405
      %v407 = vpop.xlane.xlu0 %406
      %v408 = vsub.f32 %v391, %v398
      %v409 = vsub.f32 %v392, %v401
      %v410 = vsub.f32 %v393, %v404
      %v411 = vsub.f32 %v394, %v407
      %v412 = vmul.f32 %v408, 1.442695
      %v413 = vpow.pop %v412
      %v414 = vmul.f32 %v409, 1.442695
      %v415 = vpow.pop %v414
      %v416 = vmul.f32 %v410, 1.442695
      %v417 = vpow.pop %v416
      %v418 = vmul.f32 %v411, 1.442695
      %v419 = vpow.pop %v418
      %v420 = vsel %vm395, %v413, 0.0
      %421 = vadd.xlane.f32.xlu0 %v420
      %v422 = vpop.xlane.xlu0 %421
      %v423 = vsel %vm395, %v415, 0.0
      %424 = vadd.xlane.f32.xlu0 %v423
      %v425 = vpop.xlane.xlu0 %424
      %v426 = vsel %vm395, %v417, 0.0
      %427 = vadd.xlane.f32.xlu0 %v426
      %v428 = vpop.xlane.xlu0 %427
      %v429 = vsel %vm395, %v419, 0.0
      %430 = vadd.xlane.f32.xlu0 %v429
      %v431 = vpop.xlane.xlu0 %430
      %v432 = vrcp.pop %v422
      %v433 = vrcp.pop %v425
      %v434 = vrcp.pop %v428
      %v435 = vrcp.pop %v431
      %v436 = vmul.f32 %v413, %v432
      %v437 = vmul.f32 %v415, %v433
      %v438 = vmul.f32 %v417, %v434
      %v439 = vmul.f32 %v419, %v435
      %v440 = vpack.c.bf16 %v437, %v436
      %v441 = vpack.c.bf16 %v439, %v438
      %v446 = vunpack.c.l.b16 %v298
      %v447 = vunpack.c.l.b16 %v299
      %v448 = vunpack.c.l.b16 %v300
      %v449 = vunpack.c.l.b16 %v301
      %v450 = vpack.c.b16 %v447, %v446
      %v451 = vpack.c.b16 %v449, %v448
      %v455 = vsel %vm395, %v440, 0
      %v458 = vsel %vm395, %v441, 0
      %460 = vmatprep.subr.bf16.mxu0 0
      %461 = vmatpush1.bf16.msra.mxu0 %v450
      %462 = vmatprep.subr.bf16.mxu0 0
      %463 = vmatpush1.bf16.msra.mxu0 %v451
      %464 = vmatprep.subr.bf16.mxu0 0
      %465 = vmatpush1.bf16.msra.mxu0 0
      %466 = vmatprep.subr.bf16.mxu0 0
      %467 = vmatpush1.bf16.msra.mxu0 0
      %468 = vmatprep.subr.bf16.mxu0 0
      %469 = vmatpush1.bf16.msra.mxu0 0
      %470 = vmatprep.subr.bf16.mxu0 0
      %471 = vmatpush1.bf16.msra.mxu0 0
      %472 = vmatprep.subr.bf16.mxu0 0
      %473 = vmatpush1.bf16.msra.mxu0 0
      %474 = vmatprep.subr.bf16.mxu0 0
      %475 = vmatpush1.bf16.msra.mxu0 0
      %476 = vmatprep.subr.bf16.mxu0 0
      %477 = vmatpush1.bf16.msra.mxu0 0
      %478 = vmatprep.subr.bf16.mxu0 0
      %479 = vmatpush1.bf16.msra.mxu0 0
      %480 = vmatprep.subr.bf16.mxu0 0
      %481 = vmatpush1.bf16.msra.mxu0 0
      %482 = vmatprep.subr.bf16.mxu0 0
      %483 = vmatpush1.bf16.msra.mxu0 0
      %484 = vmatprep.subr.bf16.mxu0 0
      %485 = vmatpush1.bf16.msra.mxu0 0
      %486 = vmatprep.subr.bf16.mxu0 0
      %487 = vmatpush1.bf16.msra.mxu0 0
      %488 = vmatprep.subr.bf16.mxu0 0
      %489 = vmatpush1.bf16.msra.mxu0 0
      %490 = vmatprep.subr.bf16.mxu0 0
      %491 = vmatpush1.bf16.msra.mxu0 0
      %492 = vmatprep.mubr.bf16.mxu0 0
      %493 = vmatmul.mubr.bf16.gmra.mrb[0].mxu0 %v455
      %v494 = vpop.f32.mrb[0].mxu0
      %v495 = vadd.f32 0.0, %v494
      %v496 = vpop.f32.mrb[0].mxu0
      %v497 = vpop.f32.mrb[0].mxu0
      %v498 = vadd.f32 0.0, %v497
      %v499 = vpop.f32.mrb[0].mxu0
      %500 = vmatprep.mubr.bf16.mxu0 0
      %501 = vmatmul.mubr.bf16.gmra.mrb[0].mxu0 %v458
      %v502 = vpop.f32.mrb[0].mxu0
      %v503 = vadd.f32 0.0, %v502
      %v504 = vpop.f32.mrb[0].mxu0
      %v505 = vpop.f32.mrb[0].mxu0
      %v506 = vadd.f32 0.0, %v505
      %v507 = vpop.f32.mrb[0].mxu0
      %508 = vdwg.mxu0
      %v509 = vpack.c.bf16 %v498, %v495
      %v510 = vpack.c.bf16 %v506, %v503
      %v513 = vunpack.c.l.b16 %v509
      %v514 = vunpack.c.h.b16 %v509
      %v515 = vunpack.c.l.b16 %v510
      %v516 = vunpack.c.h.b16 %v510
      %v517 = vpack.c.b16 %v513, %v513
      %v518 = vpack.c.b16 %v514, %v514
      %v519 = vpack.c.b16 %v515, %v515
      %v520 = vpack.c.b16 %v516, %v516
      %vm525 = vcmask 60416
      %526 = vst.msk [vmem:[%s288] sm:$0xf] %vm525, %v517
      %527 = vst.msk [vmem:[%s288 + $0x4] sm:$0xf] %vm525, %v518
      %528 = vst.msk [vmem:[%s288 + $0x8] sm:$0xf] %vm525, %v519
      %529 = vst.msk [vmem:[%s288 + $0xc] sm:$0xf] %vm525, %v520
      %p530 = scmp.lt.s32.totalorder %s19, 3
      %s531 = scalar_select %p530, %s19, 3
      %p532 = scmp.lt.s32.totalorder %s18, 1
      %s533 = scalar_select %p532, %s18, 1
      %s534 = smul.addr %s533, 4
      %s535 = smul.addr %s531, 8
      %s536 = sadd.s32 %s534, %s535
      %s537 = smul.addr %s536, 4
      %s538 = scalar_lea.vmem %s3, %s537
      // Predicated region
      $region33: #{image_encoder_forward.14} parent=31 // pred_check
        %p539 = pneg %p134
      $region34: #{image_encoder_forward.14} parent=31 // pred_check_branch
        %541 = sbr.rel (%p539) target = $region36
      $region35: #{image_encoder_forward.14} parent=31 // pred_region
        _
      $region36: #{image_encoder_forward.14} parent=31 // pred_fallthru
        _
    $region32: #{image_encoder_forward.14} parent=5 // pred_fallthru
      _
    %p542 = scmp.le.s32.totalorder 2, %s9
    // Predicated region
    $region37: #{image_encoder_forward.14} parent=5 // pred_check
      %p543 = pneg %p542
    $region38: #{image_encoder_forward.14} parent=5 // pred_check_branch
      %545 = sbr.rel (%p543) target = $region40
    $region39: #{image_encoder_forward.14} parent=5 // pred_region
      %s546 = ssub.s32 %s9, 2
      // Predicated region
      $region41: #{image_encoder_forward.14} parent=39 // pred_check
        %p547 = pneg %p140
      $region42: #{image_encoder_forward.14} parent=39 // pred_check_branch
        %549 = sbr.rel (%p547) target = $region44
      $region43: #{image_encoder_forward.14} parent=39 // pred_region
        %p550 = scmp.lt.s32.totalorder %s21, 3
        %s551 = scalar_select %p550, %s21, 3
        %p552 = scmp.lt.s32.totalorder %s20, 1
        %s553 = scalar_select %p552, %s20, 1
        %s554 = smul.addr %s553, 4
        %s555 = smul.addr %s551, 8
        %s556 = sadd.s32 %s554, %s555
        %s557 = smul.addr %s556, 4
        %s558 = scalar_lea.vmem %s3, %s557
      $region44: #{image_encoder_forward.14} parent=39 // pred_fallthru
        _
    $region40: #{image_encoder_forward.14} parent=5 // pred_fallthru
      _
  $region6: #{image_encoder_forward.14} parent=0 // loop_footer
    %s13 = sadd.s32 1, %s9
  $region7: #{image_encoder_forward.14} parent=0 // loop_footer_branch
    %8 = sbr.rel target = $region3
  $region8: #{image_encoder_forward.14} parent=0 // loop_exit
    _

// kernel: image_encoder_forward.23
$region0: #{image_encoder_forward.23}
  #allocation0 [shape = 'u32[]', space=smem, size = 0x4, offset = 0x4, fixed_abs, tag = 'smem constant byte address 0x4 - core index']
  #allocation1 [shape = 'u32[144,128]{1,0:T(1,128)}', space=vmem, size = 0x12000, scoped, tag = 'internal scratch']
  %s0 = inlined_call_operand.vmem [shape: bf16[2,32], index: 0, kind: input, shape index: {}]
  %s1 = inlined_call_operand.vmem [shape: f32[1,32], index: 1, kind: input, shape index: {}]
  %s2 = inlined_call_operand.vmem [shape: f32[1,32], index: 2, kind: input, shape index: {}]
  %s3 = inlined_call_operand.vmem [shape: bf16[32,64], index: 3, kind: input, shape index: {}]
  %s4 = inlined_call_operand.hbm [shape: f32[2,64], index: 4, kind: output, shape index: {}]
  %s5 = sld [smem:[#allocation0]]
  $region26: #{image_encoder_forward.23} parent=0
    _
  %s7 = ssub.s32 1, %s5
  %s8 = scalar_select 0, %s7, %s5
  $region1: #{image_encoder_forward.23} parent=0
    #allocation2 [shape = 'u8[1024]{0}', space=vmem, size = 0x400, scoped, tag = 'output window, operand 0, single buffered']
    #allocation3 [shape = 's32[1]{0}', space=sflag, size = 0x4, scoped, tag = 'scoped memory for image_encoder_forward.23']
    %9 = vsyncpa [#allocation3], 0
    // Predicated region
    $region2: #{image_encoder_forward.23} parent=1 // pred_check
      _
    $region3: #{image_encoder_forward.23} parent=1 // pred_check_branch
      %11 = sbr.rel (0) target = $region5
    $region4: #{image_encoder_forward.23} parent=1 // pred_region
      _
    $region5: #{image_encoder_forward.23} parent=1 // pred_fallthru
      _
    // Predicated region
    $region6: #{image_encoder_forward.23} parent=1 // pred_check
      _
    $region7: #{image_encoder_forward.23} parent=1 // pred_check_branch
      %13 = sbr.rel (0) target = $region9
    $region8: #{image_encoder_forward.23} parent=1 // pred_region
      _
    $region9: #{image_encoder_forward.23} parent=1 // pred_fallthru
      _
    // Predicated region
    $region10: #{image_encoder_forward.23} parent=1 // pred_check
      _
    $region11: #{image_encoder_forward.23} parent=1 // pred_check_branch
      %15 = sbr.rel (0) target = $region13
    $region12: #{image_encoder_forward.23} parent=1 // pred_region
      _
    $region13: #{image_encoder_forward.23} parent=1 // pred_fallthru
      _
    // Predicated region
    $region14: #{image_encoder_forward.23} parent=1 // pred_check
      _
    $region15: #{image_encoder_forward.23} parent=1 // pred_check_branch
      %17 = sbr.rel (0) target = $region17
    $region16: #{image_encoder_forward.23} parent=1 // pred_region
      _
    $region17: #{image_encoder_forward.23} parent=1 // pred_fallthru
      _
    %v19 = vld [vmem:[%s0] sm:$0x1]
    %v20 = vld [vmem:[%s1] sm:$0x1]
    %v21 = vld [vmem:[%s2] sm:$0x1]
    %v22 = vunpack.c.l.bf16 %v19
    %vm23 = vcmask 254976
    %v24 = vsel %vm23, %v22, 0.0
    %25 = vadd.xlane.f32.xlu0 %v24
    %v26 = vpop.xlane.xlu0 %25
    %v27 = vrcp.pop 32.0
    %v28 = vmul.f32 %v26, %v27
    %v29 = vsub.f32 %v22, %v28
    %v30 = vmul.f32 %v29, %v29
    %v31 = vsel %vm23, %v30, 0.0
    %32 = vadd.xlane.f32.xlu0 %v31
    %v33 = vpop.xlane.xlu0 %32
    %v34 = vmul.f32 %v33, %v27
    %v35 = vadd.f32 %v34, 1e-05
    %v36 = vrsqrt.pop %v35
    %v37 = vmul.f32 %v29, %v36
    %v39 = vlaneseq
    %v40 = vshrl.u32 %v39, 7
    %v41 = vsub.s32 0, %v40
    %v42 = vrot.slane %v20, %v41
    %v44 = vmul.f32 %v37, %v42
    %v46 = vlaneseq
    %v47 = vshrl.u32 %v46, 7
    %v48 = vsub.s32 0, %v47
    %v49 = vrot.slane %v21, %v48
    %v51 = vadd.f32 %v44, %v49
    %v52 = vpack.c.bf16 %v51, %v51
    %v53 = vld [vmem:[%s3] sm:$0xf]
    %v54 = vld [vmem:[%s3 + $0x4] sm:$0xf]
    %v55 = vld [vmem:[%s3 + $0x8] sm:$0xf]
    %v56 = vld [vmem:[%s3 + $0xc] sm:$0xf]
    %v61 = vunpack.c.l.b16 %v53
    %v62 = vunpack.c.l.b16 %v54
    %v63 = vunpack.c.l.b16 %v55
    %v64 = vunpack.c.l.b16 %v56
    %v65 = vpack.c.b16 %v62, %v61
    %v66 = vpack.c.b16 %v64, %v63
    %vm69 = vcmask 261120
    %v71 = vsel %vm69, %v52, 0
    %73 = vmatprep.subr.bf16.mxu0 0
    %74 = vmatpush1.bf16.msra.mxu0 %v65
    %75 = vmatprep.subr.bf16.mxu0 0
    %76 = vmatpush1.bf16.msra.mxu0 %v66
    %77 = vmatprep.subr.bf16.mxu0 0
    %78 = vmatpush1.bf16.msra.mxu0 0
    %79 = vmatprep.subr.bf16.mxu0 0
    %80 = vmatpush1.bf16.msra.mxu0 0
    %81 = vmatprep.subr.bf16.mxu0 0
    %82 = vmatpush1.bf16.msra.mxu0 0
    %83 = vmatprep.subr.bf16.mxu0 0
    %84 = vmatpush1.bf16.msra.mxu0 0
    %85 = vmatprep.subr.bf16.mxu0 0
    %86 = vmatpush1.bf16.msra.mxu0 0
    %87 = vmatprep.subr.bf16.mxu0 0
    %88 = vmatpush1.bf16.msra.mxu0 0
    %89 = vmatprep.subr.bf16.mxu0 0
    %90 = vmatpush1.bf16.msra.mxu0 0
    %91 = vmatprep.subr.bf16.mxu0 0
    %92 = vmatpush1.bf16.msra.mxu0 0
    %93 = vmatprep.subr.bf16.mxu0 0
    %94 = vmatpush1.bf16.msra.mxu0 0
    %95 = vmatprep.subr.bf16.mxu0 0
    %96 = vmatpush1.bf16.msra.mxu0 0
    %97 = vmatprep.subr.bf16.mxu0 0
    %98 = vmatpush1.bf16.msra.mxu0 0
    %99 = vmatprep.subr.bf16.mxu0 0
    %100 = vmatpush1.bf16.msra.mxu0 0
    %101 = vmatprep.subr.bf16.mxu0 0
    %102 = vmatpush1.bf16.msra.mxu0 0
    %103 = vmatprep.subr.bf16.mxu0 0
    %104 = vmatpush1.bf16.msra.mxu0 0
    %105 = vmatprep.mubr.bf16.mxu0 0
    %106 = vmatmul.mubr.bf16.gmra.mrb[0].mxu0 %v71
    %v107 = vpop.f32.mrb[0].mxu0
    %v108 = vadd.f32 0.0, %v107
    %v109 = vpop.f32.mrb[0].mxu0
    %v110 = vpop.f32.mrb[0].mxu0
    %v111 = vpop.f32.mrb[0].mxu0
    %112 = vdwg.mxu0
    %v113 = vmul.f32 %v108, %v108
    %vm114 = vcmask 517120
    %v115 = vsel %vm114, %v113, 0.0
    %116 = vadd.xlane.f32.xlu0 %v115
    %v117 = vpop.xlane.xlu0 %116
    %v118 = vadd.f32 %v117, 1e-12
    %v119 = vrsqrt.pop %v118
    %v120 = vmul.f32 %v108, %v119
    %121 = vst.msk [vmem:[#allocation2] sm:$0x3] %vm114, %v120
    // Predicated region
    $region18: #{image_encoder_forward.23} parent=1 // pred_check
      _
    $region19: #{image_encoder_forward.23} parent=1 // pred_check_branch
      %123 = sbr.rel (0) target = $region21
    $region20: #{image_encoder_forward.23} parent=1 // pred_region
      %s125 = ssub.s32 32, 32
      %126 = vsyncadd [#allocation3], %s125
      %s128 = sshll.u32 [#allocation2], 4
      %s129 = int_to_ptr.vmem [resolvable:$true] %s128
      %131 = dma.vmem_to_hbm [thread:$0]  %s129, 32, %s4, [#allocation3]
    $region21: #{image_encoder_forward.23} parent=1 // pred_fallthru
      _
    // Predicated region
    $region22: #{image_encoder_forward.23} parent=1 // pred_check
      _
    $region23: #{image_encoder_forward.23} parent=1 // pred_check_branch
      %133 = sbr.rel (0) target = $region25
    $region24: #{image_encoder_forward.23} parent=1 // pred_region
      %134 = dma.done [#allocation3], 32
    $region25: #{image_encoder_forward.23} parent=1 // pred_fallthru
      _
    %135 = vsyncpa [#allocation3], 1

// kernel: image_encoder_forward.17
$region0: #{image_encoder_forward.17}
  #allocation0 [shape = 'u32[]', space=smem, size = 0x4, offset = 0x4, fixed_abs, tag = 'smem constant byte address 0x4 - core index']
  #allocation1 [shape = 'u32[144,128]{1,0:T(1,128)}', space=vmem, size = 0x12000, scoped, tag = 'internal scratch']
  #allocation2 [shape = 'f32[64,32]{1,0:T(8,128)}', space=vmem, size = 0x8000, scoped, tag = 'scratch operand']
  %s0 = inlined_call_operand.vmem [shape: bf16[64,64], index: 0, kind: input, shape index: {}]
  %s1 = inlined_call_operand.vmem [shape: bf16[64,32], index: 1, kind: input, shape index: {}]
  %s2 = inlined_call_operand.vmem [shape: f32[1,32], index: 2, kind: input, shape index: {}]
  %s3 = inlined_call_operand.vmem [shape: bf16[64,32], index: 3, kind: input, shape index: {}]
  %s4 = inlined_call_operand.vmem [shape: bf16[64,32], index: 4, kind: output, shape index: {}]
  %s5 = sld [smem:[#allocation0]]
  $region34: #{image_encoder_forward.17} parent=0
    _
  %s7 = ssub.s32 1, %s5
  %s8 = scalar_select 0, %s7, %s5
  // Predicated region
  $region2: #{image_encoder_forward.17} parent=0 // pred_check
    _
  $region3: #{image_encoder_forward.17} parent=0 // pred_check_branch
    %10 = sbr.rel (0) target = $region5
  $region4: #{image_encoder_forward.17} parent=0 // pred_region
    _
  $region5: #{image_encoder_forward.17} parent=0 // pred_fallthru
    _
  // Predicated region
  $region6: #{image_encoder_forward.17} parent=0 // pred_check
    _
  $region7: #{image_encoder_forward.17} parent=0 // pred_check_branch
    %12 = sbr.rel (0) target = $region9
  $region8: #{image_encoder_forward.17} parent=0 // pred_region
    _
  $region9: #{image_encoder_forward.17} parent=0 // pred_fallthru
    _
  // Predicated region
  $region10: #{image_encoder_forward.17} parent=0 // pred_check
    _
  $region11: #{image_encoder_forward.17} parent=0 // pred_check_branch
    %14 = sbr.rel (0) target = $region13
  $region12: #{image_encoder_forward.17} parent=0 // pred_region
    _
  $region13: #{image_encoder_forward.17} parent=0 // pred_fallthru
    _
  // Predicated region
  $region14: #{image_encoder_forward.17} parent=0 // pred_check
    _
  $region15: #{image_encoder_forward.17} parent=0 // pred_check_branch
    %16 = sbr.rel (0) target = $region17
  $region16: #{image_encoder_forward.17} parent=0 // pred_region
    _
  $region17: #{image_encoder_forward.17} parent=0 // pred_fallthru
    _
  %p18 = scmp.eq.s32.totalorder 0, 0
  // Predicated region
  $region18: #{image_encoder_forward.17} parent=0 // pred_check
    %p19 = pneg %p18
  $region19: #{image_encoder_forward.17} parent=0 // pred_check_branch
    %21 = sbr.rel (%p19) target = $region21
  $region20: #{image_encoder_forward.17} parent=0 // pred_region
    %vm22 = vcmask 261120
    %23 = vst.msk [vmem:[#allocation2] sm:$0xff] %vm22, 0.0
    %24 = vst.msk [vmem:[#allocation2 + $0x8] sm:$0xff] %vm22, 0.0
    %25 = vst.msk [vmem:[#allocation2 + $0x10] sm:$0xff] %vm22, 0.0
    %26 = vst.msk [vmem:[#allocation2 + $0x18] sm:$0xff] %vm22, 0.0
    %27 = vst.msk [vmem:[#allocation2 + $0x20] sm:$0xff] %vm22, 0.0
    %28 = vst.msk [vmem:[#allocation2 + $0x28] sm:$0xff] %vm22, 0.0
    %29 = vst.msk [vmem:[#allocation2 + $0x30] sm:$0xff] %vm22, 0.0
    %30 = vst.msk [vmem:[#allocation2 + $0x38] sm:$0xff] %vm22, 0.0
  $region21: #{image_encoder_forward.17} parent=0 // pred_fallthru
    _
  %v31 = vld [vmem:[#allocation2] sm:$0xff]
  %v32 = vld [vmem:[#allocation2 + $0x8] sm:$0xff]
  %v33 = vld [vmem:[#allocation2 + $0x10] sm:$0xff]
  %v34 = vld [vmem:[#allocation2 + $0x18] sm:$0xff]
  %v35 = vld [vmem:[#allocation2 + $0x20] sm:$0xff]
  %v36 = vld [vmem:[#allocation2 + $0x28] sm:$0xff]
  %v37 = vld [vmem:[#allocation2 + $0x30] sm:$0xff]
  %v38 = vld [vmem:[#allocation2 + $0x38] sm:$0xff]
  %v39 = vld [vmem:[%s0] sm:$0xf]
  %v40 = vld [vmem:[%s0 + $0x4] sm:$0xf]
  %v41 = vld [vmem:[%s0 + $0x8] sm:$0xf]
  %v42 = vld [vmem:[%s0 + $0xc] sm:$0xf]
  %v43 = vld [vmem:[%s0 + $0x10] sm:$0xf]
  %v44 = vld [vmem:[%s0 + $0x14] sm:$0xf]
  %v45 = vld [vmem:[%s0 + $0x18] sm:$0xf]
  %v46 = vld [vmem:[%s0 + $0x1c] sm:$0xf]
  %v47 = vld [vmem:[%s1] sm:$0xf]
  %v48 = vld [vmem:[%s1 + $0x4] sm:$0xf]
  %v49 = vld [vmem:[%s1 + $0x8] sm:$0xf]
  %v50 = vld [vmem:[%s1 + $0xc] sm:$0xf]
  %v51 = vld [vmem:[%s1 + $0x10] sm:$0xf]
  %v52 = vld [vmem:[%s1 + $0x14] sm:$0xf]
  %v53 = vld [vmem:[%s1 + $0x18] sm:$0xf]
  %v54 = vld [vmem:[%s1 + $0x1c] sm:$0xf]
  %v63 = vunpack.c.l.b16 %v39
  %v64 = vunpack.c.l.b16 %v40
  %v65 = vunpack.c.l.b16 %v41
  %v66 = vunpack.c.l.b16 %v42
  %v67 = vunpack.c.l.b16 %v43
  %v68 = vunpack.c.l.b16 %v44
  %v69 = vunpack.c.l.b16 %v45
  %v70 = vunpack.c.l.b16 %v46
  %v71 = vpack.c.b16 %v64, %v63
  %v72 = vpack.c.b16 %v66, %v65
  %v73 = vpack.c.b16 %v68, %v67
  %v74 = vpack.c.b16 %v70, %v69
  %v83 = vunpack.c.l.b16 %v47
  %v84 = vunpack.c.l.b16 %v48
  %v85 = vunpack.c.l.b16 %v49
  %v86 = vunpack.c.l.b16 %v50
  %v87 = vunpack.c.l.b16 %v51
  %v88 = vunpack.c.l.b16 %v52
  %v89 = vunpack.c.l.b16 %v53
  %v90 = vunpack.c.l.b16 %v54
  %v91 = vpack.c.b16 %v84, %v83
  %v92 = vpack.c.b16 %v86, %v85
  %v93 = vpack.c.b16 %v88, %v87
  %v94 = vpack.c.b16 %v90, %v89
  %vm99 = vcmask 523264
  %v101 = vsel %vm99, %v71, 0
  %v104 = vsel %vm99, %v72, 0
  %v107 = vsel %vm99, %v73, 0
  %v110 = vsel %vm99, %v74, 0
  %112 = vmatprep.subr.bf16.mxu0 0
  %113 = vmatpush1.bf16.msra.mxu0 %v91
  %114 = vmatprep.subr.bf16.mxu0 0
  %115 = vmatpush1.bf16.msra.mxu0 %v92
  %116 = vmatprep.subr.bf16.mxu0 0
  %117 = vmatpush1.bf16.msra.mxu0 %v93
  %118 = vmatprep.subr.bf16.mxu0 0
  %119 = vmatpush1.bf16.msra.mxu0 %v94
  %120 = vmatprep.subr.bf16.mxu0 0
  %121 = vmatpush1.bf16.msra.mxu0 0
  %122 = vmatprep.subr.bf16.mxu0 0
  %123 = vmatpush1.bf16.msra.mxu0 0
  %124 = vmatprep.subr.bf16.mxu0 0
  %125 = vmatpush1.bf16.msra.mxu0 0
  %126 = vmatprep.subr.bf16.mxu0 0
  %127 = vmatpush1.bf16.msra.mxu0 0
  %128 = vmatprep.subr.bf16.mxu0 0
  %129 = vmatpush1.bf16.msra.mxu0 0
  %130 = vmatprep.subr.bf16.mxu0 0
  %131 = vmatpush1.bf16.msra.mxu0 0
  %132 = vmatprep.subr.bf16.mxu0 0
  %133 = vmatpush1.bf16.msra.mxu0 0
  %134 = vmatprep.subr.bf16.mxu0 0
  %135 = vmatpush1.bf16.msra.mxu0 0
  %136 = vmatprep.subr.bf16.mxu0 0
  %137 = vmatpush1.bf16.msra.mxu0 0
  %138 = vmatprep.subr.bf16.mxu0 0
  %139 = vmatpush1.bf16.msra.mxu0 0
  %140 = vmatprep.subr.bf16.mxu0 0
  %141 = vmatpush1.bf16.msra.mxu0 0
  %142 = vmatprep.subr.bf16.mxu0 0
  %143 = vmatpush1.bf16.msra.mxu0 0
  %144 = vmatprep.mubr.bf16.mxu0 0
  %145 = vmatmul.mubr.bf16.gmra.mrb[0].mxu0 %v101
  %v146 = vpop.f32.mrb[0].mxu0
  %v147 = vadd.f32 0.0, %v146
  %v148 = vpop.f32.mrb[0].mxu0
  %v149 = vpop.f32.mrb[0].mxu0
  %v150 = vadd.f32 0.0, %v149
  %v151 = vpop.f32.mrb[0].mxu0
  %152 = vmatprep.mubr.bf16.mxu0 0
  %153 = vmatmul.mubr.bf16.gmra.mrb[0].mxu0 %v104
  %v154 = vpop.f32.mrb[0].mxu0
  %v155 = vadd.f32 0.0, %v154
  %v156 = vpop.f32.mrb[0].mxu0
  %v157 = vpop.f32.mrb[0].mxu0
  %v158 = vadd.f32 0.0, %v157
  %v159 = vpop.f32.mrb[0].mxu0
  %160 = vmatprep.mubr.bf16.mxu0 0
  %161 = vmatmul.mubr.bf16.gmra.mrb[0].mxu0 %v107
  %v162 = vpop.f32.mrb[0].mxu0
  %v163 = vadd.f32 0.0, %v162
  %v164 = vpop.f32.mrb[0].mxu0
  %v165 = vpop.f32.mrb[0].mxu0
  %v166 = vadd.f32 0.0, %v165
  %v167 = vpop.f32.mrb[0].mxu0
  %168 = vmatprep.mubr.bf16.mxu0 0
  %169 = vmatmul.mubr.bf16.gmra.mrb[0].mxu0 %v110
  %v170 = vpop.f32.mrb[0].mxu0
  %v171 = vadd.f32 0.0, %v170
  %v172 = vpop.f32.mrb[0].mxu0
  %v173 = vpop.f32.mrb[0].mxu0
  %v174 = vadd.f32 0.0, %v173
  %v175 = vpop.f32.mrb[0].mxu0
  %176 = vdwg.mxu0
  %v177 = vadd.f32 %v31, %v147
  %v178 = vadd.f32 %v32, %v150
  %v179 = vadd.f32 %v33, %v155
  %v180 = vadd.f32 %v34, %v158
  %v181 = vadd.f32 %v35, %v163
  %v182 = vadd.f32 %v36, %v166
  %v183 = vadd.f32 %v37, %v171
  %v184 = vadd.f32 %v38, %v174
  %vm185 = vcmask 261120
  %186 = vst.msk [vmem:[#allocation2] sm:$0xff] %vm185, %v177
  %187 = vst.msk [vmem:[#allocation2 + $0x8] sm:$0xff] %vm185, %v178
  %188 = vst.msk [vmem:[#allocation2 + $0x10] sm:$0xff] %vm185, %v179
  %189 = vst.msk [vmem:[#allocation2 + $0x18] sm:$0xff] %vm185, %v180
  %190 = vst.msk [vmem:[#allocation2 + $0x20] sm:$0xff] %vm185, %v181
  %191 = vst.msk [vmem:[#allocation2 + $0x28] sm:$0xff] %vm185, %v182
  %192 = vst.msk [vmem:[#allocation2 + $0x30] sm:$0xff] %vm185, %v183
  %193 = vst.msk [vmem:[#allocation2 + $0x38] sm:$0xff] %vm185, %v184
  // Predicated region
  $region22: #{image_encoder_forward.17} parent=0 // pred_check
    %p194 = pneg %p18
  $region23: #{image_encoder_forward.17} parent=0 // pred_check_branch
    %196 = sbr.rel (%p194) target = $region25
  $region24: #{image_encoder_forward.17} parent=0 // pred_region
    %v197 = vld [vmem:[#allocation2] sm:$0xff]
    %v198 = vld [vmem:[#allocation2 + $0x8] sm:$0xff]
    %v199 = vld [vmem:[#allocation2 + $0x10] sm:$0xff]
    %v200 = vld [vmem:[#allocation2 + $0x18] sm:$0xff]
    %v201 = vld [vmem:[#allocation2 + $0x20] sm:$0xff]
    %v202 = vld [vmem:[#allocation2 + $0x28] sm:$0xff]
    %v203 = vld [vmem:[#allocation2 + $0x30] sm:$0xff]
    %v204 = vld [vmem:[#allocation2 + $0x38] sm:$0xff]
    %v205 = vld [vmem:[%s2] sm:$0x1]
    %v207 = vlaneseq
    %v208 = vshrl.u32 %v207, 7
    %v209 = vsub.s32 0, %v208
    %v210 = vrot.slane %v205, %v209
    %v212 = vadd.f32 %v197, %v210
    %v213 = vadd.f32 %v198, %v210
    %v214 = vadd.f32 %v199, %v210
    %v215 = vadd.f32 %v200, %v210
    %v216 = vadd.f32 %v201, %v210
    %v217 = vadd.f32 %v202, %v210
    %v218 = vadd.f32 %v203, %v210
    %v219 = vadd.f32 %v204, %v210
    %v220 = vld [vmem:[%s3] sm:$0xf]
    %v221 = vld [vmem:[%s3 + $0x4] sm:$0xf]
    %v222 = vld [vmem:[%s3 + $0x8] sm:$0xf]
    %v223 = vld [vmem:[%s3 + $0xc] sm:$0xf]
    %v224 = vld [vmem:[%s3 + $0x10] sm:$0xf]
    %v225 = vld [vmem:[%s3 + $0x14] sm:$0xf]
    %v226 = vld [vmem:[%s3 + $0x18] sm:$0xf]
    %v227 = vld [vmem:[%s3 + $0x1c] sm:$0xf]
    %v228 = vunpack.c.l.bf16 %v220
    %v229 = vunpack.c.l.bf16 %v221
    %v230 = vunpack.c.l.bf16 %v222
    %v231 = vunpack.c.l.bf16 %v223
    %v232 = vunpack.c.l.bf16 %v224
    %v233 = vunpack.c.l.bf16 %v225
    %v234 = vunpack.c.l.bf16 %v226
    %v235 = vunpack.c.l.bf16 %v227
    %v236 = vadd.f32 %v212, %v228
    %v237 = vadd.f32 %v213, %v229
    %v238 = vadd.f32 %v214, %v230
    %v239 = vadd.f32 %v215, %v231
    %v240 = vadd.f32 %v216, %v232
    %v241 = vadd.f32 %v217, %v233
    %v242 = vadd.f32 %v218, %v234
    %v243 = vadd.f32 %v219, %v235
    %v244 = vpack.c.bf16 %v237, %v236
    %v245 = vpack.c.bf16 %v239, %v238
    %v246 = vpack.c.bf16 %v241, %v240
    %v247 = vpack.c.bf16 %v243, %v242
    %v252 = vunpack.c.l.b16 %v244
    %v253 = vunpack.c.h.b16 %v244
    %v254 = vunpack.c.l.b16 %v245
    %v255 = vunpack.c.h.b16 %v245
    %v256 = vunpack.c.l.b16 %v246
    %v257 = vunpack.c.h.b16 %v246
    %v258 = vunpack.c.l.b16 %v247
    %v259 = vunpack.c.h.b16 %v247
    %v260 = vpack.c.b16 %v252, %v252
    %v261 = vpack.c.b16 %v253, %v253
    %v262 = vpack.c.b16 %v254, %v254
    %v263 = vpack.c.b16 %v255, %v255
    %v264 = vpack.c.b16 %v256, %v256
    %v265 = vpack.c.b16 %v257, %v257
    %v266 = vpack.c.b16 %v258, %v258
    %v267 = vpack.c.b16 %v259, %v259
    %vm276 = vcmask 257024
    %277 = vst.msk [vmem:[%s4] sm:$0xf] %vm276, %v260
    %278 = vst.msk [vmem:[%s4 + $0x4] sm:$0xf] %vm276, %v261
    %279 = vst.msk [vmem:[%s4 + $0x8] sm:$0xf] %vm276, %v262
    %280 = vst.msk [vmem:[%s4 + $0xc] sm:$0xf] %vm276, %v263
    %281 = vst.msk [vmem:[%s4 + $0x10] sm:$0xf] %vm276, %v264
    %282 = vst.msk [vmem:[%s4 + $0x14] sm:$0xf] %vm276, %v265
    %283 = vst.msk [vmem:[%s4 + $0x18] sm:$0xf] %vm276, %v266
    %284 = vst.msk [vmem:[%s4 + $0x1c] sm:$0xf] %vm276, %v267
  $region25: #{image_encoder_forward.17} parent=0 // pred_fallthru
    _
  // Predicated region
  $region26: #{image_encoder_forward.17} parent=0 // pred_check
    _
  $region27: #{image_encoder_forward.17} parent=0 // pred_check_branch
    %286 = sbr.rel (0) target = $region29
  $region28: #{image_encoder_forward.17} parent=0 // pred_region
    _
  $region29: #{image_encoder_forward.17} parent=0 // pred_fallthru
    _
  // Predicated region
  $region30: #{image_encoder_forward.17} parent=0 // pred_check
    _
  $region31: #{image_encoder_forward.17} parent=0 // pred_check_branch
    %288 = sbr.rel (0) target = $region33
  $region32: #{image_encoder_forward.17} parent=0 // pred_region
    _
  $region33: #{image_encoder_forward.17} parent=0 // pred_fallthru
    _

// kernel: image_encoder_forward.16
$region0: #{image_encoder_forward.16}
  #allocation0 [shape = 'u32[]', space=smem, size = 0x4, offset = 0x4, fixed_abs, tag = 'smem constant byte address 0x4 - core index']
  #allocation1 [shape = 'u32[144,128]{1,0:T(1,128)}', space=vmem, size = 0x12000, scoped, tag = 'internal scratch']
  #allocation2 [shape = 'bf16[64,32]{1,0:T(16,128)(2,1)}', space=vmem, size = 0x4000, scoped, tag = 'scratch operand']
  %s0 = inlined_call_operand.vmem [shape: bf16[64,32], index: 0, kind: input, shape index: {}]
  %s1 = inlined_call_operand.vmem [shape: f32[1,32], index: 1, kind: input, shape index: {}]
  %s2 = inlined_call_operand.vmem [shape: f32[1,32], index: 2, kind: input, shape index: {}]
  %s3 = inlined_call_operand.vmem [shape: bf16[32,64], index: 3, kind: input, shape index: {}]
  %s4 = inlined_call_operand.vmem [shape: f32[1,64], index: 4, kind: input, shape index: {}]
  %s5 = inlined_call_operand.vmem [shape: bf16[64,64], index: 5, kind: output, shape index: {}]
  %s6 = sld [smem:[#allocation0]]
  $region34: #{image_encoder_forward.16} parent=0
    _
  %s8 = ssub.s32 1, %s6
  %s9 = scalar_select 0, %s8, %s6
  // Predicated region
  $region2: #{image_encoder_forward.16} parent=0 // pred_check
    _
  $region3: #{image_encoder_forward.16} parent=0 // pred_check_branch
    %11 = sbr.rel (0) target = $region5
  $region4: #{image_encoder_forward.16} parent=0 // pred_region
    _
  $region5: #{image_encoder_forward.16} parent=0 // pred_fallthru
    _
  // Predicated region
  $region6: #{image_encoder_forward.16} parent=0 // pred_check
    _
  $region7: #{image_encoder_forward.16} parent=0 // pred_check_branch
    %13 = sbr.rel (0) target = $region9
  $region8: #{image_encoder_forward.16} parent=0 // pred_region
    _
  $region9: #{image_encoder_forward.16} parent=0 // pred_fallthru
    _
  // Predicated region
  $region10: #{image_encoder_forward.16} parent=0 // pred_check
    _
  $region11: #{image_encoder_forward.16} parent=0 // pred_check_branch
    %15 = sbr.rel (0) target = $region13
  $region12: #{image_encoder_forward.16} parent=0 // pred_region
    _
  $region13: #{image_encoder_forward.16} parent=0 // pred_fallthru
    _
  // Predicated region
  $region14: #{image_encoder_forward.16} parent=0 // pred_check
    _
  $region15: #{image_encoder_forward.16} parent=0 // pred_check_branch
    %17 = sbr.rel (0) target = $region17
  $region16: #{image_encoder_forward.16} parent=0 // pred_region
    _
  $region17: #{image_encoder_forward.16} parent=0 // pred_fallthru
    _
  // Predicated region
  $region18: #{image_encoder_forward.16} parent=0 // pred_check
    _
  $region19: #{image_encoder_forward.16} parent=0 // pred_check_branch
    %19 = sbr.rel (0) target = $region21
  $region20: #{image_encoder_forward.16} parent=0 // pred_region
    _
  $region21: #{image_encoder_forward.16} parent=0 // pred_fallthru
    _
  %p21 = scmp.eq.s32.totalorder 0, 0
  // Predicated region
  $region22: #{image_encoder_forward.16} parent=0 // pred_check
    %p22 = pneg %p21
  $region23: #{image_encoder_forward.16} parent=0 // pred_check_branch
    %24 = sbr.rel (%p22) target = $region25
  $region24: #{image_encoder_forward.16} parent=0 // pred_region
    %v25 = vld [vmem:[%s0] sm:$0xf]
    %v26 = vld [vmem:[%s0 + $0x4] sm:$0xf]
    %v27 = vld [vmem:[%s0 + $0x8] sm:$0xf]
    %v28 = vld [vmem:[%s0 + $0xc] sm:$0xf]
    %v29 = vld [vmem:[%s0 + $0x10] sm:$0xf]
    %v30 = vld [vmem:[%s0 + $0x14] sm:$0xf]
    %v31 = vld [vmem:[%s0 + $0x18] sm:$0xf]
    %v32 = vld [vmem:[%s0 + $0x1c] sm:$0xf]
    %v33 = vld [vmem:[%s1] sm:$0x1]
    %v34 = vld [vmem:[%s2] sm:$0x1]
    %v35 = vunpack.c.l.bf16 %v25
    %v36 = vunpack.c.l.bf16 %v26
    %v37 = vunpack.c.l.bf16 %v27
    %v38 = vunpack.c.l.bf16 %v28
    %v39 = vunpack.c.l.bf16 %v29
    %v40 = vunpack.c.l.bf16 %v30
    %v41 = vunpack.c.l.bf16 %v31
    %v42 = vunpack.c.l.bf16 %v32
    %vm43 = vcmask 261120
    %v44 = vsel %vm43, %v35, 0.0
    %45 = vadd.xlane.f32.xlu0 %v44
    %v46 = vpop.xlane.xlu0 %45
    %v47 = vsel %vm43, %v36, 0.0
    %48 = vadd.xlane.f32.xlu0 %v47
    %v49 = vpop.xlane.xlu0 %48
    %v50 = vsel %vm43, %v37, 0.0
    %51 = vadd.xlane.f32.xlu0 %v50
    %v52 = vpop.xlane.xlu0 %51
    %v53 = vsel %vm43, %v38, 0.0
    %54 = vadd.xlane.f32.xlu0 %v53
    %v55 = vpop.xlane.xlu0 %54
    %v56 = vsel %vm43, %v39, 0.0
    %57 = vadd.xlane.f32.xlu0 %v56
    %v58 = vpop.xlane.xlu0 %57
    %v59 = vsel %vm43, %v40, 0.0
    %60 = vadd.xlane.f32.xlu0 %v59
    %v61 = vpop.xlane.xlu0 %60
    %v62 = vsel %vm43, %v41, 0.0
    %63 = vadd.xlane.f32.xlu0 %v62
    %v64 = vpop.xlane.xlu0 %63
    %v65 = vsel %vm43, %v42, 0.0
    %66 = vadd.xlane.f32.xlu0 %v65
    %v67 = vpop.xlane.xlu0 %66
    %v68 = vrcp.pop 32.0
    %v69 = vmul.f32 %v46, %v68
    %v70 = vmul.f32 %v49, %v68
    %v71 = vmul.f32 %v52, %v68
    %v72 = vmul.f32 %v55, %v68
    %v73 = vmul.f32 %v58, %v68
    %v74 = vmul.f32 %v61, %v68
    %v75 = vmul.f32 %v64, %v68
    %v76 = vmul.f32 %v67, %v68
    %v77 = vsub.f32 %v35, %v69
    %v78 = vsub.f32 %v36, %v70
    %v79 = vsub.f32 %v37, %v71
    %v80 = vsub.f32 %v38, %v72
    %v81 = vsub.f32 %v39, %v73
    %v82 = vsub.f32 %v40, %v74
    %v83 = vsub.f32 %v41, %v75
    %v84 = vsub.f32 %v42, %v76
    %v85 = vmul.f32 %v77, %v77
    %v86 = vmul.f32 %v78, %v78
    %v87 = vmul.f32 %v79, %v79
    %v88 = vmul.f32 %v80, %v80
    %v89 = vmul.f32 %v81, %v81
    %v90 = vmul.f32 %v82, %v82
    %v91 = vmul.f32 %v83, %v83
    %v92 = vmul.f32 %v84, %v84
    %v93 = vsel %vm43, %v85, 0.0
    %94 = vadd.xlane.f32.xlu0 %v93
    %v95 = vpop.xlane.xlu0 %94
    %v96 = vsel %vm43, %v86, 0.0
    %97 = vadd.xlane.f32.xlu0 %v96
    %v98 = vpop.xlane.xlu0 %97
    %v99 = vsel %vm43, %v87, 0.0
    %100 = vadd.xlane.f32.xlu0 %v99
    %v101 = vpop.xlane.xlu0 %100
    %v102 = vsel %vm43, %v88, 0.0
    %103 = vadd.xlane.f32.xlu0 %v102
    %v104 = vpop.xlane.xlu0 %103
    %v105 = vsel %vm43, %v89, 0.0
    %106 = vadd.xlane.f32.xlu0 %v105
    %v107 = vpop.xlane.xlu0 %106
    %v108 = vsel %vm43, %v90, 0.0
    %109 = vadd.xlane.f32.xlu0 %v108
    %v110 = vpop.xlane.xlu0 %109
    %v111 = vsel %vm43, %v91, 0.0
    %112 = vadd.xlane.f32.xlu0 %v111
    %v113 = vpop.xlane.xlu0 %112
    %v114 = vsel %vm43, %v92, 0.0
    %115 = vadd.xlane.f32.xlu0 %v114
    %v116 = vpop.xlane.xlu0 %115
    %v117 = vmul.f32 %v95, %v68
    %v118 = vmul.f32 %v98, %v68
    %v119 = vmul.f32 %v101, %v68
    %v120 = vmul.f32 %v104, %v68
    %v121 = vmul.f32 %v107, %v68
    %v122 = vmul.f32 %v110, %v68
    %v123 = vmul.f32 %v113, %v68
    %v124 = vmul.f32 %v116, %v68
    %v125 = vadd.f32 %v117, 1e-05
    %v126 = vadd.f32 %v118, 1e-05
    %v127 = vadd.f32 %v119, 1e-05
    %v128 = vadd.f32 %v120, 1e-05
    %v129 = vadd.f32 %v121, 1e-05
    %v130 = vadd.f32 %v122, 1e-05
    %v131 = vadd.f32 %v123, 1e-05
    %v132 = vadd.f32 %v124, 1e-05
    %v133 = vrsqrt.pop %v125
    %v134 = vrsqrt.pop %v126
    %v135 = vrsqrt.pop %v127
    %v136 = vrsqrt.pop %v128
    %v137 = vrsqrt.pop %v129
    %v138 = vrsqrt.pop %v130
    %v139 = vrsqrt.pop %v131
    %v140 = vrsqrt.pop %v132
    %v141 = vmul.f32 %v77, %v133
    %v142 = vmul.f32 %v78, %v134
    %v143 = vmul.f32 %v79, %v135
    %v144 = vmul.f32 %v80, %v136
    %v145 = vmul.f32 %v81, %v137
    %v146 = vmul.f32 %v82, %v138
    %v147 = vmul.f32 %v83, %v139
    %v148 = vmul.f32 %v84, %v140
    %v150 = vlaneseq
    %v151 = vshrl.u32 %v150, 7
    %v152 = vsub.s32 0, %v151
    %v153 = vrot.slane %v33, %v152
    %v155 = vmul.f32 %v141, %v153
    %v156 = vmul.f32 %v142, %v153
    %v157 = vmul.f32 %v143, %v153
    %v158 = vmul.f32 %v144, %v153
    %v159 = vmul.f32 %v145, %v153
    %v160 = vmul.f32 %v146, %v153
    %v161 = vmul.f32 %v147, %v153
    %v162 = vmul.f32 %v148, %v153
    %v164 = vlaneseq
    %v165 = vshrl.u32 %v164, 7
    %v166 = vsub.s32 0, %v165
    %v167 = vrot.slane %v34, %v166
    %v169 = vadd.f32 %v155, %v167
    %v170 = vadd.f32 %v156, %v167
    %v171 = vadd.f32 %v157, %v167
    %v172 = vadd.f32 %v158, %v167
    %v173 = vadd.f32 %v159, %v167
    %v174 = vadd.f32 %v160, %v167
    %v175 = vadd.f32 %v161, %v167
    %v176 = vadd.f32 %v162, %v167
    %v177 = vpack.c.bf16 %v170, %v169
    %v178 = vpack.c.bf16 %v172, %v171
    %v179 = vpack.c.bf16 %v174, %v173
    %v180 = vpack.c.bf16 %v176, %v175
    %181 = vst.msk [vmem:[#allocation2] sm:$0xff] %vm43, %v177
    %182 = vst.msk [vmem:[#allocation2 + $0x8] sm:$0xff] %vm43, %v178
    %183 = vst.msk [vmem:[#allocation2 + $0x10] sm:$0xff] %vm43, %v179
    %184 = vst.msk [vmem:[#allocation2 + $0x18] sm:$0xff] %vm43, %v180
  $region25: #{image_encoder_forward.16} parent=0 // pred_fallthru
    _
  %v185 = vld [vmem:[#allocation2] sm:$0xff]
  %v186 = vld [vmem:[#allocation2 + $0x8] sm:$0xff]
  %v187 = vld [vmem:[#allocation2 + $0x10] sm:$0xff]
  %v188 = vld [vmem:[#allocation2 + $0x18] sm:$0xff]
  %v189 = vld [vmem:[%s3] sm:$0xf]
  %v190 = vld [vmem:[%s3 + $0x4] sm:$0xf]
  %v191 = vld [vmem:[%s3 + $0x8] sm:$0xf]
  %v192 = vld [vmem:[%s3 + $0xc] sm:$0xf]
  %v193 = vld [vmem:[%s4] sm:$0x1]
  %v195 = vlaneseq
  %v196 = vshrl.u32 %v195, 7
  %v197 = vsub.s32 0, %v196
  %v198 = vrot.slane %v193, %v197
  %v204 = vunpack.c.l.b16 %v189
  %v205 = vunpack.c.l.b16 %v190
  %v206 = vunpack.c.l.b16 %v191
  %v207 = vunpack.c.l.b16 %v192
  %v208 = vpack.c.b16 %v205, %v204
  %v209 = vpack.c.b16 %v207, %v206
  %vm212 = vcmask 261120
  %v214 = vsel %vm212, %v185, 0
  %v217 = vsel %vm212, %v186, 0
  %v220 = vsel %vm212, %v187, 0
  %v223 = vsel %vm212, %v188, 0
  %225 = vmatprep.subr.bf16.mxu0 0
  %226 = vmatpush1.bf16.msra.mxu0 %v208
  %227 = vmatprep.subr.bf16.mxu0 0
  %228 = vmatpush1.bf16.msra.mxu0 %v209
  %229 = vmatprep.subr.bf16.mxu0 0
  %230 = vmatpush1.bf16.msra.mxu0 0
  %231 = vmatprep.subr.bf16.mxu0 0
  %232 = vmatpush1.bf16.msra.mxu0 0
  %233 = vmatprep.subr.bf16.mxu0 0
  %234 = vmatpush1.bf16.msra.mxu0 0
  %235 = vmatprep.subr.bf16.mxu0 0
  %236 = vmatpush1.bf16.msra.mxu0 0
  %237 = vmatprep.subr.bf16.mxu0 0
  %238 = vmatpush1.bf16.msra.mxu0 0
  %239 = vmatprep.subr.bf16.mxu0 0
  %240 = vmatpush1.bf16.msra.mxu0 0
  %241 = vmatprep.subr.bf16.mxu0 0
  %242 = vmatpush1.bf16.msra.mxu0 0
  %243 = vmatprep.subr.bf16.mxu0 0
  %244 = vmatpush1.bf16.msra.mxu0 0
  %245 = vmatprep.subr.bf16.mxu0 0
  %246 = vmatpush1.bf16.msra.mxu0 0
  %247 = vmatprep.subr.bf16.mxu0 0
  %248 = vmatpush1.bf16.msra.mxu0 0
  %249 = vmatprep.subr.bf16.mxu0 0
  %250 = vmatpush1.bf16.msra.mxu0 0
  %251 = vmatprep.subr.bf16.mxu0 0
  %252 = vmatpush1.bf16.msra.mxu0 0
  %253 = vmatprep.subr.bf16.mxu0 0
  %254 = vmatpush1.bf16.msra.mxu0 0
  %255 = vmatprep.subr.bf16.mxu0 0
  %256 = vmatpush1.bf16.msra.mxu0 0
  %257 = vmatprep.mubr.bf16.mxu0 0
  %258 = vmatmul.mubr.bf16.gmra.mrb[0].mxu0 %v214
  %v259 = vpop.f32.mrb[0].mxu0
  %v260 = vadd.f32 %v198, %v259
  %v261 = vpop.f32.mrb[0].mxu0
  %v262 = vpop.f32.mrb[0].mxu0
  %v263 = vadd.f32 %v198, %v262
  %v264 = vpop.f32.mrb[0].mxu0
  %265 = vmatprep.mubr.bf16.mxu0 0
  %266 = vmatmul.mubr.bf16.gmra.mrb[0].mxu0 %v217
  %v267 = vpop.f32.mrb[0].mxu0
  %v268 = vadd.f32 %v198, %v267
  %v269 = vpop.f32.mrb[0].mxu0
  %v270 = vpop.f32.mrb[0].mxu0
  %v271 = vadd.f32 %v198, %v270
  %v272 = vpop.f32.mrb[0].mxu0
  %273 = vmatprep.mubr.bf16.mxu0 0
  %274 = vmatmul.mubr.bf16.gmra.mrb[0].mxu0 %v220
  %v275 = vpop.f32.mrb[0].mxu0
  %v276 = vadd.f32 %v198, %v275
  %v277 = vpop.f32.mrb[0].mxu0
  %v278 = vpop.f32.mrb[0].mxu0
  %v279 = vadd.f32 %v198, %v278
  %v280 = vpop.f32.mrb[0].mxu0
  %281 = vmatprep.mubr.bf16.mxu0 0
  %282 = vmatmul.mubr.bf16.gmra.mrb[0].mxu0 %v223
  %v283 = vpop.f32.mrb[0].mxu0
  %v284 = vadd.f32 %v198, %v283
  %v285 = vpop.f32.mrb[0].mxu0
  %v286 = vpop.f32.mrb[0].mxu0
  %v287 = vadd.f32 %v198, %v286
  %v288 = vpop.f32.mrb[0].mxu0
  %289 = vdwg.mxu0
  %v290 = vmul.f32 %v260, 0.5
  %v291 = vmul.f32 %v263, 0.5
  %v292 = vmul.f32 %v268, 0.5
  %v293 = vmul.f32 %v271, 0.5
  %v294 = vmul.f32 %v276, 0.5
  %v295 = vmul.f32 %v279, 0.5
  %v296 = vmul.f32 %v284, 0.5
  %v297 = vmul.f32 %v287, 0.5
  %v298 = vmul.f32 %v260, 0.70710677
  %v299 = vmul.f32 %v263, 0.70710677
  %v300 = vmul.f32 %v268, 0.70710677
  %v301 = vmul.f32 %v271, 0.70710677
  %v302 = vmul.f32 %v276, 0.70710677
  %v303 = vmul.f32 %v279, 0.70710677
  %v304 = vmul.f32 %v284, 0.70710677
  %v305 = vmul.f32 %v287, 0.70710677
  %v306 = verf.f32.pop %v298
  %v307 = verf.f32.pop %v299
  %v308 = verf.f32.pop %v300
  %v309 = verf.f32.pop %v301
  %v310 = verf.f32.pop %v302
  %v311 = verf.f32.pop %v303
  %v312 = verf.f32.pop %v304
  %v313 = verf.f32.pop %v305
  %v314 = vadd.f32 %v306, 1.0
  %v315 = vadd.f32 %v307, 1.0
  %v316 = vadd.f32 %v308, 1.0
  %v317 = vadd.f32 %v309, 1.0
  %v318 = vadd.f32 %v310, 1.0
  %v319 = vadd.f32 %v311, 1.0
  %v320 = vadd.f32 %v312, 1.0
  %v321 = vadd.f32 %v313, 1.0
  %v322 = vmul.f32 %v290, %v314
  %v323 = vmul.f32 %v291, %v315
  %v324 = vmul.f32 %v292, %v316
  %v325 = vmul.f32 %v293, %v317
  %v326 = vmul.f32 %v294, %v318
  %v327 = vmul.f32 %v295, %v319
  %v328 = vmul.f32 %v296, %v320
  %v329 = vmul.f32 %v297, %v321
  %v330 = vpack.c.bf16 %v323, %v322
  %v331 = vpack.c.bf16 %v325, %v324
  %v332 = vpack.c.bf16 %v327, %v326
  %v333 = vpack.c.bf16 %v329, %v328
  %v338 = vunpack.c.l.b16 %v330
  %v339 = vunpack.c.h.b16 %v330
  %v340 = vunpack.c.l.b16 %v331
  %v341 = vunpack.c.h.b16 %v331
  %v342 = vunpack.c.l.b16 %v332
  %v343 = vunpack.c.h.b16 %v332
  %v344 = vunpack.c.l.b16 %v333
  %v345 = vunpack.c.h.b16 %v333
  %v346 = vpack.c.b16 %v338, %v338
  %v347 = vpack.c.b16 %v339, %v339
  %v348 = vpack.c.b16 %v340, %v340
  %v349 = vpack.c.b16 %v341, %v341
  %v350 = vpack.c.b16 %v342, %v342
  %v351 = vpack.c.b16 %v343, %v343
  %v352 = vpack.c.b16 %v344, %v344
  %v353 = vpack.c.b16 %v345, %v345
  %vm362 = vcmask 519168
  %363 = vst.msk [vmem:[%s5] sm:$0xf] %vm362, %v346
  %364 = vst.msk [vmem:[%s5 + $0x4] sm:$0xf] %vm362, %v347
  %365 = vst.msk [vmem:[%s5 + $0x8] sm:$0xf] %vm362, %v348
  %366 = vst.msk [vmem:[%s5 + $0xc] sm:$0xf] %vm362, %v349
  %367 = vst.msk [vmem:[%s5 + $0x10] sm:$0xf] %vm362, %v350
  %368 = vst.msk [vmem:[%s5 + $0x14] sm:$0xf] %vm362, %v351
  %369 = vst.msk [vmem:[%s5 + $0x18] sm:$0xf] %vm362, %v352
  %370 = vst.msk [vmem:[%s5 + $0x1c] sm:$0xf] %vm362, %v353
  // Predicated region
  $region26: #{image_encoder_forward.16} parent=0 // pred_check
    _
  $region27: #{image_encoder_forward.16} parent=0 // pred_check_branch
    %372 = sbr.rel (0) target = $region29
  $region28: #{image_encoder_forward.16} parent=0 // pred_region
    _
  $region29: #{image_encoder_forward.16} parent=0 // pred_fallthru
    _
  // Predicated region
  $region30: #{image_encoder_forward.16} parent=0 // pred_check
    _
  $region31: #{image_encoder_forward.16} parent=0 // pred_check_branch
    %374 = sbr.rel (0) target = $region33
  $region32: #{image_encoder_forward.16} parent=0 // pred_region
    _
  $region33: #{image_encoder_forward.16} parent=0 // pred_fallthru
    _

</llo_original>
